<compile_context>
chip_gen: v5e
topology: v5e:2x2
jax: 0.10.0
libtpu: 0.0.40
codegen_flags: <defaults>
</compile_context>

<pallas_src>
import math

import jax
import jax.numpy as jnp
import numpy as np
from jax import lax
from jax.experimental import pallas as pl
from jax.experimental.pallas import tpu as pltpu


# ----------------------------------------------------------------------------
# small helpers
# ----------------------------------------------------------------------------
def _round_up(x, m):
    return (x + m - 1) // m * m


def _largest_divisor_leq(n, cap):
    for d in range(min(n, cap), 0, -1):
        if n % d == 0:
            return d
    return 1


# ----------------------------------------------------------------------------
# Pallas kernels
# ----------------------------------------------------------------------------
def _linear_kernel(x_ref, w_ref, b_ref, o_ref):
    """o = x @ w + b  (bf16 operands, f32 accumulation / output)."""
    x = x_ref[...].astype(jnp.bfloat16)
    o_ref[...] = (jnp.dot(x, w_ref[...], preferred_element_type=jnp.float32)
                  + b_ref[...]).astype(o_ref.dtype)


def _gru_step(h, p_zr, p_g, whzr, whg, H):
    """One GRU cell step given precomputed input pre-activations.

    h     : (B, H)  f32 carried hidden state
    p_zr  : (B, 2H) f32 = x@[Wxz|Wxr] + [bxz|bxr]
    p_g   : (B, H)  f32 = x@Wxg + bxg
    whzr  : (H, 2H) bf16 fused hidden weights for z and r
    whg   : (H, H)  bf16 hidden weights for g
    """
    hzr = jnp.dot(h.astype(jnp.bfloat16), whzr,
                  preferred_element_type=jnp.float32)            # (B, 2H)
    zr = jax.nn.sigmoid(p_zr + hzr)                              # (B, 2H) f32
    z = zr[:, :H]
    r = zr[:, H:]
    g = jnp.tanh(p_g + jnp.dot((r * h).astype(jnp.bfloat16), whg,
                               preferred_element_type=jnp.float32))
    return z * h + (1.0 - z) * g


def _gru_layer0_kernel(pxzr_ref, pxg_ref, h0_ref, whzr_ref, whg_ref,
                       out_ref, hfin_ref, h_scr):
    """Layer 0: full recurrence, emits per-step outputs + final hidden.

    Grid: (S // T,) over time blocks (sequential / "arbitrary").
    Block shapes: pxzr (T,B,2H), pxg (T,B,H), out (T,B,H).
    """
    tb = pl.program_id(0)
    T = pxzr_ref.shape[0]
    H = hfin_ref.shape[-1]

    @pl.when(tb == 0)
    def _():
        h_scr[...] = h0_ref[...]

    whzr = whzr_ref[...]
    whg = whg_ref[...]

    def step(t, h):
        h_new = _gru_step(h, pxzr_ref[t], pxg_ref[t], whzr, whg, H)
        out_ref[t] = h_new.astype(out_ref.dtype)
        return h_new

    h_last = lax.fori_loop(0, T, step, h_scr[...], unroll=(T <= 16))
    h_scr[...] = h_last

    @pl.when(tb == pl.num_programs(0) - 1)
    def _():
        hfin_ref[...] = h_last.astype(hfin_ref.dtype)


def _gru_upper_kernel(pxzr_ref, pxg_ref, h0_ref, whzr_ref, whg_ref,
                      hfin_ref, h_scr):
    """Layers >= 1: independent recurrences, only final hidden is needed.

    Grid: (L-1, S // T) with ("parallel", "arbitrary") semantics.
    """
    tb = pl.program_id(1)
    T = pxzr_ref.shape[1]
    H = hfin_ref.shape[-1]

    @pl.when(tb == 0)
    def _():
        h_scr[...] = h0_ref[0]

    whzr = whzr_ref[0]
    whg = whg_ref[0]
    pxzr_l = pxzr_ref.at[0]
    pxg_l = pxg_ref.at[0]

    def step(t, h):
        return _gru_step(h, pxzr_l[t], pxg_l[t], whzr, whg, H)

    h_last = lax.fori_loop(0, T, step, h_scr[...], unroll=(T <= 16))
    h_scr[...] = h_last

    @pl.when(tb == pl.num_programs(1) - 1)
    def _():
        hfin_ref[0] = h_last.astype(hfin_ref.dtype)


# ----------------------------------------------------------------------------
# pallas_call wrappers
# ----------------------------------------------------------------------------
def linear_pallas(x2d, w_bf16, b_f32):
    """x2d: (N, D) f32, w: (D, O) bf16, b: (1, O) f32 -> (N, O) f32."""
    N, D = x2d.shape
    O = w_bf16.shape[1]
    bn = _largest_divisor_leq(N, 512)
    return pl.pallas_call(
        _linear_kernel,
        out_shape=jax.ShapeDtypeStruct((N, O), jnp.float32),
        grid_spec=pltpu.PrefetchScalarGridSpec(
            num_scalar_prefetch=0,
            grid=(N // bn,),
            in_specs=[pl.BlockSpec((bn, D), lambda i: (i, 0)),
                      pl.BlockSpec((D, O), lambda i: (0, 0)),
                      pl.BlockSpec((1, O), lambda i: (0, 0))],
            out_specs=pl.BlockSpec((bn, O), lambda i: (i, 0)),
        ),
        compiler_params=pltpu.CompilerParams(
            dimension_semantics=("parallel",)),
    )(x2d, w_bf16, b_f32)


def gru_layer0(pxzr, pxg, h0, whzr, whg, T):
    """pxzr: (S,B,2H) f32, pxg: (S,B,H) f32, h0: (B,H) f32, whzr/whg bf16."""
    S, Bp, H2 = pxzr.shape
    H = H2 // 2
    out_seq, h_fin = pl.pallas_call(
        _gru_layer0_kernel,
        out_shape=(jax.ShapeDtypeStruct((S, Bp, H), jnp.float32),
                   jax.ShapeDtypeStruct((Bp, H), jnp.float32)),
        grid_spec=pltpu.PrefetchScalarGridSpec(
            num_scalar_prefetch=0,
            grid=(S // T,),
            in_specs=[
                pl.BlockSpec((T, Bp, 2 * H), lambda t: (t, 0, 0)),
                pl.BlockSpec((T, Bp, H), lambda t: (t, 0, 0)),
                pl.BlockSpec((Bp, H), lambda t: (0, 0)),
                pl.BlockSpec((H, 2 * H), lambda t: (0, 0)),
                pl.BlockSpec((H, H), lambda t: (0, 0)),
            ],
            out_specs=[
                pl.BlockSpec((T, Bp, H), lambda t: (t, 0, 0)),
                pl.BlockSpec((Bp, H), lambda t: (0, 0)),
            ],
            scratch_shapes=[pltpu.VMEM((Bp, H), jnp.float32)],
        ),
        compiler_params=pltpu.CompilerParams(
            dimension_semantics=("arbitrary",)),   # time is sequential
    )(pxzr, pxg, h0, whzr, whg)
    return out_seq, h_fin


def gru_upper_layers(pxzr, pxg, h0, whzr, whg, T):
    """Stacked layers >= 1. Shapes: pxzr (L-1,S,B,2H), pxg (L-1,S,B,H),
    h0 (L-1,B,H) f32, whzr (L-1,H,2H) / whg (L-1,H,H) bf16.
    Returns final hidden states (L-1, B, H)."""
    L1, S, Bp, H2 = pxzr.shape
    H = H2 // 2
    return pl.pallas_call(
        _gru_upper_kernel,
        out_shape=jax.ShapeDtypeStruct((L1, Bp, H), jnp.float32),
        grid_spec=pltpu.PrefetchScalarGridSpec(
            num_scalar_prefetch=0,
            grid=(L1, S // T),
            in_specs=[
                pl.BlockSpec((1, T, Bp, 2 * H), lambda l, t: (l, t, 0, 0)),
                pl.BlockSpec((1, T, Bp, H), lambda l, t: (l, t, 0, 0)),
                pl.BlockSpec((1, Bp, H), lambda l, t: (l, 0, 0)),
                pl.BlockSpec((1, H, 2 * H), lambda l, t: (l, 0, 0)),
                pl.BlockSpec((1, H, H), lambda l, t: (l, 0, 0)),
            ],
            out_specs=pl.BlockSpec((1, Bp, H), lambda l, t: (l, 0, 0)),
            scratch_shapes=[pltpu.VMEM((Bp, H), jnp.float32)],
        ),
        compiler_params=pltpu.CompilerParams(
            dimension_semantics=("parallel", "arbitrary")),
    )(pxzr, pxg, h0, whzr, whg)


# ----------------------------------------------------------------------------
# Parameter init (deterministic, mimics nn.Linear uniform(-1/sqrt(fan_in), ..))
# Weights are stored pre-transposed as (in_features, out_features).
# ----------------------------------------------------------------------------
def init_params(key, in_dim, h_dim, out_dim, n_layers):
    def lin(k, fan_in, fan_out, bias):
        bound = 1.0 / math.sqrt(fan_in)
        kw, kb = jax.random.split(k)
        w = jax.random.uniform(kw, (fan_in, fan_out), jnp.float32, -bound, bound)
        if bias:
            b = jax.random.uniform(kb, (1, fan_out), jnp.float32, -bound, bound)
            return w, b
        return w

    layer_params = []
    keys = jax.random.split(key, n_layers + 1)
    for layer in range(n_layers):
        x_in = in_dim if layer == 0 else h_dim
        ks = jax.random.split(keys[layer], 6)
        wxz, bxz = lin(ks[0], x_in, h_dim, True)
        whz = lin(ks[1], h_dim, h_dim, False)
        wxr, bxr = lin(ks[2], x_in, h_dim, True)
        whr = lin(ks[3], h_dim, h_dim, False)
        wxg, bxg = lin(ks[4], x_in, h_dim, True)
        whg = lin(ks[5], h_dim, h_dim, False)
        layer_params.append((wxz, bxz, whz, wxr, bxr, whr, wxg, bxg, whg))
    w_out, b_out = lin(keys[-1], h_dim, out_dim, True)
    return layer_params, (w_out, b_out)


def _pack_gru_layer(p):
    """Pack one layer: fused input weights (Din,3H)+bias (1,3H), fused Whzr."""
    wxz, bxz, whz, wxr, bxr, whr, wxg, bxg, whg = p
    wx = jnp.concatenate([wxz, wxr, wxg], axis=1).astype(jnp.bfloat16)
    bx = jnp.concatenate([bxz, bxr, bxg], axis=1)                 # f32
    whzr = jnp.concatenate([whz, whr], axis=1).astype(jnp.bfloat16)
    return wx, bx, whzr, whg.astype(jnp.bfloat16)


# ----------------------------------------------------------------------------
# Forward pass (bug-faithful to the PyTorch reference)
# ----------------------------------------------------------------------------
def multilayer_gru_forward(x, layer_params, out_params, n_layers, h_dim,
                           hidden_state=None):
    """x: (B, S, in_dim). Returns (layer_output (B,S,out_dim), hidden (B,L,H))."""
    B, S, in_dim = x.shape
    H = h_dim
    Bp = _round_up(B, 8)                       # sublane padding of batch
    T = _largest_divisor_leq(S, 32)            # timesteps per grid step

    xp = x if Bp == B else jnp.pad(x, ((0, Bp - B), (0, 0), (0, 0)))
    if hidden_state is None:
        h0_all = jnp.zeros((n_layers, Bp, H), jnp.float32)
    else:
        h0_all = jnp.transpose(hidden_state, (1, 0, 2)).astype(jnp.float32)
        if Bp != B:
            h0_all = jnp.pad(h0_all, ((0, 0), (0, Bp - B), (0, 0)))

    packed = [_pack_gru_layer(p) for p in layer_params]
    w_out, b_out = out_params
    O = w_out.shape[1]

    x_tm = jnp.transpose(xp, (1, 0, 2))        # (S, Bp, in_dim) time-major

    # ---- layer 0: hoisted input projection (one matmul) + recurrence -------
    wx0, bx0, whzr0, whg0 = packed[0]
    px0 = linear_pallas(x_tm.reshape(S * Bp, in_dim), wx0, bx0)   # (S*Bp, 3H)
    px0 = px0.reshape(S, Bp, 3 * H)
    out0_tm, hfin0 = gru_layer0(px0[:, :, :2 * H], px0[:, :, 2 * H:],
                                h0_all[0], whzr0, whg0, T)

    # ---- one wide matmul: input projections of layers>=1  +  output head ---
    # (both consume layer 0's outputs -- the reference's accumulation quirk)
    out0_flat = out0_tm.reshape(S * Bp, H)
    w_cat = [p[0] for p in packed[1:]] + [w_out.astype(jnp.bfloat16)]
    b_cat = [p[1] for p in packed[1:]] + [b_out]
    proj = linear_pallas(out0_flat,
                         jnp.concatenate(w_cat, axis=1),
                         jnp.concatenate(b_cat, axis=1))  # (S*Bp, (L-1)*3H + O)

    if n_layers > 1:
        px_rest = proj[:, :(n_layers - 1) * 3 * H]
        px_rest = px_rest.reshape(S, Bp, n_layers - 1, 3 * H)
        px_rest = jnp.transpose(px_rest, (2, 0, 1, 3))    # (L-1, S, Bp, 3H)
        whzr_rest = jnp.stack([p[2] for p in packed[1:]], axis=0)
        whg_rest = jnp.stack([p[3] for p in packed[1:]], axis=0)
        hfin_rest = gru_upper_layers(px_rest[..., :2 * H], px_rest[..., 2 * H:],
                                     h0_all[1:], whzr_rest, whg_rest, T)
        hfin_all = jnp.concatenate([hfin0[None], hfin_rest], axis=0)
    else:
        hfin_all = hfin0[None]

    hidden_out = jnp.transpose(hfin_all, (1, 0, 2))[:B]   # (B, L, H)

    y_flat = proj[:, (n_layers - 1) * 3 * H:]             # (S*Bp, O)
    layer_output = jnp.transpose(y_flat.reshape(S, Bp, O), (1, 0, 2))[:B]
    return layer_output, hidden_out


# ----------------------------------------------------------------------------
# Pure-JAX f32 reference (same bug-faithful semantics) for sanity checking
# ----------------------------------------------------------------------------
def reference_forward(x, layer_params, out_params, n_layers, h_dim,
                      hidden_state=None):
    B, S, _ = x.shape

    def run_layer(x_seq, h, p):
        wxz, bxz, whz, wxr, bxr, whr, wxg, bxg, whg = p
        outs = []
        for t in range(S):
            xt = x_seq[:, t, :]
            z = jax.nn.sigmoid(xt @ wxz + bxz + h @ whz)
            r = jax.nn.sigmoid(xt @ wxr + bxr + h @ whr)
            g = jnp.tanh(xt @ wxg + bxg + (r * h) @ whg)
            h = z * h + (1.0 - z) * g
            outs.append(h)
        return jnp.stack(outs, axis=1), h

    def h0(l):
        if hidden_state is None:
            return jnp.zeros((B, h_dim), jnp.float32)
        return hidden_state[:, l, :]

    out0, hf0 = run_layer(x, h0(0), layer_params[0])
    finals = [hf0]
    for l in range(1, n_layers):
        _, hf = run_layer(out0, h0(l), layer_params[l])
        finals.append(hf)
    w_out, b_out = out_params
    y = out0 @ w_out + b_out
    return y, jnp.stack(finals, axis=1)


# ----------------------------------------------------------------------------
if __name__ == "__main__":
    in_dim, h_dim, out_dim, n_layers = 4, 32, 4, 3
    B, S = 2, 8

    key = jax.random.PRNGKey(0)
    k_param, k_x = jax.random.split(key)
    layer_params, out_params = init_params(k_param, in_dim, h_dim, out_dim,
                                           n_layers)
    x = jax.random.normal(k_x, (B, S, in_dim), jnp.float32)

    @jax.jit
    def fwd(x, layer_params, out_params):
        return multilayer_gru_forward(x, layer_params, out_params,
                                      n_layers, h_dim, hidden_state=None)

    layer_output, hidden_state = fwd(x, layer_params, out_params)
    jax.block_until_ready((layer_output, hidden_state))

    assert layer_output.shape == (B, S, out_dim)
    assert hidden_state.shape == (B, n_layers, h_dim)

    ref_out, ref_hidden = reference_forward(x, layer_params, out_params,
                                            n_layers, h_dim)
    # bf16 matmuls with f32 accumulation vs f32 reference -> slightly looser tol
    np.testing.assert_allclose(np.asarray(layer_output), np.asarray(ref_out),
                               rtol=2e-2, atol=2e-2)
    np.testing.assert_allclose(np.asarray(hidden_state), np.asarray(ref_hidden),
                               rtol=2e-2, atol=2e-2)

    print("KERNEL_OK")
</pallas_src>

<mosaic_0001>
module attributes {stable_mosaic.version = 11 : i64} {
  func.func @_linear_kernel(%arg0: i32, %arg1: memref<64x4xf32, #tpu.memory_space<vmem>>, %arg2: memref<4x96xbf16, #tpu.memory_space<vmem>>, %arg3: memref<1x96xf32, #tpu.memory_space<vmem>>, %arg4: memref<64x96xf32, #tpu.memory_space<vmem>>) attributes {dimension_semantics = [#tpu.dimension_semantics<parallel>], iteration_bounds = array<i64: 1>, scalar_prefetch = 0 : i64, scratch_operands = 0 : i64, tpu.core_type = #tpu.core_type<tc>, window_params = [{transform_indices = @transform_0, window_bounds = array<i64: 64, 4>}, {pipeline_mode = #tpu.pipeline_mode<synchronous>, transform_indices = @transform_1, window_bounds = array<i64: 4, 96>}, {pipeline_mode = #tpu.pipeline_mode<synchronous>, transform_indices = @transform_2, window_bounds = array<i64: 1, 96>}, {transform_indices = @transform_3, window_bounds = array<i64: 64, 96>}]} {
    %c0 = arith.constant 0 : index
    %c0_0 = arith.constant 0 : index
    %0 = vector.load %arg1[%c0, %c0_0] : memref<64x4xf32, #tpu.memory_space<vmem>>, vector<64x4xf32>
    %1 = arith.truncf %0 : vector<64x4xf32> to vector<64x4xbf16>
    %c0_1 = arith.constant 0 : index
    %c0_2 = arith.constant 0 : index
    %2 = vector.load %arg2[%c0_1, %c0_2] : memref<4x96xbf16, #tpu.memory_space<vmem>>, vector<4x96xbf16>
    %cst = arith.constant dense<0.000000e+00> : vector<64x96xf32>
    %3 = tpu.matmul %1, %2, %cst {dimension_numbers = #tpu.dot_dimension_numbers<[1], [0], [0], [1], [0, 0, 1, 1], [], []>} : vector<64x4xbf16>, vector<4x96xbf16>, vector<64x96xf32> -> vector<64x96xf32>
    %c0_3 = arith.constant 0 : index
    %c0_4 = arith.constant 0 : index
    %4 = vector.load %arg3[%c0_3, %c0_4] : memref<1x96xf32, #tpu.memory_space<vmem>>, vector<1x96xf32>
    %5 = vector.broadcast %4 : vector<1x96xf32> to vector<64x96xf32>
    %6 = arith.addf %3, %5 : vector<64x96xf32>
    %c0_5 = arith.constant 0 : index
    %c0_6 = arith.constant 0 : index
    %7 = vector.load %arg4[%c0_5, %c0_6] : memref<64x96xf32, #tpu.memory_space<vmem>>, vector<64x96xf32>
    tpu.vector_store %arg4[%c0_5, %c0_6], %6 {strides = array<i32>} : memref<64x96xf32, #tpu.memory_space<vmem>>, vector<64x96xf32>,
    return
  }
  func.func @transform_0(%arg0: i32) -> (i32, i32) {
    %c0_i32 = arith.constant 0 : i32
    %c0_i32_0 = arith.constant 0 : i32
    return %arg0, %c0_i32 : i32, i32
  }
  func.func @transform_1(%arg0: i32) -> (i32, i32) {
    %c0_i32 = arith.constant 0 : i32
    %c0_i32_0 = arith.constant 0 : i32
    %c0_i32_1 = arith.constant 0 : i32
    return %c0_i32, %c0_i32_0 : i32, i32
  }
  func.func @transform_2(%arg0: i32) -> (i32, i32) {
    %c0_i32 = arith.constant 0 : i32
    %c0_i32_0 = arith.constant 0 : i32
    %c0_i32_1 = arith.constant 0 : i32
    return %c0_i32, %c0_i32_0 : i32, i32
  }
  func.func @transform_3(%arg0: i32) -> (i32, i32) {
    %c0_i32 = arith.constant 0 : i32
    %c0_i32_0 = arith.constant 0 : i32
    return %arg0, %c0_i32 : i32, i32
  }
}

module attributes {stable_mosaic.version = 11 : i64} {
  func.func @_linear_kernel(%arg0: i32, %arg1: memref<64x32xf32, #tpu.memory_space<vmem>>, %arg2: memref<32x196xbf16, #tpu.memory_space<vmem>>, %arg3: memref<1x196xf32, #tpu.memory_space<vmem>>, %arg4: memref<64x196xf32, #tpu.memory_space<vmem>>) attributes {dimension_semantics = [#tpu.dimension_semantics<parallel>], iteration_bounds = array<i64: 1>, scalar_prefetch = 0 : i64, scratch_operands = 0 : i64, tpu.core_type = #tpu.core_type<tc>, window_params = [{transform_indices = @transform_0, window_bounds = array<i64: 64, 32>}, {pipeline_mode = #tpu.pipeline_mode<synchronous>, transform_indices = @transform_1, window_bounds = array<i64: 32, 196>}, {pipeline_mode = #tpu.pipeline_mode<synchronous>, transform_indices = @transform_2, window_bounds = array<i64: 1, 196>}, {transform_indices = @transform_3, window_bounds = array<i64: 64, 196>}]} {
    %c0 = arith.constant 0 : index
    %c0_0 = arith.constant 0 : index
    %0 = vector.load %arg1[%c0, %c0_0] : memref<64x32xf32, #tpu.memory_space<vmem>>, vector<64x32xf32>
    %1 = arith.truncf %0 : vector<64x32xf32> to vector<64x32xbf16>
    %c0_1 = arith.constant 0 : index
    %c0_2 = arith.constant 0 : index
    %2 = vector.load %arg2[%c0_1, %c0_2] : memref<32x196xbf16, #tpu.memory_space<vmem>>, vector<32x196xbf16>
    %cst = arith.constant dense<0.000000e+00> : vector<64x196xf32>
    %3 = tpu.matmul %1, %2, %cst {dimension_numbers = #tpu.dot_dimension_numbers<[1], [0], [0], [1], [0, 0, 1, 1], [], []>} : vector<64x32xbf16>, vector<32x196xbf16>, vector<64x196xf32> -> vector<64x196xf32>
    %c0_3 = arith.constant 0 : index
    %c0_4 = arith.constant 0 : index
    %4 = vector.load %arg3[%c0_3, %c0_4] : memref<1x196xf32, #tpu.memory_space<vmem>>, vector<1x196xf32>
    %5 = vector.broadcast %4 : vector<1x196xf32> to vector<64x196xf32>
    %6 = arith.addf %3, %5 : vector<64x196xf32>
    %c0_5 = arith.constant 0 : index
    %c0_6 = arith.constant 0 : index
    %7 = vector.load %arg4[%c0_5, %c0_6] : memref<64x196xf32, #tpu.memory_space<vmem>>, vector<64x196xf32>
    tpu.vector_store %arg4[%c0_5, %c0_6], %6 {strides = array<i32>} : memref<64x196xf32, #tpu.memory_space<vmem>>, vector<64x196xf32>,
    return
  }
  func.func @transform_0(%arg0: i32) -> (i32, i32) {
    %c0_i32 = arith.constant 0 : i32
    %c0_i32_0 = arith.constant 0 : i32
    return %arg0, %c0_i32 : i32, i32
  }
  func.func @transform_1(%arg0: i32) -> (i32, i32) {
    %c0_i32 = arith.constant 0 : i32
    %c0_i32_0 = arith.constant 0 : i32
    %c0_i32_1 = arith.constant 0 : i32
    return %c0_i32, %c0_i32_0 : i32, i32
  }
  func.func @transform_2(%arg0: i32) -> (i32, i32) {
    %c0_i32 = arith.constant 0 : i32
    %c0_i32_0 = arith.constant 0 : i32
    %c0_i32_1 = arith.constant 0 : i32
    return %c0_i32, %c0_i32_0 : i32, i32
  }
  func.func @transform_3(%arg0: i32) -> (i32, i32) {
    %c0_i32 = arith.constant 0 : i32
    %c0_i32_0 = arith.constant 0 : i32
    return %arg0, %c0_i32 : i32, i32
  }
}

module attributes {stable_mosaic.version = 11 : i64} {
  func.func @_gru_layer0_kernel(%arg0: i32, %arg1: memref<8x8x64xf32, #tpu.memory_space<vmem>>, %arg2: memref<8x8x32xf32, #tpu.memory_space<vmem>>, %arg3: memref<8x32xf32, #tpu.memory_space<vmem>>, %arg4: memref<32x64xbf16, #tpu.memory_space<vmem>>, %arg5: memref<32x32xbf16, #tpu.memory_space<vmem>>, %arg6: memref<8x8x32xf32, #tpu.memory_space<vmem>>, %arg7: memref<8x32xf32, #tpu.memory_space<vmem>>, %arg8: memref<8x32xf32, #tpu.memory_space<vmem>>) attributes {dimension_semantics = [#tpu.dimension_semantics<arbitrary>], iteration_bounds = array<i64: 1>, scalar_prefetch = 0 : i64, scratch_operands = 1 : i64, tpu.core_type = #tpu.core_type<tc>, window_params = [{transform_indices = @transform_0, window_bounds = array<i64: 8, 8, 64>}, {transform_indices = @transform_1, window_bounds = array<i64: 8, 8, 32>}, {pipeline_mode = #tpu.pipeline_mode<synchronous>, transform_indices = @transform_2, window_bounds = array<i64: 8, 32>}, {pipeline_mode = #tpu.pipeline_mode<synchronous>, transform_indices = @transform_3, window_bounds = array<i64: 32, 64>}, {pipeline_mode = #tpu.pipeline_mode<synchronous>, transform_indices = @transform_4, window_bounds = array<i64: 32, 32>}, {transform_indices = @transform_5, window_bounds = array<i64: 8, 8, 32>}, {pipeline_mode = #tpu.pipeline_mode<synchronous>, transform_indices = @transform_6, window_bounds = array<i64: 8, 32>}]} {
    %c0_i32 = arith.constant 0 : i32
    %0 = arith.cmpi eq, %arg0, %c0_i32 : i32
    %1 = arith.extui %0 : i1 to i32
    %c0_i32_0 = arith.constant 0 : i32
    %2 = arith.cmpi ne, %1, %c0_i32_0 : i32
    scf.if %2 {
      %c0_90 = arith.constant 0 : index
      %c0_91 = arith.constant 0 : index
      %250 = vector.load %arg3[%c0_90, %c0_91] : memref<8x32xf32, #tpu.memory_space<vmem>>, vector<8x32xf32>
      %c0_92 = arith.constant 0 : index
      %c0_93 = arith.constant 0 : index
      %251 = vector.load %arg8[%c0_92, %c0_93] : memref<8x32xf32, #tpu.memory_space<vmem>>, vector<8x32xf32>
      tpu.vector_store %arg8[%c0_92, %c0_93], %250 {strides = array<i32>} : memref<8x32xf32, #tpu.memory_space<vmem>>, vector<8x32xf32>,
    } else {
    }
    %c0 = arith.constant 0 : index
    %c0_1 = arith.constant 0 : index
    %3 = vector.load %arg4[%c0, %c0_1] : memref<32x64xbf16, #tpu.memory_space<vmem>>, vector<32x64xbf16>
    %c0_2 = arith.constant 0 : index
    %c0_3 = arith.constant 0 : index
    %4 = vector.load %arg5[%c0_2, %c0_3] : memref<32x32xbf16, #tpu.memory_space<vmem>>, vector<32x32xbf16>
    %c0_4 = arith.constant 0 : index
    %c0_5 = arith.constant 0 : index
    %5 = vector.load %arg8[%c0_4, %c0_5] : memref<8x32xf32, #tpu.memory_space<vmem>>, vector<8x32xf32>
    %c0_i32_6 = arith.constant 0 : i32
    %6 = arith.index_cast %c0_i32_6 : i32 to index
    %c0_7 = arith.constant 0 : index
    %c0_8 = arith.constant 0 : index
    %7 = vector.load %arg1[%6, %c0_7, %c0_8] : memref<8x8x64xf32, #tpu.memory_space<vmem>>, vector<1x8x64xf32>
    %8 = vector.shape_cast %7 : vector<1x8x64xf32> to vector<8x64xf32>
    %9 = arith.index_cast %c0_i32_6 : i32 to index
    %c0_9 = arith.constant 0 : index
    %c0_10 = arith.constant 0 : index
    %10 = vector.load %arg2[%9, %c0_9, %c0_10] : memref<8x8x32xf32, #tpu.memory_space<vmem>>, vector<1x8x32xf32>
    %11 = vector.shape_cast %10 : vector<1x8x32xf32> to vector<8x32xf32>
    %12 = arith.truncf %5 : vector<8x32xf32> to vector<8x32xbf16>
    %cst = arith.constant dense<0.000000e+00> : vector<8x64xf32>
    %13 = tpu.matmul %12, %3, %cst {dimension_numbers = #tpu.dot_dimension_numbers<[1], [0], [0], [1], [0, 0, 1, 1], [], []>} : vector<8x32xbf16>, vector<32x64xbf16>, vector<8x64xf32> -> vector<8x64xf32>
    %14 = arith.addf %8, %13 : vector<8x64xf32>
    %15 = arith.negf %14 : vector<8x64xf32>
    %16 = math.exp %15 : vector<8x64xf32>
    %cst_11 = arith.constant 1.000000e+00 : f32
    %17 = vector.broadcast %cst_11 : f32 to vector<8x64xf32>
    %18 = arith.addf %17, %16 : vector<8x64xf32>
    %19 = arith.divf %17, %18 : vector<8x64xf32>
    %20 = vector.extract_strided_slice %19 {offsets = [0, 0], sizes = [8, 32], strides = [1, 1]} : vector<8x64xf32> to vector<8x32xf32>
    %21 = vector.extract_strided_slice %19 {offsets = [0, 32], sizes = [8, 32], strides = [1, 1]} : vector<8x64xf32> to vector<8x32xf32>
    %22 = arith.mulf %21, %5 : vector<8x32xf32>
    %23 = arith.truncf %22 : vector<8x32xf32> to vector<8x32xbf16>
    %cst_12 = arith.constant dense<0.000000e+00> : vector<8x32xf32>
    %24 = tpu.matmul %23, %4, %cst_12 {dimension_numbers = #tpu.dot_dimension_numbers<[1], [0], [0], [1], [0, 0, 1, 1], [], []>} : vector<8x32xbf16>, vector<32x32xbf16>, vector<8x32xf32> -> vector<8x32xf32>
    %25 = arith.addf %11, %24 : vector<8x32xf32>
    %26 = math.tanh %25 : vector<8x32xf32>
    %27 = arith.mulf %20, %5 : vector<8x32xf32>
    %cst_13 = arith.constant 1.000000e+00 : f32
    %28 = vector.broadcast %cst_13 : f32 to vector<8x32xf32>
    %29 = arith.subf %28, %20 : vector<8x32xf32>
    %30 = arith.mulf %29, %26 : vector<8x32xf32>
    %31 = arith.addf %27, %30 : vector<8x32xf32>
    %32 = arith.index_cast %c0_i32_6 : i32 to index
    %c0_14 = arith.constant 0 : index
    %c0_15 = arith.constant 0 : index
    %33 = vector.load %arg6[%32, %c0_14, %c0_15] : memref<8x8x32xf32, #tpu.memory_space<vmem>>, vector<1x8x32xf32>
    %34 = vector.shape_cast %33 : vector<1x8x32xf32> to vector<8x32xf32>
    %35 = vector.shape_cast %31 : vector<8x32xf32> to vector<1x8x32xf32>
    tpu.vector_store %arg6[%32, %c0_14, %c0_15], %35 {strides = array<i32>} : memref<8x8x32xf32, #tpu.memory_space<vmem>>, vector<1x8x32xf32>,
    %c1_i32 = arith.constant 1 : i32
    %36 = arith.index_cast %c1_i32 : i32 to index
    %c0_16 = arith.constant 0 : index
    %c0_17 = arith.constant 0 : index
    %37 = vector.load %arg1[%36, %c0_16, %c0_17] : memref<8x8x64xf32, #tpu.memory_space<vmem>>, vector<1x8x64xf32>
    %38 = vector.shape_cast %37 : vector<1x8x64xf32> to vector<8x64xf32>
    %39 = arith.index_cast %c1_i32 : i32 to index
    %c0_18 = arith.constant 0 : index
    %c0_19 = arith.constant 0 : index
    %40 = vector.load %arg2[%39, %c0_18, %c0_19] : memref<8x8x32xf32, #tpu.memory_space<vmem>>, vector<1x8x32xf32>
    %41 = vector.shape_cast %40 : vector<1x8x32xf32> to vector<8x32xf32>
    %42 = arith.truncf %31 : vector<8x32xf32> to vector<8x32xbf16>
    %cst_20 = arith.constant dense<0.000000e+00> : vector<8x64xf32>
    %43 = tpu.matmul %42, %3, %cst_20 {dimension_numbers = #tpu.dot_dimension_numbers<[1], [0], [0], [1], [0, 0, 1, 1], [], []>} : vector<8x32xbf16>, vector<32x64xbf16>, vector<8x64xf32> -> vector<8x64xf32>
    %44 = arith.addf %38, %43 : vector<8x64xf32>
    %45 = arith.negf %44 : vector<8x64xf32>
    %46 = math.exp %45 : vector<8x64xf32>
    %cst_21 = arith.constant 1.000000e+00 : f32
    %47 = vector.broadcast %cst_21 : f32 to vector<8x64xf32>
    %48 = arith.addf %47, %46 : vector<8x64xf32>
    %49 = arith.divf %47, %48 : vector<8x64xf32>
    %50 = vector.extract_strided_slice %49 {offsets = [0, 0], sizes = [8, 32], strides = [1, 1]} : vector<8x64xf32> to vector<8x32xf32>
    %51 = vector.extract_strided_slice %49 {offsets = [0, 32], sizes = [8, 32], strides = [1, 1]} : vector<8x64xf32> to vector<8x32xf32>
    %52 = arith.mulf %51, %31 : vector<8x32xf32>
    %53 = arith.truncf %52 : vector<8x32xf32> to vector<8x32xbf16>
    %cst_22 = arith.constant dense<0.000000e+00> : vector<8x32xf32>
    %54 = tpu.matmul %53, %4, %cst_22 {dimension_numbers = #tpu.dot_dimension_numbers<[1], [0], [0], [1], [0, 0, 1, 1], [], []>} : vector<8x32xbf16>, vector<32x32xbf16>, vector<8x32xf32> -> vector<8x32xf32>
    %55 = arith.addf %41, %54 : vector<8x32xf32>
    %56 = math.tanh %55 : vector<8x32xf32>
    %57 = arith.mulf %50, %31 : vector<8x32xf32>
    %cst_23 = arith.constant 1.000000e+00 : f32
    %58 = vector.broadcast %cst_23 : f32 to vector<8x32xf32>
    %59 = arith.subf %58, %50 : vector<8x32xf32>
    %60 = arith.mulf %59, %56 : vector<8x32xf32>
    %61 = arith.addf %57, %60 : vector<8x32xf32>
    %62 = arith.index_cast %c1_i32 : i32 to index
    %c0_24 = arith.constant 0 : index
    %c0_25 = arith.constant 0 : index
    %63 = vector.load %arg6[%62, %c0_24, %c0_25] : memref<8x8x32xf32, #tpu.memory_space<vmem>>, vector<1x8x32xf32>
    %64 = vector.shape_cast %63 : vector<1x8x32xf32> to vector<8x32xf32>
    %65 = vector.shape_cast %61 : vector<8x32xf32> to vector<1x8x32xf32>
    tpu.vector_store %arg6[%62, %c0_24, %c0_25], %65 {strides = array<i32>} : memref<8x8x32xf32, #tpu.memory_space<vmem>>, vector<1x8x32xf32>,
    %c2_i32 = arith.constant 2 : i32
    %66 = arith.index_cast %c2_i32 : i32 to index
    %c0_26 = arith.constant 0 : index
    %c0_27 = arith.constant 0 : index
    %67 = vector.load %arg1[%66, %c0_26, %c0_27] : memref<8x8x64xf32, #tpu.memory_space<vmem>>, vector<1x8x64xf32>
    %68 = vector.shape_cast %67 : vector<1x8x64xf32> to vector<8x64xf32>
    %69 = arith.index_cast %c2_i32 : i32 to index
    %c0_28 = arith.constant 0 : index
    %c0_29 = arith.constant 0 : index
    %70 = vector.load %arg2[%69, %c0_28, %c0_29] : memref<8x8x32xf32, #tpu.memory_space<vmem>>, vector<1x8x32xf32>
    %71 = vector.shape_cast %70 : vector<1x8x32xf32> to vector<8x32xf32>
    %72 = arith.truncf %61 : vector<8x32xf32> to vector<8x32xbf16>
    %cst_30 = arith.constant dense<0.000000e+00> : vector<8x64xf32>
    %73 = tpu.matmul %72, %3, %cst_30 {dimension_numbers = #tpu.dot_dimension_numbers<[1], [0], [0], [1], [0, 0, 1, 1], [], []>} : vector<8x32xbf16>, vector<32x64xbf16>, vector<8x64xf32> -> vector<8x64xf32>
    %74 = arith.addf %68, %73 : vector<8x64xf32>
    %75 = arith.negf %74 : vector<8x64xf32>
    %76 = math.exp %75 : vector<8x64xf32>
    %cst_31 = arith.constant 1.000000e+00 : f32
    %77 = vector.broadcast %cst_31 : f32 to vector<8x64xf32>
    %78 = arith.addf %77, %76 : vector<8x64xf32>
    %79 = arith.divf %77, %78 : vector<8x64xf32>
    %80 = vector.extract_strided_slice %79 {offsets = [0, 0], sizes = [8, 32], strides = [1, 1]} : vector<8x64xf32> to vector<8x32xf32>
    %81 = vector.extract_strided_slice %79 {offsets = [0, 32], sizes = [8, 32], strides = [1, 1]} : vector<8x64xf32> to vector<8x32xf32>
    %82 = arith.mulf %81, %61 : vector<8x32xf32>
    %83 = arith.truncf %82 : vector<8x32xf32> to vector<8x32xbf16>
    %cst_32 = arith.constant dense<0.000000e+00> : vector<8x32xf32>
    %84 = tpu.matmul %83, %4, %cst_32 {dimension_numbers = #tpu.dot_dimension_numbers<[1], [0], [0], [1], [0, 0, 1, 1], [], []>} : vector<8x32xbf16>, vector<32x32xbf16>, vector<8x32xf32> -> vector<8x32xf32>
    %85 = arith.addf %71, %84 : vector<8x32xf32>
    %86 = math.tanh %85 : vector<8x32xf32>
    %87 = arith.mulf %80, %61 : vector<8x32xf32>
    %cst_33 = arith.constant 1.000000e+00 : f32
    %88 = vector.broadcast %cst_33 : f32 to vector<8x32xf32>
    %89 = arith.subf %88, %80 : vector<8x32xf32>
    %90 = arith.mulf %89, %86 : vector<8x32xf32>
    %91 = arith.addf %87, %90 : vector<8x32xf32>
    %92 = arith.index_cast %c2_i32 : i32 to index
    %c0_34 = arith.constant 0 : index
    %c0_35 = arith.constant 0 : index
    %93 = vector.load %arg6[%92, %c0_34, %c0_35] : memref<8x8x32xf32, #tpu.memory_space<vmem>>, vector<1x8x32xf32>
    %94 = vector.shape_cast %93 : vector<1x8x32xf32> to vector<8x32xf32>
    %95 = vector.shape_cast %91 : vector<8x32xf32> to vector<1x8x32xf32>
    tpu.vector_store %arg6[%92, %c0_34, %c0_35], %95 {strides = array<i32>} : memref<8x8x32xf32, #tpu.memory_space<vmem>>, vector<1x8x32xf32>,
    %c3_i32 = arith.constant 3 : i32
    %96 = arith.index_cast %c3_i32 : i32 to index
    %c0_36 = arith.constant 0 : index
    %c0_37 = arith.constant 0 : index
    %97 = vector.load %arg1[%96, %c0_36, %c0_37] : memref<8x8x64xf32, #tpu.memory_space<vmem>>, vector<1x8x64xf32>
    %98 = vector.shape_cast %97 : vector<1x8x64xf32> to vector<8x64xf32>
    %99 = arith.index_cast %c3_i32 : i32 to index
    %c0_38 = arith.constant 0 : index
    %c0_39 = arith.constant 0 : index
    %100 = vector.load %arg2[%99, %c0_38, %c0_39] : memref<8x8x32xf32, #tpu.memory_space<vmem>>, vector<1x8x32xf32>
    %101 = vector.shape_cast %100 : vector<1x8x32xf32> to vector<8x32xf32>
    %102 = arith.truncf %91 : vector<8x32xf32> to vector<8x32xbf16>
    %cst_40 = arith.constant dense<0.000000e+00> : vector<8x64xf32>
    %103 = tpu.matmul %102, %3, %cst_40 {dimension_numbers = #tpu.dot_dimension_numbers<[1], [0], [0], [1], [0, 0, 1, 1], [], []>} : vector<8x32xbf16>, vector<32x64xbf16>, vector<8x64xf32> -> vector<8x64xf32>
    %104 = arith.addf %98, %103 : vector<8x64xf32>
    %105 = arith.negf %104 : vector<8x64xf32>
    %106 = math.exp %105 : vector<8x64xf32>
    %cst_41 = arith.constant 1.000000e+00 : f32
    %107 = vector.broadcast %cst_41 : f32 to vector<8x64xf32>
    %108 = arith.addf %107, %106 : vector<8x64xf32>
    %109 = arith.divf %107, %108 : vector<8x64xf32>
    %110 = vector.extract_strided_slice %109 {offsets = [0, 0], sizes = [8, 32], strides = [1, 1]} : vector<8x64xf32> to vector<8x32xf32>
    %111 = vector.extract_strided_slice %109 {offsets = [0, 32], sizes = [8, 32], strides = [1, 1]} : vector<8x64xf32> to vector<8x32xf32>
    %112 = arith.mulf %111, %91 : vector<8x32xf32>
    %113 = arith.truncf %112 : vector<8x32xf32> to vector<8x32xbf16>
    %cst_42 = arith.constant dense<0.000000e+00> : vector<8x32xf32>
    %114 = tpu.matmul %113, %4, %cst_42 {dimension_numbers = #tpu.dot_dimension_numbers<[1], [0], [0], [1], [0, 0, 1, 1], [], []>} : vector<8x32xbf16>, vector<32x32xbf16>, vector<8x32xf32> -> vector<8x32xf32>
    %115 = arith.addf %101, %114 : vector<8x32xf32>
    %116 = math.tanh %115 : vector<8x32xf32>
    %117 = arith.mulf %110, %91 : vector<8x32xf32>
    %cst_43 = arith.constant 1.000000e+00 : f32
    %118 = vector.broadcast %cst_43 : f32 to vector<8x32xf32>
    %119 = arith.subf %118, %110 : vector<8x32xf32>
    %120 = arith.mulf %119, %116 : vector<8x32xf32>
    %121 = arith.addf %117, %120 : vector<8x32xf32>
    %122 = arith.index_cast %c3_i32 : i32 to index
    %c0_44 = arith.constant 0 : index
    %c0_45 = arith.constant 0 : index
    %123 = vector.load %arg6[%122, %c0_44, %c0_45] : memref<8x8x32xf32, #tpu.memory_space<vmem>>, vector<1x8x32xf32>
    %124 = vector.shape_cast %123 : vector<1x8x32xf32> to vector<8x32xf32>
    %125 = vector.shape_cast %121 : vector<8x32xf32> to vector<1x8x32xf32>
    tpu.vector_store %arg6[%122, %c0_44, %c0_45], %125 {strides = array<i32>} : memref<8x8x32xf32, #tpu.memory_space<vmem>>, vector<1x8x32xf32>,
    %c4_i32 = arith.constant 4 : i32
    %126 = arith.index_cast %c4_i32 : i32 to index
    %c0_46 = arith.constant 0 : index
    %c0_47 = arith.constant 0 : index
    %127 = vector.load %arg1[%126, %c0_46, %c0_47] : memref<8x8x64xf32, #tpu.memory_space<vmem>>, vector<1x8x64xf32>
    %128 = vector.shape_cast %127 : vector<1x8x64xf32> to vector<8x64xf32>
    %129 = arith.index_cast %c4_i32 : i32 to index
    %c0_48 = arith.constant 0 : index
    %c0_49 = arith.constant 0 : index
    %130 = vector.load %arg2[%129, %c0_48, %c0_49] : memref<8x8x32xf32, #tpu.memory_space<vmem>>, vector<1x8x32xf32>
    %131 = vector.shape_cast %130 : vector<1x8x32xf32> to vector<8x32xf32>
    %132 = arith.truncf %121 : vector<8x32xf32> to vector<8x32xbf16>
    %cst_50 = arith.constant dense<0.000000e+00> : vector<8x64xf32>
    %133 = tpu.matmul %132, %3, %cst_50 {dimension_numbers = #tpu.dot_dimension_numbers<[1], [0], [0], [1], [0, 0, 1, 1], [], []>} : vector<8x32xbf16>, vector<32x64xbf16>, vector<8x64xf32> -> vector<8x64xf32>
    %134 = arith.addf %128, %133 : vector<8x64xf32>
    %135 = arith.negf %134 : vector<8x64xf32>
    %136 = math.exp %135 : vector<8x64xf32>
    %cst_51 = arith.constant 1.000000e+00 : f32
    %137 = vector.broadcast %cst_51 : f32 to vector<8x64xf32>
    %138 = arith.addf %137, %136 : vector<8x64xf32>
    %139 = arith.divf %137, %138 : vector<8x64xf32>
    %140 = vector.extract_strided_slice %139 {offsets = [0, 0], sizes = [8, 32], strides = [1, 1]} : vector<8x64xf32> to vector<8x32xf32>
    %141 = vector.extract_strided_slice %139 {offsets = [0, 32], sizes = [8, 32], strides = [1, 1]} : vector<8x64xf32> to vector<8x32xf32>
    %142 = arith.mulf %141, %121 : vector<8x32xf32>
    %143 = arith.truncf %142 : vector<8x32xf32> to vector<8x32xbf16>
    %cst_52 = arith.constant dense<0.000000e+00> : vector<8x32xf32>
    %144 = tpu.matmul %143, %4, %cst_52 {dimension_numbers = #tpu.dot_dimension_numbers<[1], [0], [0], [1], [0, 0, 1, 1], [], []>} : vector<8x32xbf16>, vector<32x32xbf16>, vector<8x32xf32> -> vector<8x32xf32>
    %145 = arith.addf %131, %144 : vector<8x32xf32>
    %146 = math.tanh %145 : vector<8x32xf32>
    %147 = arith.mulf %140, %121 : vector<8x32xf32>
    %cst_53 = arith.constant 1.000000e+00 : f32
    %148 = vector.broadcast %cst_53 : f32 to vector<8x32xf32>
    %149 = arith.subf %148, %140 : vector<8x32xf32>
    %150 = arith.mulf %149, %146 : vector<8x32xf32>
    %151 = arith.addf %147, %150 : vector<8x32xf32>
    %152 = arith.index_cast %c4_i32 : i32 to index
    %c0_54 = arith.constant 0 : index
    %c0_55 = arith.constant 0 : index
    %153 = vector.load %arg6[%152, %c0_54, %c0_55] : memref<8x8x32xf32, #tpu.memory_space<vmem>>, vector<1x8x32xf32>
    %154 = vector.shape_cast %153 : vector<1x8x32xf32> to vector<8x32xf32>
    %155 = vector.shape_cast %151 : vector<8x32xf32> to vector<1x8x32xf32>
    tpu.vector_store %arg6[%152, %c0_54, %c0_55], %155 {strides = array<i32>} : memref<8x8x32xf32, #tpu.memory_space<vmem>>, vector<1x8x32xf32>,
    %c5_i32 = arith.constant 5 : i32
    %156 = arith.index_cast %c5_i32 : i32 to index
    %c0_56 = arith.constant 0 : index
    %c0_57 = arith.constant 0 : index
    %157 = vector.load %arg1[%156, %c0_56, %c0_57] : memref<8x8x64xf32, #tpu.memory_space<vmem>>, vector<1x8x64xf32>
    %158 = vector.shape_cast %157 : vector<1x8x64xf32> to vector<8x64xf32>
    %159 = arith.index_cast %c5_i32 : i32 to index
    %c0_58 = arith.constant 0 : index
    %c0_59 = arith.constant 0 : index
    %160 = vector.load %arg2[%159, %c0_58, %c0_59] : memref<8x8x32xf32, #tpu.memory_space<vmem>>, vector<1x8x32xf32>
    %161 = vector.shape_cast %160 : vector<1x8x32xf32> to vector<8x32xf32>
    %162 = arith.truncf %151 : vector<8x32xf32> to vector<8x32xbf16>
    %cst_60 = arith.constant dense<0.000000e+00> : vector<8x64xf32>
    %163 = tpu.matmul %162, %3, %cst_60 {dimension_numbers = #tpu.dot_dimension_numbers<[1], [0], [0], [1], [0, 0, 1, 1], [], []>} : vector<8x32xbf16>, vector<32x64xbf16>, vector<8x64xf32> -> vector<8x64xf32>
    %164 = arith.addf %158, %163 : vector<8x64xf32>
    %165 = arith.negf %164 : vector<8x64xf32>
    %166 = math.exp %165 : vector<8x64xf32>
    %cst_61 = arith.constant 1.000000e+00 : f32
    %167 = vector.broadcast %cst_61 : f32 to vector<8x64xf32>
    %168 = arith.addf %167, %166 : vector<8x64xf32>
    %169 = arith.divf %167, %168 : vector<8x64xf32>
    %170 = vector.extract_strided_slice %169 {offsets = [0, 0], sizes = [8, 32], strides = [1, 1]} : vector<8x64xf32> to vector<8x32xf32>
    %171 = vector.extract_strided_slice %169 {offsets = [0, 32], sizes = [8, 32], strides = [1, 1]} : vector<8x64xf32> to vector<8x32xf32>
    %172 = arith.mulf %171, %151 : vector<8x32xf32>
    %173 = arith.truncf %172 : vector<8x32xf32> to vector<8x32xbf16>
    %cst_62 = arith.constant dense<0.000000e+00> : vector<8x32xf32>
    %174 = tpu.matmul %173, %4, %cst_62 {dimension_numbers = #tpu.dot_dimension_numbers<[1], [0], [0], [1], [0, 0, 1, 1], [], []>} : vector<8x32xbf16>, vector<32x32xbf16>, vector<8x32xf32> -> vector<8x32xf32>
    %175 = arith.addf %161, %174 : vector<8x32xf32>
    %176 = math.tanh %175 : vector<8x32xf32>
    %177 = arith.mulf %170, %151 : vector<8x32xf32>
    %cst_63 = arith.constant 1.000000e+00 : f32
    %178 = vector.broadcast %cst_63 : f32 to vector<8x32xf32>
    %179 = arith.subf %178, %170 : vector<8x32xf32>
    %180 = arith.mulf %179, %176 : vector<8x32xf32>
    %181 = arith.addf %177, %180 : vector<8x32xf32>
    %182 = arith.index_cast %c5_i32 : i32 to index
    %c0_64 = arith.constant 0 : index
    %c0_65 = arith.constant 0 : index
    %183 = vector.load %arg6[%182, %c0_64, %c0_65] : memref<8x8x32xf32, #tpu.memory_space<vmem>>, vector<1x8x32xf32>
    %184 = vector.shape_cast %183 : vector<1x8x32xf32> to vector<8x32xf32>
    %185 = vector.shape_cast %181 : vector<8x32xf32> to vector<1x8x32xf32>
    tpu.vector_store %arg6[%182, %c0_64, %c0_65], %185 {strides = array<i32>} : memref<8x8x32xf32, #tpu.memory_space<vmem>>, vector<1x8x32xf32>,
    %c6_i32 = arith.constant 6 : i32
    %186 = arith.index_cast %c6_i32 : i32 to index
    %c0_66 = arith.constant 0 : index
    %c0_67 = arith.constant 0 : index
    %187 = vector.load %arg1[%186, %c0_66, %c0_67] : memref<8x8x64xf32, #tpu.memory_space<vmem>>, vector<1x8x64xf32>
    %188 = vector.shape_cast %187 : vector<1x8x64xf32> to vector<8x64xf32>
    %189 = arith.index_cast %c6_i32 : i32 to index
    %c0_68 = arith.constant 0 : index
    %c0_69 = arith.constant 0 : index
    %190 = vector.load %arg2[%189, %c0_68, %c0_69] : memref<8x8x32xf32, #tpu.memory_space<vmem>>, vector<1x8x32xf32>
    %191 = vector.shape_cast %190 : vector<1x8x32xf32> to vector<8x32xf32>
    %192 = arith.truncf %181 : vector<8x32xf32> to vector<8x32xbf16>
    %cst_70 = arith.constant dense<0.000000e+00> : vector<8x64xf32>
    %193 = tpu.matmul %192, %3, %cst_70 {dimension_numbers = #tpu.dot_dimension_numbers<[1], [0], [0], [1], [0, 0, 1, 1], [], []>} : vector<8x32xbf16>, vector<32x64xbf16>, vector<8x64xf32> -> vector<8x64xf32>
    %194 = arith.addf %188, %193 : vector<8x64xf32>
    %195 = arith.negf %194 : vector<8x64xf32>
    %196 = math.exp %195 : vector<8x64xf32>
    %cst_71 = arith.constant 1.000000e+00 : f32
    %197 = vector.broadcast %cst_71 : f32 to vector<8x64xf32>
    %198 = arith.addf %197, %196 : vector<8x64xf32>
    %199 = arith.divf %197, %198 : vector<8x64xf32>
    %200 = vector.extract_strided_slice %199 {offsets = [0, 0], sizes = [8, 32], strides = [1, 1]} : vector<8x64xf32> to vector<8x32xf32>
    %201 = vector.extract_strided_slice %199 {offsets = [0, 32], sizes = [8, 32], strides = [1, 1]} : vector<8x64xf32> to vector<8x32xf32>
    %202 = arith.mulf %201, %181 : vector<8x32xf32>
    %203 = arith.truncf %202 : vector<8x32xf32> to vector<8x32xbf16>
    %cst_72 = arith.constant dense<0.000000e+00> : vector<8x32xf32>
    %204 = tpu.matmul %203, %4, %cst_72 {dimension_numbers = #tpu.dot_dimension_numbers<[1], [0], [0], [1], [0, 0, 1, 1], [], []>} : vector<8x32xbf16>, vector<32x32xbf16>, vector<8x32xf32> -> vector<8x32xf32>
    %205 = arith.addf %191, %204 : vector<8x32xf32>
    %206 = math.tanh %205 : vector<8x32xf32>
    %207 = arith.mulf %200, %181 : vector<8x32xf32>
    %cst_73 = arith.constant 1.000000e+00 : f32
    %208 = vector.broadcast %cst_73 : f32 to vector<8x32xf32>
    %209 = arith.subf %208, %200 : vector<8x32xf32>
    %210 = arith.mulf %209, %206 : vector<8x32xf32>
    %211 = arith.addf %207, %210 : vector<8x32xf32>
    %212 = arith.index_cast %c6_i32 : i32 to index
    %c0_74 = arith.constant 0 : index
    %c0_75 = arith.constant 0 : index
    %213 = vector.load %arg6[%212, %c0_74, %c0_75] : memref<8x8x32xf32, #tpu.memory_space<vmem>>, vector<1x8x32xf32>
    %214 = vector.shape_cast %213 : vector<1x8x32xf32> to vector<8x32xf32>
    %215 = vector.shape_cast %211 : vector<8x32xf32> to vector<1x8x32xf32>
    tpu.vector_store %arg6[%212, %c0_74, %c0_75], %215 {strides = array<i32>} : memref<8x8x32xf32, #tpu.memory_space<vmem>>, vector<1x8x32xf32>,
    %c7_i32 = arith.constant 7 : i32
    %216 = arith.index_cast %c7_i32 : i32 to index
    %c0_76 = arith.constant 0 : index
    %c0_77 = arith.constant 0 : index
    %217 = vector.load %arg1[%216, %c0_76, %c0_77] : memref<8x8x64xf32, #tpu.memory_space<vmem>>, vector<1x8x64xf32>
    %218 = vector.shape_cast %217 : vector<1x8x64xf32> to vector<8x64xf32>
    %219 = arith.index_cast %c7_i32 : i32 to index
    %c0_78 = arith.constant 0 : index
    %c0_79 = arith.constant 0 : index
    %220 = vector.load %arg2[%219, %c0_78, %c0_79] : memref<8x8x32xf32, #tpu.memory_space<vmem>>, vector<1x8x32xf32>
    %221 = vector.shape_cast %220 : vector<1x8x32xf32> to vector<8x32xf32>
    %222 = arith.truncf %211 : vector<8x32xf32> to vector<8x32xbf16>
    %cst_80 = arith.constant dense<0.000000e+00> : vector<8x64xf32>
    %223 = tpu.matmul %222, %3, %cst_80 {dimension_numbers = #tpu.dot_dimension_numbers<[1], [0], [0], [1], [0, 0, 1, 1], [], []>} : vector<8x32xbf16>, vector<32x64xbf16>, vector<8x64xf32> -> vector<8x64xf32>
    %224 = arith.addf %218, %223 : vector<8x64xf32>
    %225 = arith.negf %224 : vector<8x64xf32>
    %226 = math.exp %225 : vector<8x64xf32>
    %cst_81 = arith.constant 1.000000e+00 : f32
    %227 = vector.broadcast %cst_81 : f32 to vector<8x64xf32>
    %228 = arith.addf %227, %226 : vector<8x64xf32>
    %229 = arith.divf %227, %228 : vector<8x64xf32>
    %230 = vector.extract_strided_slice %229 {offsets = [0, 0], sizes = [8, 32], strides = [1, 1]} : vector<8x64xf32> to vector<8x32xf32>
    %231 = vector.extract_strided_slice %229 {offsets = [0, 32], sizes = [8, 32], strides = [1, 1]} : vector<8x64xf32> to vector<8x32xf32>
    %232 = arith.mulf %231, %211 : vector<8x32xf32>
    %233 = arith.truncf %232 : vector<8x32xf32> to vector<8x32xbf16>
    %cst_82 = arith.constant dense<0.000000e+00> : vector<8x32xf32>
    %234 = tpu.matmul %233, %4, %cst_82 {dimension_numbers = #tpu.dot_dimension_numbers<[1], [0], [0], [1], [0, 0, 1, 1], [], []>} : vector<8x32xbf16>, vector<32x32xbf16>, vector<8x32xf32> -> vector<8x32xf32>
    %235 = arith.addf %221, %234 : vector<8x32xf32>
    %236 = math.tanh %235 : vector<8x32xf32>
    %237 = arith.mulf %230, %211 : vector<8x32xf32>
    %cst_83 = arith.constant 1.000000e+00 : f32
    %238 = vector.broadcast %cst_83 : f32 to vector<8x32xf32>
    %239 = arith.subf %238, %230 : vector<8x32xf32>
    %240 = arith.mulf %239, %236 : vector<8x32xf32>
    %241 = arith.addf %237, %240 : vector<8x32xf32>
    %242 = arith.index_cast %c7_i32 : i32 to index
    %c0_84 = arith.constant 0 : index
    %c0_85 = arith.constant 0 : index
    %243 = vector.load %arg6[%242, %c0_84, %c0_85] : memref<8x8x32xf32, #tpu.memory_space<vmem>>, vector<1x8x32xf32>
    %244 = vector.shape_cast %243 : vector<1x8x32xf32> to vector<8x32xf32>
    %245 = vector.shape_cast %241 : vector<8x32xf32> to vector<1x8x32xf32>
    tpu.vector_store %arg6[%242, %c0_84, %c0_85], %245 {strides = array<i32>} : memref<8x8x32xf32, #tpu.memory_space<vmem>>, vector<1x8x32xf32>,
    %c8_i32 = arith.constant 8 : i32
    %c0_86 = arith.constant 0 : index
    %c0_87 = arith.constant 0 : index
    %246 = vector.load %arg8[%c0_86, %c0_87] : memref<8x32xf32, #tpu.memory_space<vmem>>, vector<8x32xf32>
    tpu.vector_store %arg8[%c0_86, %c0_87], %241 {strides = array<i32>} : memref<8x32xf32, #tpu.memory_space<vmem>>, vector<8x32xf32>,
    %c0_i32_88 = arith.constant 0 : i32
    %247 = arith.cmpi eq, %arg0, %c0_i32_88 : i32
    %248 = arith.extui %247 : i1 to i32
    %c0_i32_89 = arith.constant 0 : i32
    %249 = arith.cmpi ne, %248, %c0_i32_89 : i32
    scf.if %249 {
      %c0_90 = arith.constant 0 : index
      %c0_91 = arith.constant 0 : index
      %250 = vector.load %arg7[%c0_90, %c0_91] : memref<8x32xf32, #tpu.memory_space<vmem>>, vector<8x32xf32>
      tpu.vector_store %arg7[%c0_90, %c0_91], %241 {strides = array<i32>} : memref<8x32xf32, #tpu.memory_space<vmem>>, vector<8x32xf32>,
    } else {
    }
    return
  }
  func.func @transform_0(%arg0: i32) -> (i32, i32, i32) {
    %c0_i32 = arith.constant 0 : i32
    %c0_i32_0 = arith.constant 0 : i32
    %c0_i32_1 = arith.constant 0 : i32
    return %arg0, %c0_i32, %c0_i32_0 : i32, i32, i32
  }
  func.func @transform_1(%arg0: i32) -> (i32, i32, i32) {
    %c0_i32 = arith.constant 0 : i32
    %c0_i32_0 = arith.constant 0 : i32
    %c0_i32_1 = arith.constant 0 : i32
    return %arg0, %c0_i32, %c0_i32_0 : i32, i32, i32
  }
  func.func @transform_2(%arg0: i32) -> (i32, i32) {
    %c0_i32 = arith.constant 0 : i32
    %c0_i32_0 = arith.constant 0 : i32
    %c0_i32_1 = arith.constant 0 : i32
    return %c0_i32, %c0_i32_0 : i32, i32
  }
  func.func @transform_3(%arg0: i32) -> (i32, i32) {
    %c0_i32 = arith.constant 0 : i32
    %c0_i32_0 = arith.constant 0 : i32
    %c0_i32_1 = arith.constant 0 : i32
    return %c0_i32, %c0_i32_0 : i32, i32
  }
  func.func @transform_4(%arg0: i32) -> (i32, i32) {
    %c0_i32 = arith.constant 0 : i32
    %c0_i32_0 = arith.constant 0 : i32
    %c0_i32_1 = arith.constant 0 : i32
    return %c0_i32, %c0_i32_0 : i32, i32
  }
  func.func @transform_5(%arg0: i32) -> (i32, i32, i32) {
    %c0_i32 = arith.constant 0 : i32
    %c0_i32_0 = arith.constant 0 : i32
    %c0_i32_1 = arith.constant 0 : i32
    return %arg0, %c0_i32, %c0_i32_0 : i32, i32, i32
  }
  func.func @transform_6(%arg0: i32) -> (i32, i32) {
    %c0_i32 = arith.constant 0 : i32
    %c0_i32_0 = arith.constant 0 : i32
    %c0_i32_1 = arith.constant 0 : i32
    return %c0_i32, %c0_i32_0 : i32, i32
  }
}

module attributes {stable_mosaic.version = 11 : i64} {
  func.func @_gru_upper_kernel(%arg0: i32, %arg1: i32, %arg2: memref<1x8x8x64xf32, #tpu.memory_space<vmem>>, %arg3: memref<1x8x8x32xf32, #tpu.memory_space<vmem>>, %arg4: memref<1x8x32xf32, #tpu.memory_space<vmem>>, %arg5: memref<1x32x64xbf16, #tpu.memory_space<vmem>>, %arg6: memref<1x32x32xbf16, #tpu.memory_space<vmem>>, %arg7: memref<1x8x32xf32, #tpu.memory_space<vmem>>, %arg8: memref<8x32xf32, #tpu.memory_space<vmem>>) attributes {dimension_semantics = [#tpu.dimension_semantics<parallel>, #tpu.dimension_semantics<arbitrary>], iteration_bounds = array<i64: 2, 1>, scalar_prefetch = 0 : i64, scratch_operands = 1 : i64, tpu.core_type = #tpu.core_type<tc>, window_params = [{transform_indices = @transform_0, window_bounds = array<i64: 1, 8, 8, 64>}, {transform_indices = @transform_1, window_bounds = array<i64: 1, 8, 8, 32>}, {transform_indices = @transform_2, window_bounds = array<i64: 1, 8, 32>}, {transform_indices = @transform_3, window_bounds = array<i64: 1, 32, 64>}, {transform_indices = @transform_4, window_bounds = array<i64: 1, 32, 32>}, {transform_indices = @transform_5, window_bounds = array<i64: 1, 8, 32>}]} {
    %c0_i32 = arith.constant 0 : i32
    %0 = arith.cmpi eq, %arg1, %c0_i32 : i32
    %1 = arith.extui %0 : i1 to i32
    %c0_i32_0 = arith.constant 0 : i32
    %2 = arith.cmpi ne, %1, %c0_i32_0 : i32
    scf.if %2 {
      %c0_126 = arith.constant 0 : index
      %c0_127 = arith.constant 0 : index
      %c0_128 = arith.constant 0 : index
      %252 = vector.load %arg4[%c0_126, %c0_127, %c0_128] : memref<1x8x32xf32, #tpu.memory_space<vmem>>, vector<1x8x32xf32>
      %253 = vector.shape_cast %252 : vector<1x8x32xf32> to vector<8x32xf32>
      %c0_129 = arith.constant 0 : index
      %c0_130 = arith.constant 0 : index
      %254 = vector.load %arg8[%c0_129, %c0_130] : memref<8x32xf32, #tpu.memory_space<vmem>>, vector<8x32xf32>
      tpu.vector_store %arg8[%c0_129, %c0_130], %253 {strides = array<i32>} : memref<8x32xf32, #tpu.memory_space<vmem>>, vector<8x32xf32>,
    } else {
    }
    %c0 = arith.constant 0 : index
    %c0_1 = arith.constant 0 : index
    %c0_2 = arith.constant 0 : index
    %3 = vector.load %arg5[%c0, %c0_1, %c0_2] : memref<1x32x64xbf16, #tpu.memory_space<vmem>>, vector<1x32x64xbf16>
    %4 = vector.shape_cast %3 : vector<1x32x64xbf16> to vector<32x64xbf16>
    %c0_3 = arith.constant 0 : index
    %c0_4 = arith.constant 0 : index
    %c0_5 = arith.constant 0 : index
    %5 = vector.load %arg6[%c0_3, %c0_4, %c0_5] : memref<1x32x32xbf16, #tpu.memory_space<vmem>>, vector<1x32x32xbf16>
    %6 = vector.shape_cast %5 : vector<1x32x32xbf16> to vector<32x32xbf16>
    %c0_6 = arith.constant 0 : index
    %c0_7 = arith.constant 0 : index
    %7 = vector.load %arg8[%c0_6, %c0_7] : memref<8x32xf32, #tpu.memory_space<vmem>>, vector<8x32xf32>
    %c0_i32_8 = arith.constant 0 : i32
    %c0_i32_9 = arith.constant 0 : i32
    %c0_i32_10 = arith.constant 0 : i32
    %c0_i32_11 = arith.constant 0 : i32
    %c0_i32_12 = arith.constant 0 : i32
    %c0_i32_13 = arith.constant 0 : i32
    %8 = tpu.memref_slice %arg2[%c0_i32_8, %c0_i32_11, %c0_i32_12, %c0_i32_13] : memref<1x8x8x64xf32, #tpu.memory_space<vmem>> -> memref<1x8x8x64xf32, #tpu.memory_space<vmem>>
    %9 = tpu.memref_squeeze %8 : memref<1x8x8x64xf32, #tpu.memory_space<vmem>> -> memref<8x8x64xf32, #tpu.memory_space<vmem>>
    %10 = arith.index_cast %c0_i32_10 : i32 to index
    %c0_14 = arith.constant 0 : index
    %c0_15 = arith.constant 0 : index
    %11 = vector.load %9[%10, %c0_14, %c0_15] : memref<8x8x64xf32, #tpu.memory_space<vmem>>, vector<1x8x64xf32>
    %12 = vector.shape_cast %11 : vector<1x8x64xf32> to vector<8x64xf32>
    %c0_i32_16 = arith.constant 0 : i32
    %c0_i32_17 = arith.constant 0 : i32
    %c0_i32_18 = arith.constant 0 : i32
    %13 = tpu.memref_slice %arg3[%c0_i32_9, %c0_i32_16, %c0_i32_17, %c0_i32_18] : memref<1x8x8x32xf32, #tpu.memory_space<vmem>> -> memref<1x8x8x32xf32, #tpu.memory_space<vmem>>
    %14 = tpu.memref_squeeze %13 : memref<1x8x8x32xf32, #tpu.memory_space<vmem>> -> memref<8x8x32xf32, #tpu.memory_space<vmem>>
    %15 = arith.index_cast %c0_i32_10 : i32 to index
    %c0_19 = arith.constant 0 : index
    %c0_20 = arith.constant 0 : index
    %16 = vector.load %14[%15, %c0_19, %c0_20] : memref<8x8x32xf32, #tpu.memory_space<vmem>>, vector<1x8x32xf32>
    %17 = vector.shape_cast %16 : vector<1x8x32xf32> to vector<8x32xf32>
    %18 = arith.truncf %7 : vector<8x32xf32> to vector<8x32xbf16>
    %cst = arith.constant dense<0.000000e+00> : vector<8x64xf32>
    %19 = tpu.matmul %18, %4, %cst {dimension_numbers = #tpu.dot_dimension_numbers<[1], [0], [0], [1], [0, 0, 1, 1], [], []>} : vector<8x32xbf16>, vector<32x64xbf16>, vector<8x64xf32> -> vector<8x64xf32>
    %20 = arith.addf %12, %19 : vector<8x64xf32>
    %21 = arith.negf %20 : vector<8x64xf32>
    %22 = math.exp %21 : vector<8x64xf32>
    %cst_21 = arith.constant 1.000000e+00 : f32
    %23 = vector.broadcast %cst_21 : f32 to vector<8x64xf32>
    %24 = arith.addf %23, %22 : vector<8x64xf32>
    %25 = arith.divf %23, %24 : vector<8x64xf32>
    %26 = vector.extract_strided_slice %25 {offsets = [0, 0], sizes = [8, 32], strides = [1, 1]} : vector<8x64xf32> to vector<8x32xf32>
    %27 = vector.extract_strided_slice %25 {offsets = [0, 32], sizes = [8, 32], strides = [1, 1]} : vector<8x64xf32> to vector<8x32xf32>
    %28 = arith.mulf %27, %7 : vector<8x32xf32>
    %29 = arith.truncf %28 : vector<8x32xf32> to vector<8x32xbf16>
    %cst_22 = arith.constant dense<0.000000e+00> : vector<8x32xf32>
    %30 = tpu.matmul %29, %6, %cst_22 {dimension_numbers = #tpu.dot_dimension_numbers<[1], [0], [0], [1], [0, 0, 1, 1], [], []>} : vector<8x32xbf16>, vector<32x32xbf16>, vector<8x32xf32> -> vector<8x32xf32>
    %31 = arith.addf %17, %30 : vector<8x32xf32>
    %32 = math.tanh %31 : vector<8x32xf32>
    %33 = arith.mulf %26, %7 : vector<8x32xf32>
    %cst_23 = arith.constant 1.000000e+00 : f32
    %34 = vector.broadcast %cst_23 : f32 to vector<8x32xf32>
    %35 = arith.subf %34, %26 : vector<8x32xf32>
    %36 = arith.mulf %35, %32 : vector<8x32xf32>
    %37 = arith.addf %33, %36 : vector<8x32xf32>
    %c1_i32 = arith.constant 1 : i32
    %c0_i32_24 = arith.constant 0 : i32
    %c0_i32_25 = arith.constant 0 : i32
    %c0_i32_26 = arith.constant 0 : i32
    %38 = tpu.memref_slice %arg2[%c0_i32_8, %c0_i32_24, %c0_i32_25, %c0_i32_26] : memref<1x8x8x64xf32, #tpu.memory_space<vmem>> -> memref<1x8x8x64xf32, #tpu.memory_space<vmem>>
    %39 = tpu.memref_squeeze %38 : memref<1x8x8x64xf32, #tpu.memory_space<vmem>> -> memref<8x8x64xf32, #tpu.memory_space<vmem>>
    %40 = arith.index_cast %c1_i32 : i32 to index
    %c0_27 = arith.constant 0 : index
    %c0_28 = arith.constant 0 : index
    %41 = vector.load %39[%40, %c0_27, %c0_28] : memref<8x8x64xf32, #tpu.memory_space<vmem>>, vector<1x8x64xf32>
    %42 = vector.shape_cast %41 : vector<1x8x64xf32> to vector<8x64xf32>
    %c0_i32_29 = arith.constant 0 : i32
    %c0_i32_30 = arith.constant 0 : i32
    %c0_i32_31 = arith.constant 0 : i32
    %43 = tpu.memref_slice %arg3[%c0_i32_9, %c0_i32_29, %c0_i32_30, %c0_i32_31] : memref<1x8x8x32xf32, #tpu.memory_space<vmem>> -> memref<1x8x8x32xf32, #tpu.memory_space<vmem>>
    %44 = tpu.memref_squeeze %43 : memref<1x8x8x32xf32, #tpu.memory_space<vmem>> -> memref<8x8x32xf32, #tpu.memory_space<vmem>>
    %45 = arith.index_cast %c1_i32 : i32 to index
    %c0_32 = arith.constant 0 : index
    %c0_33 = arith.constant 0 : index
    %46 = vector.load %44[%45, %c0_32, %c0_33] : memref<8x8x32xf32, #tpu.memory_space<vmem>>, vector<1x8x32xf32>
    %47 = vector.shape_cast %46 : vector<1x8x32xf32> to vector<8x32xf32>
    %48 = arith.truncf %37 : vector<8x32xf32> to vector<8x32xbf16>
    %cst_34 = arith.constant dense<0.000000e+00> : vector<8x64xf32>
    %49 = tpu.matmul %48, %4, %cst_34 {dimension_numbers = #tpu.dot_dimension_numbers<[1], [0], [0], [1], [0, 0, 1, 1], [], []>} : vector<8x32xbf16>, vector<32x64xbf16>, vector<8x64xf32> -> vector<8x64xf32>
    %50 = arith.addf %42, %49 : vector<8x64xf32>
    %51 = arith.negf %50 : vector<8x64xf32>
    %52 = math.exp %51 : vector<8x64xf32>
    %cst_35 = arith.constant 1.000000e+00 : f32
    %53 = vector.broadcast %cst_35 : f32 to vector<8x64xf32>
    %54 = arith.addf %53, %52 : vector<8x64xf32>
    %55 = arith.divf %53, %54 : vector<8x64xf32>
    %56 = vector.extract_strided_slice %55 {offsets = [0, 0], sizes = [8, 32], strides = [1, 1]} : vector<8x64xf32> to vector<8x32xf32>
    %57 = vector.extract_strided_slice %55 {offsets = [0, 32], sizes = [8, 32], strides = [1, 1]} : vector<8x64xf32> to vector<8x32xf32>
    %58 = arith.mulf %57, %37 : vector<8x32xf32>
    %59 = arith.truncf %58 : vector<8x32xf32> to vector<8x32xbf16>
    %cst_36 = arith.constant dense<0.000000e+00> : vector<8x32xf32>
    %60 = tpu.matmul %59, %6, %cst_36 {dimension_numbers = #tpu.dot_dimension_numbers<[1], [0], [0], [1], [0, 0, 1, 1], [], []>} : vector<8x32xbf16>, vector<32x32xbf16>, vector<8x32xf32> -> vector<8x32xf32>
    %61 = arith.addf %47, %60 : vector<8x32xf32>
    %62 = math.tanh %61 : vector<8x32xf32>
    %63 = arith.mulf %56, %37 : vector<8x32xf32>
    %cst_37 = arith.constant 1.000000e+00 : f32
    %64 = vector.broadcast %cst_37 : f32 to vector<8x32xf32>
    %65 = arith.subf %64, %56 : vector<8x32xf32>
    %66 = arith.mulf %65, %62 : vector<8x32xf32>
    %67 = arith.addf %63, %66 : vector<8x32xf32>
    %c2_i32 = arith.constant 2 : i32
    %c0_i32_38 = arith.constant 0 : i32
    %c0_i32_39 = arith.constant 0 : i32
    %c0_i32_40 = arith.constant 0 : i32
    %68 = tpu.memref_slice %arg2[%c0_i32_8, %c0_i32_38, %c0_i32_39, %c0_i32_40] : memref<1x8x8x64xf32, #tpu.memory_space<vmem>> -> memref<1x8x8x64xf32, #tpu.memory_space<vmem>>
    %69 = tpu.memref_squeeze %68 : memref<1x8x8x64xf32, #tpu.memory_space<vmem>> -> memref<8x8x64xf32, #tpu.memory_space<vmem>>
    %70 = arith.index_cast %c2_i32 : i32 to index
    %c0_41 = arith.constant 0 : index
    %c0_42 = arith.constant 0 : index
    %71 = vector.load %69[%70, %c0_41, %c0_42] : memref<8x8x64xf32, #tpu.memory_space<vmem>>, vector<1x8x64xf32>
    %72 = vector.shape_cast %71 : vector<1x8x64xf32> to vector<8x64xf32>
    %c0_i32_43 = arith.constant 0 : i32
    %c0_i32_44 = arith.constant 0 : i32
    %c0_i32_45 = arith.constant 0 : i32
    %73 = tpu.memref_slice %arg3[%c0_i32_9, %c0_i32_43, %c0_i32_44, %c0_i32_45] : memref<1x8x8x32xf32, #tpu.memory_space<vmem>> -> memref<1x8x8x32xf32, #tpu.memory_space<vmem>>
    %74 = tpu.memref_squeeze %73 : memref<1x8x8x32xf32, #tpu.memory_space<vmem>> -> memref<8x8x32xf32, #tpu.memory_space<vmem>>
    %75 = arith.index_cast %c2_i32 : i32 to index
    %c0_46 = arith.constant 0 : index
    %c0_47 = arith.constant 0 : index
    %76 = vector.load %74[%75, %c0_46, %c0_47] : memref<8x8x32xf32, #tpu.memory_space<vmem>>, vector<1x8x32xf32>
    %77 = vector.shape_cast %76 : vector<1x8x32xf32> to vector<8x32xf32>
    %78 = arith.truncf %67 : vector<8x32xf32> to vector<8x32xbf16>
    %cst_48 = arith.constant dense<0.000000e+00> : vector<8x64xf32>
    %79 = tpu.matmul %78, %4, %cst_48 {dimension_numbers = #tpu.dot_dimension_numbers<[1], [0], [0], [1], [0, 0, 1, 1], [], []>} : vector<8x32xbf16>, vector<32x64xbf16>, vector<8x64xf32> -> vector<8x64xf32>
    %80 = arith.addf %72, %79 : vector<8x64xf32>
    %81 = arith.negf %80 : vector<8x64xf32>
    %82 = math.exp %81 : vector<8x64xf32>
    %cst_49 = arith.constant 1.000000e+00 : f32
    %83 = vector.broadcast %cst_49 : f32 to vector<8x64xf32>
    %84 = arith.addf %83, %82 : vector<8x64xf32>
    %85 = arith.divf %83, %84 : vector<8x64xf32>
    %86 = vector.extract_strided_slice %85 {offsets = [0, 0], sizes = [8, 32], strides = [1, 1]} : vector<8x64xf32> to vector<8x32xf32>
    %87 = vector.extract_strided_slice %85 {offsets = [0, 32], sizes = [8, 32], strides = [1, 1]} : vector<8x64xf32> to vector<8x32xf32>
    %88 = arith.mulf %87, %67 : vector<8x32xf32>
    %89 = arith.truncf %88 : vector<8x32xf32> to vector<8x32xbf16>
    %cst_50 = arith.constant dense<0.000000e+00> : vector<8x32xf32>
    %90 = tpu.matmul %89, %6, %cst_50 {dimension_numbers = #tpu.dot_dimension_numbers<[1], [0], [0], [1], [0, 0, 1, 1], [], []>} : vector<8x32xbf16>, vector<32x32xbf16>, vector<8x32xf32> -> vector<8x32xf32>
    %91 = arith.addf %77, %90 : vector<8x32xf32>
    %92 = math.tanh %91 : vector<8x32xf32>
    %93 = arith.mulf %86, %67 : vector<8x32xf32>
    %cst_51 = arith.constant 1.000000e+00 : f32
    %94 = vector.broadcast %cst_51 : f32 to vector<8x32xf32>
    %95 = arith.subf %94, %86 : vector<8x32xf32>
    %96 = arith.mulf %95, %92 : vector<8x32xf32>
    %97 = arith.addf %93, %96 : vector<8x32xf32>
    %c3_i32 = arith.constant 3 : i32
    %c0_i32_52 = arith.constant 0 : i32
    %c0_i32_53 = arith.constant 0 : i32
    %c0_i32_54 = arith.constant 0 : i32
    %98 = tpu.memref_slice %arg2[%c0_i32_8, %c0_i32_52, %c0_i32_53, %c0_i32_54] : memref<1x8x8x64xf32, #tpu.memory_space<vmem>> -> memref<1x8x8x64xf32, #tpu.memory_space<vmem>>
    %99 = tpu.memref_squeeze %98 : memref<1x8x8x64xf32, #tpu.memory_space<vmem>> -> memref<8x8x64xf32, #tpu.memory_space<vmem>>
    %100 = arith.index_cast %c3_i32 : i32 to index
    %c0_55 = arith.constant 0 : index
    %c0_56 = arith.constant 0 : index
    %101 = vector.load %99[%100, %c0_55, %c0_56] : memref<8x8x64xf32, #tpu.memory_space<vmem>>, vector<1x8x64xf32>
    %102 = vector.shape_cast %101 : vector<1x8x64xf32> to vector<8x64xf32>
    %c0_i32_57 = arith.constant 0 : i32
    %c0_i32_58 = arith.constant 0 : i32
    %c0_i32_59 = arith.constant 0 : i32
    %103 = tpu.memref_slice %arg3[%c0_i32_9, %c0_i32_57, %c0_i32_58, %c0_i32_59] : memref<1x8x8x32xf32, #tpu.memory_space<vmem>> -> memref<1x8x8x32xf32, #tpu.memory_space<vmem>>
    %104 = tpu.memref_squeeze %103 : memref<1x8x8x32xf32, #tpu.memory_space<vmem>> -> memref<8x8x32xf32, #tpu.memory_space<vmem>>
    %105 = arith.index_cast %c3_i32 : i32 to index
    %c0_60 = arith.constant 0 : index
    %c0_61 = arith.constant 0 : index
    %106 = vector.load %104[%105, %c0_60, %c0_61] : memref<8x8x32xf32, #tpu.memory_space<vmem>>, vector<1x8x32xf32>
    %107 = vector.shape_cast %106 : vector<1x8x32xf32> to vector<8x32xf32>
    %108 = arith.truncf %97 : vector<8x32xf32> to vector<8x32xbf16>
    %cst_62 = arith.constant dense<0.000000e+00> : vector<8x64xf32>
    %109 = tpu.matmul %108, %4, %cst_62 {dimension_numbers = #tpu.dot_dimension_numbers<[1], [0], [0], [1], [0, 0, 1, 1], [], []>} : vector<8x32xbf16>, vector<32x64xbf16>, vector<8x64xf32> -> vector<8x64xf32>
    %110 = arith.addf %102, %109 : vector<8x64xf32>
    %111 = arith.negf %110 : vector<8x64xf32>
    %112 = math.exp %111 : vector<8x64xf32>
    %cst_63 = arith.constant 1.000000e+00 : f32
    %113 = vector.broadcast %cst_63 : f32 to vector<8x64xf32>
    %114 = arith.addf %113, %112 : vector<8x64xf32>
    %115 = arith.divf %113, %114 : vector<8x64xf32>
    %116 = vector.extract_strided_slice %115 {offsets = [0, 0], sizes = [8, 32], strides = [1, 1]} : vector<8x64xf32> to vector<8x32xf32>
    %117 = vector.extract_strided_slice %115 {offsets = [0, 32], sizes = [8, 32], strides = [1, 1]} : vector<8x64xf32> to vector<8x32xf32>
    %118 = arith.mulf %117, %97 : vector<8x32xf32>
    %119 = arith.truncf %118 : vector<8x32xf32> to vector<8x32xbf16>
    %cst_64 = arith.constant dense<0.000000e+00> : vector<8x32xf32>
    %120 = tpu.matmul %119, %6, %cst_64 {dimension_numbers = #tpu.dot_dimension_numbers<[1], [0], [0], [1], [0, 0, 1, 1], [], []>} : vector<8x32xbf16>, vector<32x32xbf16>, vector<8x32xf32> -> vector<8x32xf32>
    %121 = arith.addf %107, %120 : vector<8x32xf32>
    %122 = math.tanh %121 : vector<8x32xf32>
    %123 = arith.mulf %116, %97 : vector<8x32xf32>
    %cst_65 = arith.constant 1.000000e+00 : f32
    %124 = vector.broadcast %cst_65 : f32 to vector<8x32xf32>
    %125 = arith.subf %124, %116 : vector<8x32xf32>
    %126 = arith.mulf %125, %122 : vector<8x32xf32>
    %127 = arith.addf %123, %126 : vector<8x32xf32>
    %c4_i32 = arith.constant 4 : i32
    %c0_i32_66 = arith.constant 0 : i32
    %c0_i32_67 = arith.constant 0 : i32
    %c0_i32_68 = arith.constant 0 : i32
    %128 = tpu.memref_slice %arg2[%c0_i32_8, %c0_i32_66, %c0_i32_67, %c0_i32_68] : memref<1x8x8x64xf32, #tpu.memory_space<vmem>> -> memref<1x8x8x64xf32, #tpu.memory_space<vmem>>
    %129 = tpu.memref_squeeze %128 : memref<1x8x8x64xf32, #tpu.memory_space<vmem>> -> memref<8x8x64xf32, #tpu.memory_space<vmem>>
    %130 = arith.index_cast %c4_i32 : i32 to index
    %c0_69 = arith.constant 0 : index
    %c0_70 = arith.constant 0 : index
    %131 = vector.load %129[%130, %c0_69, %c0_70] : memref<8x8x64xf32, #tpu.memory_space<vmem>>, vector<1x8x64xf32>
    %132 = vector.shape_cast %131 : vector<1x8x64xf32> to vector<8x64xf32>
    %c0_i32_71 = arith.constant 0 : i32
    %c0_i32_72 = arith.constant 0 : i32
    %c0_i32_73 = arith.constant 0 : i32
    %133 = tpu.memref_slice %arg3[%c0_i32_9, %c0_i32_71, %c0_i32_72, %c0_i32_73] : memref<1x8x8x32xf32, #tpu.memory_space<vmem>> -> memref<1x8x8x32xf32, #tpu.memory_space<vmem>>
    %134 = tpu.memref_squeeze %133 : memref<1x8x8x32xf32, #tpu.memory_space<vmem>> -> memref<8x8x32xf32, #tpu.memory_space<vmem>>
    %135 = arith.index_cast %c4_i32 : i32 to index
    %c0_74 = arith.constant 0 : index
    %c0_75 = arith.constant 0 : index
    %136 = vector.load %134[%135, %c0_74, %c0_75] : memref<8x8x32xf32, #tpu.memory_space<vmem>>, vector<1x8x32xf32>
    %137 = vector.shape_cast %136 : vector<1x8x32xf32> to vector<8x32xf32>
    %138 = arith.truncf %127 : vector<8x32xf32> to vector<8x32xbf16>
    %cst_76 = arith.constant dense<0.000000e+00> : vector<8x64xf32>
    %139 = tpu.matmul %138, %4, %cst_76 {dimension_numbers = #tpu.dot_dimension_numbers<[1], [0], [0], [1], [0, 0, 1, 1], [], []>} : vector<8x32xbf16>, vector<32x64xbf16>, vector<8x64xf32> -> vector<8x64xf32>
    %140 = arith.addf %132, %139 : vector<8x64xf32>
    %141 = arith.negf %140 : vector<8x64xf32>
    %142 = math.exp %141 : vector<8x64xf32>
    %cst_77 = arith.constant 1.000000e+00 : f32
    %143 = vector.broadcast %cst_77 : f32 to vector<8x64xf32>
    %144 = arith.addf %143, %142 : vector<8x64xf32>
    %145 = arith.divf %143, %144 : vector<8x64xf32>
    %146 = vector.extract_strided_slice %145 {offsets = [0, 0], sizes = [8, 32], strides = [1, 1]} : vector<8x64xf32> to vector<8x32xf32>
    %147 = vector.extract_strided_slice %145 {offsets = [0, 32], sizes = [8, 32], strides = [1, 1]} : vector<8x64xf32> to vector<8x32xf32>
    %148 = arith.mulf %147, %127 : vector<8x32xf32>
    %149 = arith.truncf %148 : vector<8x32xf32> to vector<8x32xbf16>
    %cst_78 = arith.constant dense<0.000000e+00> : vector<8x32xf32>
    %150 = tpu.matmul %149, %6, %cst_78 {dimension_numbers = #tpu.dot_dimension_numbers<[1], [0], [0], [1], [0, 0, 1, 1], [], []>} : vector<8x32xbf16>, vector<32x32xbf16>, vector<8x32xf32> -> vector<8x32xf32>
    %151 = arith.addf %137, %150 : vector<8x32xf32>
    %152 = math.tanh %151 : vector<8x32xf32>
    %153 = arith.mulf %146, %127 : vector<8x32xf32>
    %cst_79 = arith.constant 1.000000e+00 : f32
    %154 = vector.broadcast %cst_79 : f32 to vector<8x32xf32>
    %155 = arith.subf %154, %146 : vector<8x32xf32>
    %156 = arith.mulf %155, %152 : vector<8x32xf32>
    %157 = arith.addf %153, %156 : vector<8x32xf32>
    %c5_i32 = arith.constant 5 : i32
    %c0_i32_80 = arith.constant 0 : i32
    %c0_i32_81 = arith.constant 0 : i32
    %c0_i32_82 = arith.constant 0 : i32
    %158 = tpu.memref_slice %arg2[%c0_i32_8, %c0_i32_80, %c0_i32_81, %c0_i32_82] : memref<1x8x8x64xf32, #tpu.memory_space<vmem>> -> memref<1x8x8x64xf32, #tpu.memory_space<vmem>>
    %159 = tpu.memref_squeeze %158 : memref<1x8x8x64xf32, #tpu.memory_space<vmem>> -> memref<8x8x64xf32, #tpu.memory_space<vmem>>
    %160 = arith.index_cast %c5_i32 : i32 to index
    %c0_83 = arith.constant 0 : index
    %c0_84 = arith.constant 0 : index
    %161 = vector.load %159[%160, %c0_83, %c0_84] : memref<8x8x64xf32, #tpu.memory_space<vmem>>, vector<1x8x64xf32>
    %162 = vector.shape_cast %161 : vector<1x8x64xf32> to vector<8x64xf32>
    %c0_i32_85 = arith.constant 0 : i32
    %c0_i32_86 = arith.constant 0 : i32
    %c0_i32_87 = arith.constant 0 : i32
    %163 = tpu.memref_slice %arg3[%c0_i32_9, %c0_i32_85, %c0_i32_86, %c0_i32_87] : memref<1x8x8x32xf32, #tpu.memory_space<vmem>> -> memref<1x8x8x32xf32, #tpu.memory_space<vmem>>
    %164 = tpu.memref_squeeze %163 : memref<1x8x8x32xf32, #tpu.memory_space<vmem>> -> memref<8x8x32xf32, #tpu.memory_space<vmem>>
    %165 = arith.index_cast %c5_i32 : i32 to index
    %c0_88 = arith.constant 0 : index
    %c0_89 = arith.constant 0 : index
    %166 = vector.load %164[%165, %c0_88, %c0_89] : memref<8x8x32xf32, #tpu.memory_space<vmem>>, vector<1x8x32xf32>
    %167 = vector.shape_cast %166 : vector<1x8x32xf32> to vector<8x32xf32>
    %168 = arith.truncf %157 : vector<8x32xf32> to vector<8x32xbf16>
    %cst_90 = arith.constant dense<0.000000e+00> : vector<8x64xf32>
    %169 = tpu.matmul %168, %4, %cst_90 {dimension_numbers = #tpu.dot_dimension_numbers<[1], [0], [0], [1], [0, 0, 1, 1], [], []>} : vector<8x32xbf16>, vector<32x64xbf16>, vector<8x64xf32> -> vector<8x64xf32>
    %170 = arith.addf %162, %169 : vector<8x64xf32>
    %171 = arith.negf %170 : vector<8x64xf32>
    %172 = math.exp %171 : vector<8x64xf32>
    %cst_91 = arith.constant 1.000000e+00 : f32
    %173 = vector.broadcast %cst_91 : f32 to vector<8x64xf32>
    %174 = arith.addf %173, %172 : vector<8x64xf32>
    %175 = arith.divf %173, %174 : vector<8x64xf32>
    %176 = vector.extract_strided_slice %175 {offsets = [0, 0], sizes = [8, 32], strides = [1, 1]} : vector<8x64xf32> to vector<8x32xf32>
    %177 = vector.extract_strided_slice %175 {offsets = [0, 32], sizes = [8, 32], strides = [1, 1]} : vector<8x64xf32> to vector<8x32xf32>
    %178 = arith.mulf %177, %157 : vector<8x32xf32>
    %179 = arith.truncf %178 : vector<8x32xf32> to vector<8x32xbf16>
    %cst_92 = arith.constant dense<0.000000e+00> : vector<8x32xf32>
    %180 = tpu.matmul %179, %6, %cst_92 {dimension_numbers = #tpu.dot_dimension_numbers<[1], [0], [0], [1], [0, 0, 1, 1], [], []>} : vector<8x32xbf16>, vector<32x32xbf16>, vector<8x32xf32> -> vector<8x32xf32>
    %181 = arith.addf %167, %180 : vector<8x32xf32>
    %182 = math.tanh %181 : vector<8x32xf32>
    %183 = arith.mulf %176, %157 : vector<8x32xf32>
    %cst_93 = arith.constant 1.000000e+00 : f32
    %184 = vector.broadcast %cst_93 : f32 to vector<8x32xf32>
    %185 = arith.subf %184, %176 : vector<8x32xf32>
    %186 = arith.mulf %185, %182 : vector<8x32xf32>
    %187 = arith.addf %183, %186 : vector<8x32xf32>
    %c6_i32 = arith.constant 6 : i32
    %c0_i32_94 = arith.constant 0 : i32
    %c0_i32_95 = arith.constant 0 : i32
    %c0_i32_96 = arith.constant 0 : i32
    %188 = tpu.memref_slice %arg2[%c0_i32_8, %c0_i32_94, %c0_i32_95, %c0_i32_96] : memref<1x8x8x64xf32, #tpu.memory_space<vmem>> -> memref<1x8x8x64xf32, #tpu.memory_space<vmem>>
    %189 = tpu.memref_squeeze %188 : memref<1x8x8x64xf32, #tpu.memory_space<vmem>> -> memref<8x8x64xf32, #tpu.memory_space<vmem>>
    %190 = arith.index_cast %c6_i32 : i32 to index
    %c0_97 = arith.constant 0 : index
    %c0_98 = arith.constant 0 : index
    %191 = vector.load %189[%190, %c0_97, %c0_98] : memref<8x8x64xf32, #tpu.memory_space<vmem>>, vector<1x8x64xf32>
    %192 = vector.shape_cast %191 : vector<1x8x64xf32> to vector<8x64xf32>
    %c0_i32_99 = arith.constant 0 : i32
    %c0_i32_100 = arith.constant 0 : i32
    %c0_i32_101 = arith.constant 0 : i32
    %193 = tpu.memref_slice %arg3[%c0_i32_9, %c0_i32_99, %c0_i32_100, %c0_i32_101] : memref<1x8x8x32xf32, #tpu.memory_space<vmem>> -> memref<1x8x8x32xf32, #tpu.memory_space<vmem>>
    %194 = tpu.memref_squeeze %193 : memref<1x8x8x32xf32, #tpu.memory_space<vmem>> -> memref<8x8x32xf32, #tpu.memory_space<vmem>>
    %195 = arith.index_cast %c6_i32 : i32 to index
    %c0_102 = arith.constant 0 : index
    %c0_103 = arith.constant 0 : index
    %196 = vector.load %194[%195, %c0_102, %c0_103] : memref<8x8x32xf32, #tpu.memory_space<vmem>>, vector<1x8x32xf32>
    %197 = vector.shape_cast %196 : vector<1x8x32xf32> to vector<8x32xf32>
    %198 = arith.truncf %187 : vector<8x32xf32> to vector<8x32xbf16>
    %cst_104 = arith.constant dense<0.000000e+00> : vector<8x64xf32>
    %199 = tpu.matmul %198, %4, %cst_104 {dimension_numbers = #tpu.dot_dimension_numbers<[1], [0], [0], [1], [0, 0, 1, 1], [], []>} : vector<8x32xbf16>, vector<32x64xbf16>, vector<8x64xf32> -> vector<8x64xf32>
    %200 = arith.addf %192, %199 : vector<8x64xf32>
    %201 = arith.negf %200 : vector<8x64xf32>
    %202 = math.exp %201 : vector<8x64xf32>
    %cst_105 = arith.constant 1.000000e+00 : f32
    %203 = vector.broadcast %cst_105 : f32 to vector<8x64xf32>
    %204 = arith.addf %203, %202 : vector<8x64xf32>
    %205 = arith.divf %203, %204 : vector<8x64xf32>
    %206 = vector.extract_strided_slice %205 {offsets = [0, 0], sizes = [8, 32], strides = [1, 1]} : vector<8x64xf32> to vector<8x32xf32>
    %207 = vector.extract_strided_slice %205 {offsets = [0, 32], sizes = [8, 32], strides = [1, 1]} : vector<8x64xf32> to vector<8x32xf32>
    %208 = arith.mulf %207, %187 : vector<8x32xf32>
    %209 = arith.truncf %208 : vector<8x32xf32> to vector<8x32xbf16>
    %cst_106 = arith.constant dense<0.000000e+00> : vector<8x32xf32>
    %210 = tpu.matmul %209, %6, %cst_106 {dimension_numbers = #tpu.dot_dimension_numbers<[1], [0], [0], [1], [0, 0, 1, 1], [], []>} : vector<8x32xbf16>, vector<32x32xbf16>, vector<8x32xf32> -> vector<8x32xf32>
    %211 = arith.addf %197, %210 : vector<8x32xf32>
    %212 = math.tanh %211 : vector<8x32xf32>
    %213 = arith.mulf %206, %187 : vector<8x32xf32>
    %cst_107 = arith.constant 1.000000e+00 : f32
    %214 = vector.broadcast %cst_107 : f32 to vector<8x32xf32>
    %215 = arith.subf %214, %206 : vector<8x32xf32>
    %216 = arith.mulf %215, %212 : vector<8x32xf32>
    %217 = arith.addf %213, %216 : vector<8x32xf32>
    %c7_i32 = arith.constant 7 : i32
    %c0_i32_108 = arith.constant 0 : i32
    %c0_i32_109 = arith.constant 0 : i32
    %c0_i32_110 = arith.constant 0 : i32
    %218 = tpu.memref_slice %arg2[%c0_i32_8, %c0_i32_108, %c0_i32_109, %c0_i32_110] : memref<1x8x8x64xf32, #tpu.memory_space<vmem>> -> memref<1x8x8x64xf32, #tpu.memory_space<vmem>>
    %219 = tpu.memref_squeeze %218 : memref<1x8x8x64xf32, #tpu.memory_space<vmem>> -> memref<8x8x64xf32, #tpu.memory_space<vmem>>
    %220 = arith.index_cast %c7_i32 : i32 to index
    %c0_111 = arith.constant 0 : index
    %c0_112 = arith.constant 0 : index
    %221 = vector.load %219[%220, %c0_111, %c0_112] : memref<8x8x64xf32, #tpu.memory_space<vmem>>, vector<1x8x64xf32>
    %222 = vector.shape_cast %221 : vector<1x8x64xf32> to vector<8x64xf32>
    %c0_i32_113 = arith.constant 0 : i32
    %c0_i32_114 = arith.constant 0 : i32
    %c0_i32_115 = arith.constant 0 : i32
    %223 = tpu.memref_slice %arg3[%c0_i32_9, %c0_i32_113, %c0_i32_114, %c0_i32_115] : memref<1x8x8x32xf32, #tpu.memory_space<vmem>> -> memref<1x8x8x32xf32, #tpu.memory_space<vmem>>
    %224 = tpu.memref_squeeze %223 : memref<1x8x8x32xf32, #tpu.memory_space<vmem>> -> memref<8x8x32xf32, #tpu.memory_space<vmem>>
    %225 = arith.index_cast %c7_i32 : i32 to index
    %c0_116 = arith.constant 0 : index
    %c0_117 = arith.constant 0 : index
    %226 = vector.load %224[%225, %c0_116, %c0_117] : memref<8x8x32xf32, #tpu.memory_space<vmem>>, vector<1x8x32xf32>
    %227 = vector.shape_cast %226 : vector<1x8x32xf32> to vector<8x32xf32>
    %228 = arith.truncf %217 : vector<8x32xf32> to vector<8x32xbf16>
    %cst_118 = arith.constant dense<0.000000e+00> : vector<8x64xf32>
    %229 = tpu.matmul %228, %4, %cst_118 {dimension_numbers = #tpu.dot_dimension_numbers<[1], [0], [0], [1], [0, 0, 1, 1], [], []>} : vector<8x32xbf16>, vector<32x64xbf16>, vector<8x64xf32> -> vector<8x64xf32>
    %230 = arith.addf %222, %229 : vector<8x64xf32>
    %231 = arith.negf %230 : vector<8x64xf32>
    %232 = math.exp %231 : vector<8x64xf32>
    %cst_119 = arith.constant 1.000000e+00 : f32
    %233 = vector.broadcast %cst_119 : f32 to vector<8x64xf32>
    %234 = arith.addf %233, %232 : vector<8x64xf32>
    %235 = arith.divf %233, %234 : vector<8x64xf32>
    %236 = vector.extract_strided_slice %235 {offsets = [0, 0], sizes = [8, 32], strides = [1, 1]} : vector<8x64xf32> to vector<8x32xf32>
    %237 = vector.extract_strided_slice %235 {offsets = [0, 32], sizes = [8, 32], strides = [1, 1]} : vector<8x64xf32> to vector<8x32xf32>
    %238 = arith.mulf %237, %217 : vector<8x32xf32>
    %239 = arith.truncf %238 : vector<8x32xf32> to vector<8x32xbf16>
    %cst_120 = arith.constant dense<0.000000e+00> : vector<8x32xf32>
    %240 = tpu.matmul %239, %6, %cst_120 {dimension_numbers = #tpu.dot_dimension_numbers<[1], [0], [0], [1], [0, 0, 1, 1], [], []>} : vector<8x32xbf16>, vector<32x32xbf16>, vector<8x32xf32> -> vector<8x32xf32>
    %241 = arith.addf %227, %240 : vector<8x32xf32>
    %242 = math.tanh %241 : vector<8x32xf32>
    %243 = arith.mulf %236, %217 : vector<8x32xf32>
    %cst_121 = arith.constant 1.000000e+00 : f32
    %244 = vector.broadcast %cst_121 : f32 to vector<8x32xf32>
    %245 = arith.subf %244, %236 : vector<8x32xf32>
    %246 = arith.mulf %245, %242 : vector<8x32xf32>
    %247 = arith.addf %243, %246 : vector<8x32xf32>
    %c8_i32 = arith.constant 8 : i32
    %c0_122 = arith.constant 0 : index
    %c0_123 = arith.constant 0 : index
    %248 = vector.load %arg8[%c0_122, %c0_123] : memref<8x32xf32, #tpu.memory_space<vmem>>, vector<8x32xf32>
    tpu.vector_store %arg8[%c0_122, %c0_123], %247 {strides = array<i32>} : memref<8x32xf32, #tpu.memory_space<vmem>>, vector<8x32xf32>,
    %c0_i32_124 = arith.constant 0 : i32
    %249 = arith.cmpi eq, %arg1, %c0_i32_124 : i32
    %250 = arith.extui %249 : i1 to i32
    %c0_i32_125 = arith.constant 0 : i32
    %251 = arith.cmpi ne, %250, %c0_i32_125 : i32
    scf.if %251 {
      %c0_126 = arith.constant 0 : index
      %c0_127 = arith.constant 0 : index
      %c0_128 = arith.constant 0 : index
      %252 = vector.load %arg7[%c0_126, %c0_127, %c0_128] : memref<1x8x32xf32, #tpu.memory_space<vmem>>, vector<1x8x32xf32>
      %253 = vector.shape_cast %252 : vector<1x8x32xf32> to vector<8x32xf32>
      %254 = vector.shape_cast %247 : vector<8x32xf32> to vector<1x8x32xf32>
      tpu.vector_store %arg7[%c0_126, %c0_127, %c0_128], %254 {strides = array<i32>} : memref<1x8x32xf32, #tpu.memory_space<vmem>>, vector<1x8x32xf32>,
    } else {
    }
    return
  }
  func.func @transform_0(%arg0: i32, %arg1: i32) -> (i32, i32, i32, i32) {
    %c0_i32 = arith.constant 0 : i32
    %c0_i32_0 = arith.constant 0 : i32
    %c0_i32_1 = arith.constant 0 : i32
    return %arg0, %arg1, %c0_i32, %c0_i32_0 : i32, i32, i32, i32
  }
  func.func @transform_1(%arg0: i32, %arg1: i32) -> (i32, i32, i32, i32) {
    %c0_i32 = arith.constant 0 : i32
    %c0_i32_0 = arith.constant 0 : i32
    %c0_i32_1 = arith.constant 0 : i32
    return %arg0, %arg1, %c0_i32, %c0_i32_0 : i32, i32, i32, i32
  }
  func.func @transform_2(%arg0: i32, %arg1: i32) -> (i32, i32, i32) {
    %c0_i32 = arith.constant 0 : i32
    %c0_i32_0 = arith.constant 0 : i32
    %c0_i32_1 = arith.constant 0 : i32
    return %arg0, %c0_i32, %c0_i32_0 : i32, i32, i32
  }
  func.func @transform_3(%arg0: i32, %arg1: i32) -> (i32, i32, i32) {
    %c0_i32 = arith.constant 0 : i32
    %c0_i32_0 = arith.constant 0 : i32
    %c0_i32_1 = arith.constant 0 : i32
    return %arg0, %c0_i32, %c0_i32_0 : i32, i32, i32
  }
  func.func @transform_4(%arg0: i32, %arg1: i32) -> (i32, i32, i32) {
    %c0_i32 = arith.constant 0 : i32
    %c0_i32_0 = arith.constant 0 : i32
    %c0_i32_1 = arith.constant 0 : i32
    return %arg0, %c0_i32, %c0_i32_0 : i32, i32, i32
  }
  func.func @transform_5(%arg0: i32, %arg1: i32) -> (i32, i32, i32) {
    %c0_i32 = arith.constant 0 : i32
    %c0_i32_0 = arith.constant 0 : i32
    %c0_i32_1 = arith.constant 0 : i32
    return %arg0, %c0_i32, %c0_i32_0 : i32, i32, i32
  }
}

</mosaic_0001>

<llo_original>
// kernel: squeeze.1
$region0: #{squeeze.1}
  #allocation0 [shape = 's32[1]{0}', space=sflag, size = 0x4, scoped, tag = 'scoped memory for squeeze.1']
  %s0 = inlined_call_operand.<no memory space> [shape: f32[], index: 0, kind: input, shape index: {}]
  %s1 = inlined_call_operand.vmem [shape: f32[8,32], index: 1, kind: output, shape index: {}]
  %v2 = vstv %s0
  %3 = vst [vmem:[%s1] sm:$0xff] %v2

// kernel: fwd.6
$region0: #{fwd.6}
  #allocation0 [shape = 'u32[]', space=smem, size = 0x4, offset = 0x4, fixed_abs, tag = 'smem constant byte address 0x4 - core index']
  #allocation1 [shape = 'u32[72,128]{1,0:T(1,128)}', space=vmem, size = 0x9000, scoped, tag = 'internal scratch']
  %s0 = inlined_call_operand.vmem [shape: f32[64,32], index: 0, kind: input, shape index: {}]
  %s1 = inlined_call_operand.vmem [shape: bf16[32,196], index: 1, kind: input, shape index: {}]
  %s2 = inlined_call_operand.vmem [shape: f32[1,196], index: 2, kind: input, shape index: {}]
  %s3 = inlined_call_operand.vmem [shape: f32[64,196], index: 3, kind: output, shape index: {}]
  %s4 = sld [smem:[#allocation0]]
  $region22: #{fwd.6} parent=0
    _
  %s6 = ssub.s32 1, %s4
  %s7 = scalar_select 0, %s6, %s4
  // Predicated region
  $region2: #{fwd.6} parent=0 // pred_check
    _
  $region3: #{fwd.6} parent=0 // pred_check_branch
    %9 = sbr.rel (0) target = $region5
  $region4: #{fwd.6} parent=0 // pred_region
    _
  $region5: #{fwd.6} parent=0 // pred_fallthru
    _
  // Predicated region
  $region6: #{fwd.6} parent=0 // pred_check
    _
  $region7: #{fwd.6} parent=0 // pred_check_branch
    %11 = sbr.rel (0) target = $region9
  $region8: #{fwd.6} parent=0 // pred_region
    _
  $region9: #{fwd.6} parent=0 // pred_fallthru
    _
  // Predicated region
  $region10: #{fwd.6} parent=0 // pred_check
    _
  $region11: #{fwd.6} parent=0 // pred_check_branch
    %13 = sbr.rel (0) target = $region13
  $region12: #{fwd.6} parent=0 // pred_region
    _
  $region13: #{fwd.6} parent=0 // pred_fallthru
    _
  %v15 = vld [vmem:[%s0] sm:$0xff]
  %v16 = vld [vmem:[%s0 + $0x8] sm:$0xff]
  %v17 = vld [vmem:[%s0 + $0x10] sm:$0xff]
  %v18 = vld [vmem:[%s0 + $0x18] sm:$0xff]
  %v19 = vld [vmem:[%s0 + $0x20] sm:$0xff]
  %v20 = vld [vmem:[%s0 + $0x28] sm:$0xff]
  %v21 = vld [vmem:[%s0 + $0x30] sm:$0xff]
  %v22 = vld [vmem:[%s0 + $0x38] sm:$0xff]
  %v23 = vpack.c.bf16 %v16, %v15
  %v24 = vpack.c.bf16 %v18, %v17
  %v25 = vpack.c.bf16 %v20, %v19
  %v26 = vpack.c.bf16 %v22, %v21
  %v27 = vld [vmem:[%s1] sm:$0xff]
  %v28 = vld [vmem:[%s1 + $0x8] sm:$0xff]
  %v29 = vld [vmem:[%s1 + $0x10] sm:$0xff]
  %v30 = vld [vmem:[%s1 + $0x18] sm:$0xff]
  %v31 = vld [vmem:[%s2] sm:$0x3]
  %v33 = vperm.slane %v31, 0
  %v34 = vperm.slane %v31, 1
  %v41 = vunpack.c.l.b16 %v27
  %v42 = vunpack.c.h.b16 %v27
  %v43 = vunpack.c.l.b16 %v28
  %v44 = vunpack.c.h.b16 %v28
  %v45 = vunpack.c.l.b16 %v29
  %v46 = vunpack.c.h.b16 %v29
  %v47 = vunpack.c.l.b16 %v30
  %v48 = vunpack.c.h.b16 %v30
  %v49 = vpack.c.b16 %v43, %v41
  %v50 = vpack.c.b16 %v44, %v42
  %v51 = vpack.c.b16 %v47, %v45
  %v52 = vpack.c.b16 %v48, %v46
  %vm57 = vcmask 261120
  %v59 = vsel %vm57, %v23, 0
  %v62 = vsel %vm57, %v24, 0
  %v65 = vsel %vm57, %v25, 0
  %v68 = vsel %vm57, %v26, 0
  %70 = vmatpush.bf16.msra.mxu0 0
  %71 = vmatpush.bf16.msra.mxu0 0
  %72 = vmatpush.bf16.msra.mxu0 0
  %73 = vmatpush.bf16.msra.mxu0 0
  %74 = vmatpush.bf16.msra.mxu0 0
  %75 = vmatpush.bf16.msra.mxu0 0
  %76 = vmatpush.bf16.msra.mxu0 %v51
  %77 = vmatpush.bf16.msra.mxu0 %v49
  %78 = vmatmul.bf16.gmra.mxu0 %v59
  %v79 = vpop.f32.mrf.mxu0
  %v80 = vadd.f32 %v33, %v79
  %v81 = vpop.f32.mrf.mxu0
  %v82 = vadd.f32 %v33, %v81
  %83 = vmatmul.bf16.gmra.mxu0 %v62
  %v84 = vpop.f32.mrf.mxu0
  %v85 = vadd.f32 %v33, %v84
  %v86 = vpop.f32.mrf.mxu0
  %v87 = vadd.f32 %v33, %v86
  %88 = vmatmul.bf16.gmra.mxu0 %v65
  %v89 = vpop.f32.mrf.mxu0
  %v90 = vadd.f32 %v33, %v89
  %v91 = vpop.f32.mrf.mxu0
  %v92 = vadd.f32 %v33, %v91
  %93 = vmatmul.bf16.gmra.mxu0 %v68
  %v94 = vpop.f32.mrf.mxu0
  %v95 = vadd.f32 %v33, %v94
  %v96 = vpop.f32.mrf.mxu0
  %v97 = vadd.f32 %v33, %v96
  %98 = vdwg.mxu0
  %99 = vmatpush.bf16.msra.mxu0 0
  %100 = vmatpush.bf16.msra.mxu0 0
  %101 = vmatpush.bf16.msra.mxu0 0
  %102 = vmatpush.bf16.msra.mxu0 0
  %103 = vmatpush.bf16.msra.mxu0 0
  %104 = vmatpush.bf16.msra.mxu0 0
  %105 = vmatpush.bf16.msra.mxu0 %v52
  %106 = vmatpush.bf16.msra.mxu0 %v50
  %107 = vmatmul.bf16.gmra.mxu0 %v59
  %v108 = vpop.f32.mrf.mxu0
  %v109 = vadd.f32 %v34, %v108
  %v110 = vpop.f32.mrf.mxu0
  %v111 = vadd.f32 %v34, %v110
  %112 = vmatmul.bf16.gmra.mxu0 %v62
  %v113 = vpop.f32.mrf.mxu0
  %v114 = vadd.f32 %v34, %v113
  %v115 = vpop.f32.mrf.mxu0
  %v116 = vadd.f32 %v34, %v115
  %117 = vmatmul.bf16.gmra.mxu0 %v65
  %v118 = vpop.f32.mrf.mxu0
  %v119 = vadd.f32 %v34, %v118
  %v120 = vpop.f32.mrf.mxu0
  %v121 = vadd.f32 %v34, %v120
  %122 = vmatmul.bf16.gmra.mxu0 %v68
  %v123 = vpop.f32.mrf.mxu0
  %v124 = vadd.f32 %v34, %v123
  %v125 = vpop.f32.mrf.mxu0
  %v126 = vadd.f32 %v34, %v125
  %127 = vdwg.mxu0
  %128 = vst [vmem:[%s3] sm:$0xff] %v80
  %vm129 = vcmask 556032
  %130 = vst.msk [vmem:[%s3 + $0x8] sm:$0xff] %vm129, %v109
  %131 = vst [vmem:[%s3 + $0x10] sm:$0xff] %v82
  %132 = vst.msk [vmem:[%s3 + $0x18] sm:$0xff] %vm129, %v111
  %133 = vst [vmem:[%s3 + $0x20] sm:$0xff] %v85
  %134 = vst.msk [vmem:[%s3 + $0x28] sm:$0xff] %vm129, %v114
  %135 = vst [vmem:[%s3 + $0x30] sm:$0xff] %v87
  %136 = vst.msk [vmem:[%s3 + $0x38] sm:$0xff] %vm129, %v116
  %137 = vst [vmem:[%s3 + $0x40] sm:$0xff] %v90
  %138 = vst.msk [vmem:[%s3 + $0x48] sm:$0xff] %vm129, %v119
  %139 = vst [vmem:[%s3 + $0x50] sm:$0xff] %v92
  %140 = vst.msk [vmem:[%s3 + $0x58] sm:$0xff] %vm129, %v121
  %141 = vst [vmem:[%s3 + $0x60] sm:$0xff] %v95
  %142 = vst.msk [vmem:[%s3 + $0x68] sm:$0xff] %vm129, %v124
  %143 = vst [vmem:[%s3 + $0x70] sm:$0xff] %v97
  %144 = vst.msk [vmem:[%s3 + $0x78] sm:$0xff] %vm129, %v126
  // Predicated region
  $region14: #{fwd.6} parent=0 // pred_check
    _
  $region15: #{fwd.6} parent=0 // pred_check_branch
    %146 = sbr.rel (0) target = $region17
  $region16: #{fwd.6} parent=0 // pred_region
    _
  $region17: #{fwd.6} parent=0 // pred_fallthru
    _
  // Predicated region
  $region18: #{fwd.6} parent=0 // pred_check
    _
  $region19: #{fwd.6} parent=0 // pred_check_branch
    %148 = sbr.rel (0) target = $region21
  $region20: #{fwd.6} parent=0 // pred_region
    _
  $region21: #{fwd.6} parent=0 // pred_fallthru
    _

// kernel: fwd.4
$region0: #{fwd.4}
  #allocation0 [shape = 'u32[]', space=smem, size = 0x4, offset = 0x4, fixed_abs, tag = 'smem constant byte address 0x4 - core index']
  #allocation1 [shape = 'u32[72,128]{1,0:T(1,128)}', space=vmem, size = 0x9000, scoped, tag = 'internal scratch']
  %s0 = inlined_call_operand.vmem [shape: f32[64,4], index: 0, kind: input, shape index: {}]
  %s1 = inlined_call_operand.vmem [shape: bf16[4,96], index: 1, kind: input, shape index: {}]
  %s2 = inlined_call_operand.vmem [shape: f32[1,96], index: 2, kind: input, shape index: {}]
  %s3 = inlined_call_operand.vmem [shape: f32[64,96], index: 3, kind: output, shape index: {}]
  %s4 = sld [smem:[#allocation0]]
  $region22: #{fwd.4} parent=0
    _
  %s6 = ssub.s32 1, %s4
  %s7 = scalar_select 0, %s6, %s4
  // Predicated region
  $region2: #{fwd.4} parent=0 // pred_check
    _
  $region3: #{fwd.4} parent=0 // pred_check_branch
    %9 = sbr.rel (0) target = $region5
  $region4: #{fwd.4} parent=0 // pred_region
    _
  $region5: #{fwd.4} parent=0 // pred_fallthru
    _
  // Predicated region
  $region6: #{fwd.4} parent=0 // pred_check
    _
  $region7: #{fwd.4} parent=0 // pred_check_branch
    %11 = sbr.rel (0) target = $region9
  $region8: #{fwd.4} parent=0 // pred_region
    _
  $region9: #{fwd.4} parent=0 // pred_fallthru
    _
  // Predicated region
  $region10: #{fwd.4} parent=0 // pred_check
    _
  $region11: #{fwd.4} parent=0 // pred_check_branch
    %13 = sbr.rel (0) target = $region13
  $region12: #{fwd.4} parent=0 // pred_region
    _
  $region13: #{fwd.4} parent=0 // pred_fallthru
    _
  %v15 = vld [vmem:[%s0] sm:$0xff]
  %v16 = vld [vmem:[%s0 + $0x8] sm:$0xff]
  %v17 = vld [vmem:[%s0 + $0x10] sm:$0xff]
  %v18 = vld [vmem:[%s0 + $0x18] sm:$0xff]
  %v19 = vld [vmem:[%s0 + $0x20] sm:$0xff]
  %v20 = vld [vmem:[%s0 + $0x28] sm:$0xff]
  %v21 = vld [vmem:[%s0 + $0x30] sm:$0xff]
  %v22 = vld [vmem:[%s0 + $0x38] sm:$0xff]
  %v23 = vpack.c.bf16 %v16, %v15
  %v24 = vpack.c.bf16 %v18, %v17
  %v25 = vpack.c.bf16 %v20, %v19
  %v26 = vpack.c.bf16 %v22, %v21
  %v27 = vld [vmem:[%s1] sm:$0x3]
  %v28 = vld [vmem:[%s2] sm:$0x1]
  %v30 = vperm.slane %v28, 0
  %vm32 = vcmask 31744
  %v34 = vsel %vm32, %v23, 0
  %v37 = vsel %vm32, %v24, 0
  %v40 = vsel %vm32, %v25, 0
  %v43 = vsel %vm32, %v26, 0
  %vm45 = vcmask 1041408
  %v47 = vsel %vm45, %v27, 0
  %49 = vmatpush.bf16.msra.mxu0 0
  %50 = vmatpush.bf16.msra.mxu0 0
  %51 = vmatpush.bf16.msra.mxu0 0
  %52 = vmatpush.bf16.msra.mxu0 0
  %53 = vmatpush.bf16.msra.mxu0 0
  %54 = vmatpush.bf16.msra.mxu0 0
  %55 = vmatpush.bf16.msra.mxu0 0
  %56 = vmatpush.bf16.msra.mxu0 %v47
  %57 = vmatmul.bf16.gmra.mxu0 %v34
  %v58 = vpop.f32.mrf.mxu0
  %v59 = vadd.f32 %v30, %v58
  %v60 = vpop.f32.mrf.mxu0
  %v61 = vadd.f32 %v30, %v60
  %62 = vmatmul.bf16.gmra.mxu0 %v37
  %v63 = vpop.f32.mrf.mxu0
  %v64 = vadd.f32 %v30, %v63
  %v65 = vpop.f32.mrf.mxu0
  %v66 = vadd.f32 %v30, %v65
  %67 = vmatmul.bf16.gmra.mxu0 %v40
  %v68 = vpop.f32.mrf.mxu0
  %v69 = vadd.f32 %v30, %v68
  %v70 = vpop.f32.mrf.mxu0
  %v71 = vadd.f32 %v30, %v70
  %72 = vmatmul.bf16.gmra.mxu0 %v43
  %v73 = vpop.f32.mrf.mxu0
  %v74 = vadd.f32 %v30, %v73
  %v75 = vpop.f32.mrf.mxu0
  %v76 = vadd.f32 %v30, %v75
  %77 = vdwg.mxu0
  %vm78 = vcmask 785408
  %79 = vst.msk [vmem:[%s3] sm:$0xff] %vm78, %v59
  %80 = vst.msk [vmem:[%s3 + $0x8] sm:$0xff] %vm78, %v61
  %81 = vst.msk [vmem:[%s3 + $0x10] sm:$0xff] %vm78, %v64
  %82 = vst.msk [vmem:[%s3 + $0x18] sm:$0xff] %vm78, %v66
  %83 = vst.msk [vmem:[%s3 + $0x20] sm:$0xff] %vm78, %v69
  %84 = vst.msk [vmem:[%s3 + $0x28] sm:$0xff] %vm78, %v71
  %85 = vst.msk [vmem:[%s3 + $0x30] sm:$0xff] %vm78, %v74
  %86 = vst.msk [vmem:[%s3 + $0x38] sm:$0xff] %vm78, %v76
  // Predicated region
  $region14: #{fwd.4} parent=0 // pred_check
    _
  $region15: #{fwd.4} parent=0 // pred_check_branch
    %88 = sbr.rel (0) target = $region17
  $region16: #{fwd.4} parent=0 // pred_region
    _
  $region17: #{fwd.4} parent=0 // pred_fallthru
    _
  // Predicated region
  $region18: #{fwd.4} parent=0 // pred_check
    _
  $region19: #{fwd.4} parent=0 // pred_check_branch
    %90 = sbr.rel (0) target = $region21
  $region20: #{fwd.4} parent=0 // pred_region
    _
  $region21: #{fwd.4} parent=0 // pred_fallthru
    _

// kernel: fwd.5
$region0: #{fwd.5}
  #allocation0 [shape = 'u32[]', space=smem, size = 0x4, offset = 0x4, fixed_abs, tag = 'smem constant byte address 0x4 - core index']
  #allocation1 [shape = 'u32[72,128]{1,0:T(1,128)}', space=vmem, size = 0x9000, scoped, tag = 'internal scratch']
  #allocation2 [shape = 'f32[8,32]{1,0:T(8,128)}', space=vmem, size = 0x1000, scoped, tag = 'scratch operand']
  %s0 = inlined_call_operand.vmem [shape: f32[8,8,64], index: 0, kind: input, shape index: {}]
  %s1 = inlined_call_operand.vmem [shape: f32[8,8,32], index: 1, kind: input, shape index: {}]
  %s2 = inlined_call_operand.vmem [shape: f32[8,32], index: 2, kind: input, shape index: {}]
  %s3 = inlined_call_operand.vmem [shape: bf16[32,64], index: 3, kind: input, shape index: {}]
  %s4 = inlined_call_operand.vmem [shape: bf16[32,32], index: 4, kind: input, shape index: {}]
  %s5 = inlined_call_operand.vmem [shape: f32[8,8,32], index: 5, kind: output, shape index: {0}]
  %s6 = inlined_call_operand.vmem [shape: f32[8,32], index: 6, kind: output, shape index: {1}]
  %7 = xla_tuple %s5, %s6
  %s8 = sld [smem:[#allocation0]]
  $region46: #{fwd.5} parent=0
    _
  %s10 = ssub.s32 1, %s8
  %s11 = scalar_select 0, %s10, %s8
  // Predicated region
  $region2: #{fwd.5} parent=0 // pred_check
    _
  $region3: #{fwd.5} parent=0 // pred_check_branch
    %13 = sbr.rel (0) target = $region5
  $region4: #{fwd.5} parent=0 // pred_region
    _
  $region5: #{fwd.5} parent=0 // pred_fallthru
    _
  // Predicated region
  $region6: #{fwd.5} parent=0 // pred_check
    _
  $region7: #{fwd.5} parent=0 // pred_check_branch
    %15 = sbr.rel (0) target = $region9
  $region8: #{fwd.5} parent=0 // pred_region
    _
  $region9: #{fwd.5} parent=0 // pred_fallthru
    _
  // Predicated region
  $region10: #{fwd.5} parent=0 // pred_check
    _
  $region11: #{fwd.5} parent=0 // pred_check_branch
    %17 = sbr.rel (0) target = $region13
  $region12: #{fwd.5} parent=0 // pred_region
    _
  $region13: #{fwd.5} parent=0 // pred_fallthru
    _
  // Predicated region
  $region14: #{fwd.5} parent=0 // pred_check
    _
  $region15: #{fwd.5} parent=0 // pred_check_branch
    %19 = sbr.rel (0) target = $region17
  $region16: #{fwd.5} parent=0 // pred_region
    _
  $region17: #{fwd.5} parent=0 // pred_fallthru
    _
  // Predicated region
  $region18: #{fwd.5} parent=0 // pred_check
    _
  $region19: #{fwd.5} parent=0 // pred_check_branch
    %21 = sbr.rel (0) target = $region21
  $region20: #{fwd.5} parent=0 // pred_region
    _
  $region21: #{fwd.5} parent=0 // pred_fallthru
    _
  %p23 = scmp.eq.s32.totalorder 0, 0
  // Predicated region
  $region22: #{fwd.5} parent=0 // pred_check
    %p24 = pneg %p23
  $region23: #{fwd.5} parent=0 // pred_check_branch
    %26 = sbr.rel (%p24) target = $region25
  $region24: #{fwd.5} parent=0 // pred_region
    %v27 = vld [vmem:[%s2] sm:$0xff]
    %vm28 = vcmask 261120
    %29 = vst.msk [vmem:[#allocation2] sm:$0xff] %vm28, %v27
  $region25: #{fwd.5} parent=0 // pred_fallthru
    _
  %v30 = vld [vmem:[%s3] sm:$0xf]
  %v31 = vld [vmem:[%s3 + $0x4] sm:$0xf]
  %v32 = vld [vmem:[%s3 + $0x8] sm:$0xf]
  %v33 = vld [vmem:[%s3 + $0xc] sm:$0xf]
  %v34 = vld [vmem:[%s4] sm:$0xf]
  %v35 = vld [vmem:[%s4 + $0x4] sm:$0xf]
  %v36 = vld [vmem:[%s4 + $0x8] sm:$0xf]
  %v37 = vld [vmem:[%s4 + $0xc] sm:$0xf]
  %v38 = vld [vmem:[#allocation2] sm:$0xff]
  %v39 = vld [vmem:[%s0] sm:$0xff]
  %v40 = vld [vmem:[%s1] sm:$0xff]
  %v41 = vpack.c.bf16 %v38, %v38
  %v46 = vunpack.c.l.b16 %v30
  %v47 = vunpack.c.l.b16 %v31
  %v48 = vunpack.c.l.b16 %v32
  %v49 = vunpack.c.l.b16 %v33
  %v50 = vpack.c.b16 %v47, %v46
  %v51 = vpack.c.b16 %v49, %v48
  %vm54 = vcmask 261120
  %v56 = vsel %vm54, %v41, 0
  %58 = vmatpush.bf16.msra.mxu0 0
  %59 = vmatpush.bf16.msra.mxu0 0
  %60 = vmatpush.bf16.msra.mxu0 0
  %61 = vmatpush.bf16.msra.mxu0 0
  %62 = vmatpush.bf16.msra.mxu0 0
  %63 = vmatpush.bf16.msra.mxu0 0
  %64 = vmatpush.bf16.msra.mxu0 %v51
  %65 = vmatpush.bf16.msra.mxu0 %v50
  %66 = vmatmul.bf16.gmra.mxu0 %v56
  %v67 = vpop.f32.mrf.mxu0
  %v68 = vadd.f32 0.0, %v67
  %v69 = vpop.f32.mrf.mxu0
  %70 = vdwg.mxu0
  %v71 = vadd.f32 %v39, %v68
  %v72 = vxor.u32 %v71, 2147483648
  %v73 = vmul.f32 %v72, 1.442695
  %v74 = vpow.pop %v73
  %v75 = vadd.f32 %v74, 1.0
  %v76 = vrcp.pop %v75
  %v77 = vmul.f32 %v75, %v76
  %v78 = vsub.f32 1.0, %v77
  %v79 = vmul.f32 %v76, %v78
  %v80 = vadd.f32 %v76, %v79
  %vm81 = vweird.f32 %v75
  %vm82 = vweird.f32 %v76
  %vm83 = vmor %vm81, %vm82
  %v84 = vsel %vm83, %v76, %v80
  %v85 = vand.u32 2147483647, %v75
  %vm86 = vcmp.eq.f32.partialorder %v85, 8.507059e+37
  %v87 = vand.u32 %v75, 2147483648
  %v88 = vor.u32 1.1754944e-38, %v87
  %v89 = vsel %vm86, %v88, %v84
  %v90 = vmul.f32 1.0, %v89
  %92 = vrot.lane.b32.xlu0 %v38, 32
  %v93 = vpop.permute.xlu0 %92
  %v95 = vmul.f32 %v90, %v93
  %v96 = vpack.c.bf16 %v95, %v95
  %98 = vrot.lane.b32.xlu0 %v96, 96
  %v99 = vpop.permute.xlu0 %98
  %v104 = vunpack.c.l.b16 %v34
  %v105 = vunpack.c.l.b16 %v35
  %v106 = vunpack.c.l.b16 %v36
  %v107 = vunpack.c.l.b16 %v37
  %v108 = vpack.c.b16 %v105, %v104
  %v109 = vpack.c.b16 %v107, %v106
  %v113 = vsel %vm54, %v99, 0
  %115 = vmatpush.bf16.msra.mxu0 0
  %116 = vmatpush.bf16.msra.mxu0 0
  %117 = vmatpush.bf16.msra.mxu0 0
  %118 = vmatpush.bf16.msra.mxu0 0
  %119 = vmatpush.bf16.msra.mxu0 0
  %120 = vmatpush.bf16.msra.mxu0 0
  %121 = vmatpush.bf16.msra.mxu0 %v109
  %122 = vmatpush.bf16.msra.mxu0 %v108
  %123 = vmatmul.bf16.gmra.mxu0 %v113
  %v124 = vpop.f32.mrf.mxu0
  %v125 = vadd.f32 0.0, %v124
  %v126 = vpop.f32.mrf.mxu0
  %127 = vdwg.mxu0
  %v128 = vadd.f32 %v40, %v125
  %v129 = vtanh.pop %v128
  %v130 = vmul.f32 %v90, %v38
  %v131 = vsub.f32 1.0, %v90
  %v132 = vmul.f32 %v131, %v129
  %v133 = vadd.f32 %v130, %v132
  %134 = vst.msk [vmem:[%s5] sm:$0xff] %vm54, %v133
  %s135 = scalar_lea.vmem %s0, 8
  %v136 = vld [vmem:[%s135] sm:$0xff]
  %s137 = scalar_lea.vmem %s1, 8
  %v138 = vld [vmem:[%s137] sm:$0xff]
  %v139 = vpack.c.bf16 %v133, %v133
  %v141 = vsel %vm54, %v139, 0
  %143 = vmatpush.bf16.msra.mxu0 0
  %144 = vmatpush.bf16.msra.mxu0 0
  %145 = vmatpush.bf16.msra.mxu0 0
  %146 = vmatpush.bf16.msra.mxu0 0
  %147 = vmatpush.bf16.msra.mxu0 0
  %148 = vmatpush.bf16.msra.mxu0 0
  %149 = vmatpush.bf16.msra.mxu0 %v51
  %150 = vmatpush.bf16.msra.mxu0 %v50
  %151 = vmatmul.bf16.gmra.mxu0 %v141
  %v152 = vpop.f32.mrf.mxu0
  %v153 = vadd.f32 0.0, %v152
  %v154 = vpop.f32.mrf.mxu0
  %155 = vdwg.mxu0
  %v156 = vadd.f32 %v136, %v153
  %v157 = vxor.u32 %v156, 2147483648
  %v158 = vmul.f32 %v157, 1.442695
  %v159 = vpow.pop %v158
  %v160 = vadd.f32 %v159, 1.0
  %v161 = vrcp.pop %v160
  %v162 = vmul.f32 %v160, %v161
  %v163 = vsub.f32 1.0, %v162
  %v164 = vmul.f32 %v161, %v163
  %v165 = vadd.f32 %v161, %v164
  %vm166 = vweird.f32 %v160
  %vm167 = vweird.f32 %v161
  %vm168 = vmor %vm166, %vm167
  %v169 = vsel %vm168, %v161, %v165
  %v170 = vand.u32 2147483647, %v160
  %vm171 = vcmp.eq.f32.partialorder %v170, 8.507059e+37
  %v172 = vand.u32 %v160, 2147483648
  %v173 = vor.u32 1.1754944e-38, %v172
  %v174 = vsel %vm171, %v173, %v169
  %v175 = vmul.f32 1.0, %v174
  %177 = vrot.lane.b32.xlu0 %v133, 32
  %v178 = vpop.permute.xlu0 %177
  %v180 = vmul.f32 %v175, %v178
  %v181 = vpack.c.bf16 %v180, %v180
  %183 = vrot.lane.b32.xlu0 %v181, 96
  %v184 = vpop.permute.xlu0 %183
  %v186 = vsel %vm54, %v184, 0
  %188 = vmatpush.bf16.msra.mxu0 0
  %189 = vmatpush.bf16.msra.mxu0 0
  %190 = vmatpush.bf16.msra.mxu0 0
  %191 = vmatpush.bf16.msra.mxu0 0
  %192 = vmatpush.bf16.msra.mxu0 0
  %193 = vmatpush.bf16.msra.mxu0 0
  %194 = vmatpush.bf16.msra.mxu0 %v109
  %195 = vmatpush.bf16.msra.mxu0 %v108
  %196 = vmatmul.bf16.gmra.mxu0 %v186
  %v197 = vpop.f32.mrf.mxu0
  %v198 = vadd.f32 0.0, %v197
  %v199 = vpop.f32.mrf.mxu0
  %200 = vdwg.mxu0
  %v201 = vadd.f32 %v138, %v198
  %v202 = vtanh.pop %v201
  %v203 = vmul.f32 %v175, %v133
  %v204 = vsub.f32 1.0, %v175
  %v205 = vmul.f32 %v204, %v202
  %v206 = vadd.f32 %v203, %v205
  %s207 = scalar_lea.vmem %s5, 8
  %208 = vst.msk [vmem:[%s207] sm:$0xff] %vm54, %v206
  %s209 = scalar_lea.vmem %s0, 16
  %v210 = vld [vmem:[%s209] sm:$0xff]
  %s211 = scalar_lea.vmem %s1, 16
  %v212 = vld [vmem:[%s211] sm:$0xff]
  %v213 = vpack.c.bf16 %v206, %v206
  %v215 = vsel %vm54, %v213, 0
  %217 = vmatpush.bf16.msra.mxu0 0
  %218 = vmatpush.bf16.msra.mxu0 0
  %219 = vmatpush.bf16.msra.mxu0 0
  %220 = vmatpush.bf16.msra.mxu0 0
  %221 = vmatpush.bf16.msra.mxu0 0
  %222 = vmatpush.bf16.msra.mxu0 0
  %223 = vmatpush.bf16.msra.mxu0 %v51
  %224 = vmatpush.bf16.msra.mxu0 %v50
  %225 = vmatmul.bf16.gmra.mxu0 %v215
  %v226 = vpop.f32.mrf.mxu0
  %v227 = vadd.f32 0.0, %v226
  %v228 = vpop.f32.mrf.mxu0
  %229 = vdwg.mxu0
  %v230 = vadd.f32 %v210, %v227
  %v231 = vxor.u32 %v230, 2147483648
  %v232 = vmul.f32 %v231, 1.442695
  %v233 = vpow.pop %v232
  %v234 = vadd.f32 %v233, 1.0
  %v235 = vrcp.pop %v234
  %v236 = vmul.f32 %v234, %v235
  %v237 = vsub.f32 1.0, %v236
  %v238 = vmul.f32 %v235, %v237
  %v239 = vadd.f32 %v235, %v238
  %vm240 = vweird.f32 %v234
  %vm241 = vweird.f32 %v235
  %vm242 = vmor %vm240, %vm241
  %v243 = vsel %vm242, %v235, %v239
  %v244 = vand.u32 2147483647, %v234
  %vm245 = vcmp.eq.f32.partialorder %v244, 8.507059e+37
  %v246 = vand.u32 %v234, 2147483648
  %v247 = vor.u32 1.1754944e-38, %v246
  %v248 = vsel %vm245, %v247, %v243
  %v249 = vmul.f32 1.0, %v248
  %251 = vrot.lane.b32.xlu0 %v206, 32
  %v252 = vpop.permute.xlu0 %251
  %v254 = vmul.f32 %v249, %v252
  %v255 = vpack.c.bf16 %v254, %v254
  %257 = vrot.lane.b32.xlu0 %v255, 96
  %v258 = vpop.permute.xlu0 %257
  %v260 = vsel %vm54, %v258, 0
  %262 = vmatpush.bf16.msra.mxu0 0
  %263 = vmatpush.bf16.msra.mxu0 0
  %264 = vmatpush.bf16.msra.mxu0 0
  %265 = vmatpush.bf16.msra.mxu0 0
  %266 = vmatpush.bf16.msra.mxu0 0
  %267 = vmatpush.bf16.msra.mxu0 0
  %268 = vmatpush.bf16.msra.mxu0 %v109
  %269 = vmatpush.bf16.msra.mxu0 %v108
  %270 = vmatmul.bf16.gmra.mxu0 %v260
  %v271 = vpop.f32.mrf.mxu0
  %v272 = vadd.f32 0.0, %v271
  %v273 = vpop.f32.mrf.mxu0
  %274 = vdwg.mxu0
  %v275 = vadd.f32 %v212, %v272
  %v276 = vtanh.pop %v275
  %v277 = vmul.f32 %v249, %v206
  %v278 = vsub.f32 1.0, %v249
  %v279 = vmul.f32 %v278, %v276
  %v280 = vadd.f32 %v277, %v279
  %s281 = scalar_lea.vmem %s5, 16
  %282 = vst.msk [vmem:[%s281] sm:$0xff] %vm54, %v280
  %s283 = scalar_lea.vmem %s0, 24
  %v284 = vld [vmem:[%s283] sm:$0xff]
  %s285 = scalar_lea.vmem %s1, 24
  %v286 = vld [vmem:[%s285] sm:$0xff]
  %v287 = vpack.c.bf16 %v280, %v280
  %v289 = vsel %vm54, %v287, 0
  %291 = vmatpush.bf16.msra.mxu0 0
  %292 = vmatpush.bf16.msra.mxu0 0
  %293 = vmatpush.bf16.msra.mxu0 0
  %294 = vmatpush.bf16.msra.mxu0 0
  %295 = vmatpush.bf16.msra.mxu0 0
  %296 = vmatpush.bf16.msra.mxu0 0
  %297 = vmatpush.bf16.msra.mxu0 %v51
  %298 = vmatpush.bf16.msra.mxu0 %v50
  %299 = vmatmul.bf16.gmra.mxu0 %v289
  %v300 = vpop.f32.mrf.mxu0
  %v301 = vadd.f32 0.0, %v300
  %v302 = vpop.f32.mrf.mxu0
  %303 = vdwg.mxu0
  %v304 = vadd.f32 %v284, %v301
  %v305 = vxor.u32 %v304, 2147483648
  %v306 = vmul.f32 %v305, 1.442695
  %v307 = vpow.pop %v306
  %v308 = vadd.f32 %v307, 1.0
  %v309 = vrcp.pop %v308
  %v310 = vmul.f32 %v308, %v309
  %v311 = vsub.f32 1.0, %v310
  %v312 = vmul.f32 %v309, %v311
  %v313 = vadd.f32 %v309, %v312
  %vm314 = vweird.f32 %v308
  %vm315 = vweird.f32 %v309
  %vm316 = vmor %vm314, %vm315
  %v317 = vsel %vm316, %v309, %v313
  %v318 = vand.u32 2147483647, %v308
  %vm319 = vcmp.eq.f32.partialorder %v318, 8.507059e+37
  %v320 = vand.u32 %v308, 2147483648
  %v321 = vor.u32 1.1754944e-38, %v320
  %v322 = vsel %vm319, %v321, %v317
  %v323 = vmul.f32 1.0, %v322
  %325 = vrot.lane.b32.xlu0 %v280, 32
  %v326 = vpop.permute.xlu0 %325
  %v328 = vmul.f32 %v323, %v326
  %v329 = vpack.c.bf16 %v328, %v328
  %331 = vrot.lane.b32.xlu0 %v329, 96
  %v332 = vpop.permute.xlu0 %331
  %v334 = vsel %vm54, %v332, 0
  %336 = vmatpush.bf16.msra.mxu0 0
  %337 = vmatpush.bf16.msra.mxu0 0
  %338 = vmatpush.bf16.msra.mxu0 0
  %339 = vmatpush.bf16.msra.mxu0 0
  %340 = vmatpush.bf16.msra.mxu0 0
  %341 = vmatpush.bf16.msra.mxu0 0
  %342 = vmatpush.bf16.msra.mxu0 %v109
  %343 = vmatpush.bf16.msra.mxu0 %v108
  %344 = vmatmul.bf16.gmra.mxu0 %v334
  %v345 = vpop.f32.mrf.mxu0
  %v346 = vadd.f32 0.0, %v345
  %v347 = vpop.f32.mrf.mxu0
  %348 = vdwg.mxu0
  %v349 = vadd.f32 %v286, %v346
  %v350 = vtanh.pop %v349
  %v351 = vmul.f32 %v323, %v280
  %v352 = vsub.f32 1.0, %v323
  %v353 = vmul.f32 %v352, %v350
  %v354 = vadd.f32 %v351, %v353
  %s355 = scalar_lea.vmem %s5, 24
  %356 = vst.msk [vmem:[%s355] sm:$0xff] %vm54, %v354
  %s357 = scalar_lea.vmem %s0, 32
  %v358 = vld [vmem:[%s357] sm:$0xff]
  %s359 = scalar_lea.vmem %s1, 32
  %v360 = vld [vmem:[%s359] sm:$0xff]
  %v361 = vpack.c.bf16 %v354, %v354
  %v363 = vsel %vm54, %v361, 0
  %365 = vmatpush.bf16.msra.mxu0 0
  %366 = vmatpush.bf16.msra.mxu0 0
  %367 = vmatpush.bf16.msra.mxu0 0
  %368 = vmatpush.bf16.msra.mxu0 0
  %369 = vmatpush.bf16.msra.mxu0 0
  %370 = vmatpush.bf16.msra.mxu0 0
  %371 = vmatpush.bf16.msra.mxu0 %v51
  %372 = vmatpush.bf16.msra.mxu0 %v50
  %373 = vmatmul.bf16.gmra.mxu0 %v363
  %v374 = vpop.f32.mrf.mxu0
  %v375 = vadd.f32 0.0, %v374
  %v376 = vpop.f32.mrf.mxu0
  %377 = vdwg.mxu0
  %v378 = vadd.f32 %v358, %v375
  %v379 = vxor.u32 %v378, 2147483648
  %v380 = vmul.f32 %v379, 1.442695
  %v381 = vpow.pop %v380
  %v382 = vadd.f32 %v381, 1.0
  %v383 = vrcp.pop %v382
  %v384 = vmul.f32 %v382, %v383
  %v385 = vsub.f32 1.0, %v384
  %v386 = vmul.f32 %v383, %v385
  %v387 = vadd.f32 %v383, %v386
  %vm388 = vweird.f32 %v382
  %vm389 = vweird.f32 %v383
  %vm390 = vmor %vm388, %vm389
  %v391 = vsel %vm390, %v383, %v387
  %v392 = vand.u32 2147483647, %v382
  %vm393 = vcmp.eq.f32.partialorder %v392, 8.507059e+37
  %v394 = vand.u32 %v382, 2147483648
  %v395 = vor.u32 1.1754944e-38, %v394
  %v396 = vsel %vm393, %v395, %v391
  %v397 = vmul.f32 1.0, %v396
  %399 = vrot.lane.b32.xlu0 %v354, 32
  %v400 = vpop.permute.xlu0 %399
  %v402 = vmul.f32 %v397, %v400
  %v403 = vpack.c.bf16 %v402, %v402
  %405 = vrot.lane.b32.xlu0 %v403, 96
  %v406 = vpop.permute.xlu0 %405
  %v408 = vsel %vm54, %v406, 0
  %410 = vmatpush.bf16.msra.mxu0 0
  %411 = vmatpush.bf16.msra.mxu0 0
  %412 = vmatpush.bf16.msra.mxu0 0
  %413 = vmatpush.bf16.msra.mxu0 0
  %414 = vmatpush.bf16.msra.mxu0 0
  %415 = vmatpush.bf16.msra.mxu0 0
  %416 = vmatpush.bf16.msra.mxu0 %v109
  %417 = vmatpush.bf16.msra.mxu0 %v108
  %418 = vmatmul.bf16.gmra.mxu0 %v408
  %v419 = vpop.f32.mrf.mxu0
  %v420 = vadd.f32 0.0, %v419
  %v421 = vpop.f32.mrf.mxu0
  %422 = vdwg.mxu0
  %v423 = vadd.f32 %v360, %v420
  %v424 = vtanh.pop %v423
  %v425 = vmul.f32 %v397, %v354
  %v426 = vsub.f32 1.0, %v397
  %v427 = vmul.f32 %v426, %v424
  %v428 = vadd.f32 %v425, %v427
  %s429 = scalar_lea.vmem %s5, 32
  %430 = vst.msk [vmem:[%s429] sm:$0xff] %vm54, %v428
  %s431 = scalar_lea.vmem %s0, 40
  %v432 = vld [vmem:[%s431] sm:$0xff]
  %s433 = scalar_lea.vmem %s1, 40
  %v434 = vld [vmem:[%s433] sm:$0xff]
  %v435 = vpack.c.bf16 %v428, %v428
  %v437 = vsel %vm54, %v435, 0
  %439 = vmatpush.bf16.msra.mxu0 0
  %440 = vmatpush.bf16.msra.mxu0 0
  %441 = vmatpush.bf16.msra.mxu0 0
  %442 = vmatpush.bf16.msra.mxu0 0
  %443 = vmatpush.bf16.msra.mxu0 0
  %444 = vmatpush.bf16.msra.mxu0 0
  %445 = vmatpush.bf16.msra.mxu0 %v51
  %446 = vmatpush.bf16.msra.mxu0 %v50
  %447 = vmatmul.bf16.gmra.mxu0 %v437
  %v448 = vpop.f32.mrf.mxu0
  %v449 = vadd.f32 0.0, %v448
  %v450 = vpop.f32.mrf.mxu0
  %451 = vdwg.mxu0
  %v452 = vadd.f32 %v432, %v449
  %v453 = vxor.u32 %v452, 2147483648
  %v454 = vmul.f32 %v453, 1.442695
  %v455 = vpow.pop %v454
  %v456 = vadd.f32 %v455, 1.0
  %v457 = vrcp.pop %v456
  %v458 = vmul.f32 %v456, %v457
  %v459 = vsub.f32 1.0, %v458
  %v460 = vmul.f32 %v457, %v459
  %v461 = vadd.f32 %v457, %v460
  %vm462 = vweird.f32 %v456
  %vm463 = vweird.f32 %v457
  %vm464 = vmor %vm462, %vm463
  %v465 = vsel %vm464, %v457, %v461
  %v466 = vand.u32 2147483647, %v456
  %vm467 = vcmp.eq.f32.partialorder %v466, 8.507059e+37
  %v468 = vand.u32 %v456, 2147483648
  %v469 = vor.u32 1.1754944e-38, %v468
  %v470 = vsel %vm467, %v469, %v465
  %v471 = vmul.f32 1.0, %v470
  %473 = vrot.lane.b32.xlu0 %v428, 32
  %v474 = vpop.permute.xlu0 %473
  %v476 = vmul.f32 %v471, %v474
  %v477 = vpack.c.bf16 %v476, %v476
  %479 = vrot.lane.b32.xlu0 %v477, 96
  %v480 = vpop.permute.xlu0 %479
  %v482 = vsel %vm54, %v480, 0
  %484 = vmatpush.bf16.msra.mxu0 0
  %485 = vmatpush.bf16.msra.mxu0 0
  %486 = vmatpush.bf16.msra.mxu0 0
  %487 = vmatpush.bf16.msra.mxu0 0
  %488 = vmatpush.bf16.msra.mxu0 0
  %489 = vmatpush.bf16.msra.mxu0 0
  %490 = vmatpush.bf16.msra.mxu0 %v109
  %491 = vmatpush.bf16.msra.mxu0 %v108
  %492 = vmatmul.bf16.gmra.mxu0 %v482
  %v493 = vpop.f32.mrf.mxu0
  %v494 = vadd.f32 0.0, %v493
  %v495 = vpop.f32.mrf.mxu0
  %496 = vdwg.mxu0
  %v497 = vadd.f32 %v434, %v494
  %v498 = vtanh.pop %v497
  %v499 = vmul.f32 %v471, %v428
  %v500 = vsub.f32 1.0, %v471
  %v501 = vmul.f32 %v500, %v498
  %v502 = vadd.f32 %v499, %v501
  %s503 = scalar_lea.vmem %s5, 40
  %504 = vst.msk [vmem:[%s503] sm:$0xff] %vm54, %v502
  %s505 = scalar_lea.vmem %s0, 48
  %v506 = vld [vmem:[%s505] sm:$0xff]
  %s507 = scalar_lea.vmem %s1, 48
  %v508 = vld [vmem:[%s507] sm:$0xff]
  %v509 = vpack.c.bf16 %v502, %v502
  %v511 = vsel %vm54, %v509, 0
  %513 = vmatpush.bf16.msra.mxu0 0
  %514 = vmatpush.bf16.msra.mxu0 0
  %515 = vmatpush.bf16.msra.mxu0 0
  %516 = vmatpush.bf16.msra.mxu0 0
  %517 = vmatpush.bf16.msra.mxu0 0
  %518 = vmatpush.bf16.msra.mxu0 0
  %519 = vmatpush.bf16.msra.mxu0 %v51
  %520 = vmatpush.bf16.msra.mxu0 %v50
  %521 = vmatmul.bf16.gmra.mxu0 %v511
  %v522 = vpop.f32.mrf.mxu0
  %v523 = vadd.f32 0.0, %v522
  %v524 = vpop.f32.mrf.mxu0
  %525 = vdwg.mxu0
  %v526 = vadd.f32 %v506, %v523
  %v527 = vxor.u32 %v526, 2147483648
  %v528 = vmul.f32 %v527, 1.442695
  %v529 = vpow.pop %v528
  %v530 = vadd.f32 %v529, 1.0
  %v531 = vrcp.pop %v530
  %v532 = vmul.f32 %v530, %v531
  %v533 = vsub.f32 1.0, %v532
  %v534 = vmul.f32 %v531, %v533
  %v535 = vadd.f32 %v531, %v534
  %vm536 = vweird.f32 %v530
  %vm537 = vweird.f32 %v531
  %vm538 = vmor %vm536, %vm537
  %v539 = vsel %vm538, %v531, %v535
  %v540 = vand.u32 2147483647, %v530
  %vm541 = vcmp.eq.f32.partialorder %v540, 8.507059e+37
  %v542 = vand.u32 %v530, 2147483648
  %v543 = vor.u32 1.1754944e-38, %v542
  %v544 = vsel %vm541, %v543, %v539
  %v545 = vmul.f32 1.0, %v544
  %547 = vrot.lane.b32.xlu0 %v502, 32
  %v548 = vpop.permute.xlu0 %547
  %v550 = vmul.f32 %v545, %v548
  %v551 = vpack.c.bf16 %v550, %v550
  %553 = vrot.lane.b32.xlu0 %v551, 96
  %v554 = vpop.permute.xlu0 %553
  %v556 = vsel %vm54, %v554, 0
  %558 = vmatpush.bf16.msra.mxu0 0
  %559 = vmatpush.bf16.msra.mxu0 0
  %560 = vmatpush.bf16.msra.mxu0 0
  %561 = vmatpush.bf16.msra.mxu0 0
  %562 = vmatpush.bf16.msra.mxu0 0
  %563 = vmatpush.bf16.msra.mxu0 0
  %564 = vmatpush.bf16.msra.mxu0 %v109
  %565 = vmatpush.bf16.msra.mxu0 %v108
  %566 = vmatmul.bf16.gmra.mxu0 %v556
  %v567 = vpop.f32.mrf.mxu0
  %v568 = vadd.f32 0.0, %v567
  %v569 = vpop.f32.mrf.mxu0
  %570 = vdwg.mxu0
  %v571 = vadd.f32 %v508, %v568
  %v572 = vtanh.pop %v571
  %v573 = vmul.f32 %v545, %v502
  %v574 = vsub.f32 1.0, %v545
  %v575 = vmul.f32 %v574, %v572
  %v576 = vadd.f32 %v573, %v575
  %s577 = scalar_lea.vmem %s5, 48
  %578 = vst.msk [vmem:[%s577] sm:$0xff] %vm54, %v576
  %s579 = scalar_lea.vmem %s0, 56
  %v580 = vld [vmem:[%s579] sm:$0xff]
  %s581 = scalar_lea.vmem %s1, 56
  %v582 = vld [vmem:[%s581] sm:$0xff]
  %v583 = vpack.c.bf16 %v576, %v576
  %v585 = vsel %vm54, %v583, 0
  %587 = vmatpush.bf16.msra.mxu0 0
  %588 = vmatpush.bf16.msra.mxu0 0
  %589 = vmatpush.bf16.msra.mxu0 0
  %590 = vmatpush.bf16.msra.mxu0 0
  %591 = vmatpush.bf16.msra.mxu0 0
  %592 = vmatpush.bf16.msra.mxu0 0
  %593 = vmatpush.bf16.msra.mxu0 %v51
  %594 = vmatpush.bf16.msra.mxu0 %v50
  %595 = vmatmul.bf16.gmra.mxu0 %v585
  %v596 = vpop.f32.mrf.mxu0
  %v597 = vadd.f32 0.0, %v596
  %v598 = vpop.f32.mrf.mxu0
  %599 = vdwg.mxu0
  %v600 = vadd.f32 %v580, %v597
  %v601 = vxor.u32 %v600, 2147483648
  %v602 = vmul.f32 %v601, 1.442695
  %v603 = vpow.pop %v602
  %v604 = vadd.f32 %v603, 1.0
  %v605 = vrcp.pop %v604
  %v606 = vmul.f32 %v604, %v605
  %v607 = vsub.f32 1.0, %v606
  %v608 = vmul.f32 %v605, %v607
  %v609 = vadd.f32 %v605, %v608
  %vm610 = vweird.f32 %v604
  %vm611 = vweird.f32 %v605
  %vm612 = vmor %vm610, %vm611
  %v613 = vsel %vm612, %v605, %v609
  %v614 = vand.u32 2147483647, %v604
  %vm615 = vcmp.eq.f32.partialorder %v614, 8.507059e+37
  %v616 = vand.u32 %v604, 2147483648
  %v617 = vor.u32 1.1754944e-38, %v616
  %v618 = vsel %vm615, %v617, %v613
  %v619 = vmul.f32 1.0, %v618
  %621 = vrot.lane.b32.xlu0 %v576, 32
  %v622 = vpop.permute.xlu0 %621
  %v624 = vmul.f32 %v619, %v622
  %v625 = vpack.c.bf16 %v624, %v624
  %627 = vrot.lane.b32.xlu0 %v625, 96
  %v628 = vpop.permute.xlu0 %627
  %v630 = vsel %vm54, %v628, 0
  %632 = vmatpush.bf16.msra.mxu0 0
  %633 = vmatpush.bf16.msra.mxu0 0
  %634 = vmatpush.bf16.msra.mxu0 0
  %635 = vmatpush.bf16.msra.mxu0 0
  %636 = vmatpush.bf16.msra.mxu0 0
  %637 = vmatpush.bf16.msra.mxu0 0
  %638 = vmatpush.bf16.msra.mxu0 %v109
  %639 = vmatpush.bf16.msra.mxu0 %v108
  %640 = vmatmul.bf16.gmra.mxu0 %v630
  %v641 = vpop.f32.mrf.mxu0
  %v642 = vadd.f32 0.0, %v641
  %v643 = vpop.f32.mrf.mxu0
  %644 = vdwg.mxu0
  %v645 = vadd.f32 %v582, %v642
  %v646 = vtanh.pop %v645
  %v647 = vmul.f32 %v619, %v576
  %v648 = vsub.f32 1.0, %v619
  %v649 = vmul.f32 %v648, %v646
  %v650 = vadd.f32 %v647, %v649
  %s651 = scalar_lea.vmem %s5, 56
  %652 = vst.msk [vmem:[%s651] sm:$0xff] %vm54, %v650
  %653 = vst.msk [vmem:[#allocation2] sm:$0xff] %vm54, %v650
  // Predicated region
  $region26: #{fwd.5} parent=0 // pred_check
    %p654 = pneg %p23
  $region27: #{fwd.5} parent=0 // pred_check_branch
    %656 = sbr.rel (%p654) target = $region29
  $region28: #{fwd.5} parent=0 // pred_region
    %657 = vst.msk [vmem:[%s6] sm:$0xff] %vm54, %v650
  $region29: #{fwd.5} parent=0 // pred_fallthru
    _
  // Predicated region
  $region30: #{fwd.5} parent=0 // pred_check
    _
  $region31: #{fwd.5} parent=0 // pred_check_branch
    %659 = sbr.rel (0) target = $region33
  $region32: #{fwd.5} parent=0 // pred_region
    _
  $region33: #{fwd.5} parent=0 // pred_fallthru
    _
  // Predicated region
  $region34: #{fwd.5} parent=0 // pred_check
    _
  $region35: #{fwd.5} parent=0 // pred_check_branch
    %661 = sbr.rel (0) target = $region37
  $region36: #{fwd.5} parent=0 // pred_region
    _
  $region37: #{fwd.5} parent=0 // pred_fallthru
    _
  // Predicated region
  $region38: #{fwd.5} parent=0 // pred_check
    _
  $region39: #{fwd.5} parent=0 // pred_check_branch
    %663 = sbr.rel (0) target = $region41
  $region40: #{fwd.5} parent=0 // pred_region
    _
  $region41: #{fwd.5} parent=0 // pred_fallthru
    _
  // Predicated region
  $region42: #{fwd.5} parent=0 // pred_check
    _
  $region43: #{fwd.5} parent=0 // pred_check_branch
    %665 = sbr.rel (0) target = $region45
  $region44: #{fwd.5} parent=0 // pred_region
    _
  $region45: #{fwd.5} parent=0 // pred_fallthru
    _

// kernel: fwd.7
$region0: #{fwd.7}
  #allocation0 [shape = 'u32[]', space=smem, size = 0x4, offset = 0x4, fixed_abs, tag = 'smem constant byte address 0x4 - core index']
  #allocation1 [shape = 'u32[72,128]{1,0:T(1,128)}', space=vmem, size = 0x9000, scoped, tag = 'internal scratch']
  #allocation2 [shape = 'f32[8,32]{1,0:T(8,128)}', space=vmem, size = 0x1000, scoped, tag = 'scratch operand']
  %s0 = inlined_call_operand.vmem [shape: f32[2,8,8,64], index: 0, kind: input, shape index: {}]
  %s1 = inlined_call_operand.vmem [shape: f32[2,8,8,32], index: 1, kind: input, shape index: {}]
  %s2 = inlined_call_operand.vmem [shape: f32[2,8,32], index: 2, kind: input, shape index: {}]
  %s3 = inlined_call_operand.vmem [shape: bf16[2,32,64], index: 3, kind: input, shape index: {}]
  %s4 = inlined_call_operand.vmem [shape: bf16[2,32,32], index: 4, kind: input, shape index: {}]
  %s5 = inlined_call_operand.vmem [shape: f32[2,8,32], index: 5, kind: output, shape index: {}]
  %s6 = sld [smem:[#allocation0]]
  $region61: #{fwd.7} parent=0
    _
  %s8 = ssub.s32 1, %s6
  %s9 = scalar_select 0, %s8, %s6
  loop: start=0, step=1, limit=4
  $region2: #{fwd.7} parent=0 // loop_pre_header
    _
  $region3: #{fwd.7} parent=0 // loop_header
    %s11 = sphi 0, %s15
    %p12 = scmp.ge.s32.totalorder %s11, 4
    %s18 = sphi 0, %s30
    %s19 = sphi 0, %s26
    %s20 = sphi 0, %s18
    %s21 = sphi 0, %s19
    %s22 = sphi 0, %s20
    %s23 = sphi 0, %s21
    %s35 = sphi 0, %s37
    %s38 = sphi 0, %s35
    %s39 = sphi 0, %s38
    %s55 = sphi 0, %s39
    %s63 = sphi 0, %s65
    %s66 = sphi 0, %s63
    %s67 = sphi 0, %s66
    %s83 = sphi 0, %s67
    %s89 = sphi 0, %s91
    %s92 = sphi 0, %s89
    %s93 = sphi 0, %s92
    %s109 = sphi 0, %s93
    %s115 = sphi 0, %s117
    %s118 = sphi 0, %s115
    %s119 = sphi 0, %s118
    %s135 = sphi 0, %s119
    %s141 = sphi 0, %s143
    %s144 = sphi 0, %s141
    %s145 = sphi 0, %s144
    %s161 = sphi 0, %s145
    %s167 = sphi 0, %s169
    %s170 = sphi 0, %s167
    %s171 = sphi 0, %s170
    %s187 = sphi 0, %s171
  $region4: #{fwd.7} parent=0 // loop_header_branch
    %14 = sbr.rel (%p12) target = $region8
  $region5: #{fwd.7} parent=0 // loop_body
    %s16 = ssub.s32 %s11, 1
    %s17 = ssub.s32 %s11, 2
    %s24 = sadd.s32 1, %s19
    %p25 = scmp.ge.s32.totalorder %s24, 1
    %s26 = scalar_select %p25, 0, %s24
    %s27 = sadd.s32 1, %s18
    %s28 = scalar_select %p25, %s27, %s18
    %p29 = scmp.ge.s32.totalorder %s28, 2
    %s30 = scalar_select %p29, 0, %s28
    %s31 = ssub.s32 %s18, %s30
    %s32 = ssub.s32 %s19, %s26
    %s33 = sor.u32 %s31, %s32
    %p34 = scmp.eq.s32.totalorder %s33, 0
    %s36 = sadd.s32 %s35, 1
    %s37 = scalar_select %p34, %s35, %s36
    %p40 = pneg %p34
    %p41 = scmp.eq.s32.totalorder %s11, 1
    %p42 = por %p40, %p41
    %p43 = scmp.ne.s32.totalorder %s35, %s38
    %p44 = scmp.eq.s32.totalorder %s11, 0
    %p45 = por %p43, %p44
    %p46 = scmp.ne.s32.totalorder %s35, %s38
    %p47 = scmp.eq.s32.totalorder %s16, 1
    %p48 = por %p46, %p47
    %p49 = scmp.ne.s32.totalorder %s38, %s39
    %p50 = scmp.eq.s32.totalorder %s16, 0
    %p51 = por %p49, %p50
    %p52 = scmp.ne.s32.totalorder %s38, %s39
    %p53 = scmp.eq.s32.totalorder %s17, 1
    %p54 = por %p52, %p53
    %p56 = scmp.ne.s32.totalorder %s39, %s55
    %p57 = scmp.eq.s32.totalorder %s17, 0
    %p58 = por %p56, %p57
    %s59 = ssub.s32 %s18, %s30
    %s60 = ssub.s32 %s19, %s26
    %s61 = sor.u32 %s59, %s60
    %p62 = scmp.eq.s32.totalorder %s61, 0
    %s64 = sadd.s32 %s63, 1
    %s65 = scalar_select %p62, %s63, %s64
    %p68 = pneg %p62
    %p69 = scmp.eq.s32.totalorder %s11, 1
    %p70 = por %p68, %p69
    %p71 = scmp.ne.s32.totalorder %s63, %s66
    %p72 = scmp.eq.s32.totalorder %s11, 0
    %p73 = por %p71, %p72
    %p74 = scmp.ne.s32.totalorder %s63, %s66
    %p75 = scmp.eq.s32.totalorder %s16, 1
    %p76 = por %p74, %p75
    %p77 = scmp.ne.s32.totalorder %s66, %s67
    %p78 = scmp.eq.s32.totalorder %s16, 0
    %p79 = por %p77, %p78
    %p80 = scmp.ne.s32.totalorder %s66, %s67
    %p81 = scmp.eq.s32.totalorder %s17, 1
    %p82 = por %p80, %p81
    %p84 = scmp.ne.s32.totalorder %s67, %s83
    %p85 = scmp.eq.s32.totalorder %s17, 0
    %p86 = por %p84, %p85
    %s87 = ssub.s32 %s18, %s30
    %p88 = scmp.eq.s32.totalorder %s87, 0
    %s90 = sadd.s32 %s89, 1
    %s91 = scalar_select %p88, %s89, %s90
    %p94 = pneg %p88
    %p95 = scmp.eq.s32.totalorder %s11, 1
    %p96 = por %p94, %p95
    %p97 = scmp.ne.s32.totalorder %s89, %s92
    %p98 = scmp.eq.s32.totalorder %s11, 0
    %p99 = por %p97, %p98
    %p100 = scmp.ne.s32.totalorder %s89, %s92
    %p101 = scmp.eq.s32.totalorder %s16, 1
    %p102 = por %p100, %p101
    %p103 = scmp.ne.s32.totalorder %s92, %s93
    %p104 = scmp.eq.s32.totalorder %s16, 0
    %p105 = por %p103, %p104
    %p106 = scmp.ne.s32.totalorder %s92, %s93
    %p107 = scmp.eq.s32.totalorder %s17, 1
    %p108 = por %p106, %p107
    %p110 = scmp.ne.s32.totalorder %s93, %s109
    %p111 = scmp.eq.s32.totalorder %s17, 0
    %p112 = por %p110, %p111
    %s113 = ssub.s32 %s18, %s30
    %p114 = scmp.eq.s32.totalorder %s113, 0
    %s116 = sadd.s32 %s115, 1
    %s117 = scalar_select %p114, %s115, %s116
    %p120 = pneg %p114
    %p121 = scmp.eq.s32.totalorder %s11, 1
    %p122 = por %p120, %p121
    %p123 = scmp.ne.s32.totalorder %s115, %s118
    %p124 = scmp.eq.s32.totalorder %s11, 0
    %p125 = por %p123, %p124
    %p126 = scmp.ne.s32.totalorder %s115, %s118
    %p127 = scmp.eq.s32.totalorder %s16, 1
    %p128 = por %p126, %p127
    %p129 = scmp.ne.s32.totalorder %s118, %s119
    %p130 = scmp.eq.s32.totalorder %s16, 0
    %p131 = por %p129, %p130
    %p132 = scmp.ne.s32.totalorder %s118, %s119
    %p133 = scmp.eq.s32.totalorder %s17, 1
    %p134 = por %p132, %p133
    %p136 = scmp.ne.s32.totalorder %s119, %s135
    %p137 = scmp.eq.s32.totalorder %s17, 0
    %p138 = por %p136, %p137
    %s139 = ssub.s32 %s18, %s30
    %p140 = scmp.eq.s32.totalorder %s139, 0
    %s142 = sadd.s32 %s141, 1
    %s143 = scalar_select %p140, %s141, %s142
    %p146 = pneg %p140
    %p147 = scmp.eq.s32.totalorder %s11, 1
    %p148 = por %p146, %p147
    %p149 = scmp.ne.s32.totalorder %s141, %s144
    %p150 = scmp.eq.s32.totalorder %s11, 0
    %p151 = por %p149, %p150
    %p152 = scmp.ne.s32.totalorder %s141, %s144
    %p153 = scmp.eq.s32.totalorder %s16, 1
    %p154 = por %p152, %p153
    %p155 = scmp.ne.s32.totalorder %s144, %s145
    %p156 = scmp.eq.s32.totalorder %s16, 0
    %p157 = por %p155, %p156
    %p158 = scmp.ne.s32.totalorder %s144, %s145
    %p159 = scmp.eq.s32.totalorder %s17, 1
    %p160 = por %p158, %p159
    %p162 = scmp.ne.s32.totalorder %s145, %s161
    %p163 = scmp.eq.s32.totalorder %s17, 0
    %p164 = por %p162, %p163
    %s165 = ssub.s32 %s18, %s30
    %p166 = scmp.eq.s32.totalorder %s165, 0
    %s168 = sadd.s32 %s167, 1
    %s169 = scalar_select %p166, %s167, %s168
    %p172 = pneg %p166
    %p173 = scmp.eq.s32.totalorder %s11, 1
    %p174 = por %p172, %p173
    %p175 = scmp.ne.s32.totalorder %s167, %s170
    %p176 = scmp.eq.s32.totalorder %s11, 0
    %p177 = por %p175, %p176
    %p178 = scmp.ne.s32.totalorder %s167, %s170
    %p179 = scmp.eq.s32.totalorder %s16, 1
    %p180 = por %p178, %p179
    %p181 = scmp.ne.s32.totalorder %s170, %s171
    %p182 = scmp.eq.s32.totalorder %s16, 0
    %p183 = por %p181, %p182
    %p184 = scmp.ne.s32.totalorder %s170, %s171
    %p185 = scmp.eq.s32.totalorder %s17, 1
    %p186 = por %p184, %p185
    %p188 = scmp.ne.s32.totalorder %s171, %s187
    %p189 = scmp.eq.s32.totalorder %s17, 0
    %p190 = por %p188, %p189
    %p191 = scmp.le.s32.totalorder 1, %s11
    %p192 = scmp.lt.s32.totalorder %s11, 3
    %p193 = pnand %p191, %p192
    %p194 = pneg %p193
    // Predicated region
    $region9: #{fwd.7} parent=5 // pred_check
      _
    $region10: #{fwd.7} parent=5 // pred_check_branch
      %196 = sbr.rel (%p193) target = $region12
    $region11: #{fwd.7} parent=5 // pred_region
      %s197 = ssub.s32 %s11, 1
    $region12: #{fwd.7} parent=5 // pred_fallthru
      _
    %p198 = scmp.lt.s32.totalorder %s11, 2
    // Predicated region
    $region13: #{fwd.7} parent=5 // pred_check
      %p199 = pneg %p198
    $region14: #{fwd.7} parent=5 // pred_check_branch
      %201 = sbr.rel (%p199) target = $region16
    $region15: #{fwd.7} parent=5 // pred_region
      // Predicated region
      $region17: #{fwd.7} parent=15 // pred_check
        %p202 = pneg %p45
      $region18: #{fwd.7} parent=15 // pred_check_branch
        %204 = sbr.rel (%p202) target = $region20
      $region19: #{fwd.7} parent=15 // pred_region
        %s205 = smul.u32 8, %s19
        %p206 = scmp.lt.s32.totalorder %s18, 1
        %s207 = scalar_select %p206, %s18, 1
        %p208 = scmp.lt.s32.totalorder %s205, 7
        %s209 = scalar_select %p208, %s205, 7
        %s210 = smul.addr %s207, 8
        %s211 = sadd.s32 %s209, %s210
        %s212 = smul.addr %s211, 8
        %s213 = scalar_lea.vmem %s0, %s212
        %s214 = smul.u32 8, %s19
      $region20: #{fwd.7} parent=15 // pred_fallthru
        _
      // Predicated region
      $region21: #{fwd.7} parent=15 // pred_check
        %p215 = pneg %p73
      $region22: #{fwd.7} parent=15 // pred_check_branch
        %217 = sbr.rel (%p215) target = $region24
      $region23: #{fwd.7} parent=15 // pred_region
        %s218 = smul.u32 8, %s19
        %p219 = scmp.lt.s32.totalorder %s18, 1
        %s220 = scalar_select %p219, %s18, 1
        %p221 = scmp.lt.s32.totalorder %s218, 7
        %s222 = scalar_select %p221, %s218, 7
        %s223 = smul.addr %s220, 8
        %s224 = sadd.s32 %s222, %s223
        %s225 = smul.addr %s224, 8
        %s226 = scalar_lea.vmem %s1, %s225
        %s227 = smul.u32 8, %s19
      $region24: #{fwd.7} parent=15 // pred_fallthru
        _
      // Predicated region
      $region25: #{fwd.7} parent=15 // pred_check
        %p228 = pneg %p99
      $region26: #{fwd.7} parent=15 // pred_check_branch
        %230 = sbr.rel (%p228) target = $region28
      $region27: #{fwd.7} parent=15 // pred_region
        %p231 = scmp.lt.s32.totalorder %s18, 1
        %s232 = scalar_select %p231, %s18, 1
        %s233 = smul.addr %s232, 8
        %s234 = scalar_lea.vmem %s2, %s233
      $region28: #{fwd.7} parent=15 // pred_fallthru
        _
      // Predicated region
      $region29: #{fwd.7} parent=15 // pred_check
        %p235 = pneg %p125
      $region30: #{fwd.7} parent=15 // pred_check_branch
        %237 = sbr.rel (%p235) target = $region32
      $region31: #{fwd.7} parent=15 // pred_region
        %p238 = scmp.lt.s32.totalorder %s18, 1
        %s239 = scalar_select %p238, %s18, 1
        %s240 = smul.addr %s239, 4
        %s241 = smul.addr %s240, 4
        %s242 = scalar_lea.vmem %s3, %s241
      $region32: #{fwd.7} parent=15 // pred_fallthru
        _
      // Predicated region
      $region33: #{fwd.7} parent=15 // pred_check
        %p243 = pneg %p151
      $region34: #{fwd.7} parent=15 // pred_check_branch
        %245 = sbr.rel (%p243) target = $region36
      $region35: #{fwd.7} parent=15 // pred_region
        %p246 = scmp.lt.s32.totalorder %s18, 1
        %s247 = scalar_select %p246, %s18, 1
        %s248 = smul.addr %s247, 4
        %s249 = smul.addr %s248, 4
        %s250 = scalar_lea.vmem %s4, %s249
      $region36: #{fwd.7} parent=15 // pred_fallthru
        _
    $region16: #{fwd.7} parent=5 // pred_fallthru
      _
    %p251 = scmp.le.s32.totalorder 1, %s11
    %p252 = scmp.lt.s32.totalorder %s11, 3
    %p253 = pnand %p251, %p252
    %p254 = pneg %p253
    // Predicated region
    $region37: #{fwd.7} parent=5 // pred_check
      _
    $region38: #{fwd.7} parent=5 // pred_check_branch
      %256 = sbr.rel (%p253) target = $region40
    $region39: #{fwd.7} parent=5 // pred_region
      %s257 = ssub.s32 %s11, 1
      %s258 = smul.u32 8, %s21
      %p259 = scmp.lt.s32.totalorder %s20, 1
      %s260 = scalar_select %p259, %s20, 1
      %p261 = scmp.lt.s32.totalorder %s258, 7
      %s262 = scalar_select %p261, %s258, 7
      %s263 = smul.addr %s260, 8
      %s264 = sadd.s32 %s262, %s263
      %s265 = smul.addr %s264, 8
      %s266 = scalar_lea.vmem %s0, %s265
      %p267 = pneg %p51
      %p268 = pneg %p48
      %s269 = smul.u32 8, %s21
      %p270 = scmp.lt.s32.totalorder %s20, 1
      %s271 = scalar_select %p270, %s20, 1
      %p272 = scmp.lt.s32.totalorder %s269, 7
      %s273 = scalar_select %p272, %s269, 7
      %s274 = smul.addr %s271, 8
      %s275 = sadd.s32 %s273, %s274
      %s276 = smul.addr %s275, 8
      %s277 = scalar_lea.vmem %s1, %s276
      %p278 = pneg %p79
      %p279 = pneg %p76
      %p280 = scmp.lt.s32.totalorder %s20, 1
      %s281 = scalar_select %p280, %s20, 1
      %s282 = smul.addr %s281, 8
      %s283 = scalar_lea.vmem %s2, %s282
      %p284 = pneg %p105
      %p285 = pneg %p102
      %p286 = scmp.lt.s32.totalorder %s20, 1
      %s287 = scalar_select %p286, %s20, 1
      %s288 = smul.addr %s287, 4
      %s289 = smul.addr %s288, 4
      %s290 = scalar_lea.vmem %s3, %s289
      %p291 = pneg %p131
      %p292 = pneg %p128
      %p293 = scmp.lt.s32.totalorder %s20, 1
      %s294 = scalar_select %p293, %s20, 1
      %s295 = smul.addr %s294, 4
      %s296 = smul.addr %s295, 4
      %s297 = scalar_lea.vmem %s4, %s296
      %p298 = pneg %p157
      %p299 = pneg %p154
      %p300 = pneg %p183
      %p301 = pneg %p180
      %p302 = scmp.lt.s32.totalorder %s20, 1
      %s303 = scalar_select %p302, %s20, 1
      %s304 = smul.addr %s303, 8
      %s305 = scalar_lea.vmem %s5, %s304
      %s306 = smul.u32 8, %s21
      %p307 = scmp.lt.s32.totalorder %s20, 1
      %s308 = scalar_select %p307, %s20, 1
      %p309 = scmp.lt.s32.totalorder %s306, 7
      %s310 = scalar_select %p309, %s306, 7
      %s311 = smul.addr %s308, 8
      %s312 = sadd.s32 %s310, %s311
      %s313 = smul.addr %s312, 8
      %s314 = scalar_lea.vmem %s0, %s313
      %s315 = smul.u32 8, %s21
      %s316 = smul.u32 8, %s21
      %p317 = scmp.lt.s32.totalorder %s20, 1
      %s318 = scalar_select %p317, %s20, 1
      %p319 = scmp.lt.s32.totalorder %s316, 7
      %s320 = scalar_select %p319, %s316, 7
      %s321 = smul.addr %s318, 8
      %s322 = sadd.s32 %s320, %s321
      %s323 = smul.addr %s322, 8
      %s324 = scalar_lea.vmem %s1, %s323
      %s325 = smul.u32 8, %s21
      %p326 = scmp.lt.s32.totalorder %s20, 1
      %s327 = scalar_select %p326, %s20, 1
      %s328 = smul.addr %s327, 8
      %s329 = scalar_lea.vmem %s2, %s328
      %p330 = scmp.lt.s32.totalorder %s20, 1
      %s331 = scalar_select %p330, %s20, 1
      %s332 = smul.addr %s331, 4
      %s333 = smul.addr %s332, 4
      %s334 = scalar_lea.vmem %s3, %s333
      %p335 = scmp.lt.s32.totalorder %s20, 1
      %s336 = scalar_select %p335, %s20, 1
      %s337 = smul.addr %s336, 4
      %s338 = smul.addr %s337, 4
      %s339 = scalar_lea.vmem %s4, %s338
      %p340 = scmp.lt.s32.totalorder %s20, 1
      %s341 = scalar_select %p340, %s20, 1
      %s342 = smul.addr %s341, 8
      %s343 = scalar_lea.vmem %s5, %s342
      %p345 = scmp.eq.s32.totalorder %s21, 0
      // Predicated region
      $region41: #{fwd.7} parent=39 // pred_check
        %p346 = pneg %p345
      $region42: #{fwd.7} parent=39 // pred_check_branch
        %348 = sbr.rel (%p346) target = $region44
      $region43: #{fwd.7} parent=39 // pred_region
        %v349 = vld [vmem:[%s329] sm:$0xff]
        %vm350 = vcmask 261120
        %351 = vst.msk [vmem:[#allocation2] sm:$0xff] %vm350, %v349
      $region44: #{fwd.7} parent=39 // pred_fallthru
        _
      %v352 = vld [vmem:[%s334] sm:$0xf]
      %v353 = vld [vmem:[%s334 + $0x4] sm:$0xf]
      %v354 = vld [vmem:[%s334 + $0x8] sm:$0xf]
      %v355 = vld [vmem:[%s334 + $0xc] sm:$0xf]
      %v356 = vld [vmem:[%s339] sm:$0xf]
      %v357 = vld [vmem:[%s339 + $0x4] sm:$0xf]
      %v358 = vld [vmem:[%s339 + $0x8] sm:$0xf]
      %v359 = vld [vmem:[%s339 + $0xc] sm:$0xf]
      %v360 = vld [vmem:[#allocation2] sm:$0xff]
      %v361 = vld [vmem:[%s314] sm:$0xff]
      %v362 = vld [vmem:[%s324] sm:$0xff]
      %v363 = vpack.c.bf16 %v360, %v360
      %v368 = vunpack.c.l.b16 %v352
      %v369 = vunpack.c.l.b16 %v353
      %v370 = vunpack.c.l.b16 %v354
      %v371 = vunpack.c.l.b16 %v355
      %v372 = vpack.c.b16 %v369, %v368
      %v373 = vpack.c.b16 %v371, %v370
      %vm376 = vcmask 261120
      %v378 = vsel %vm376, %v363, 0
      %380 = vmatpush.bf16.msra.mxu0 0
      %381 = vmatpush.bf16.msra.mxu0 0
      %382 = vmatpush.bf16.msra.mxu0 0
      %383 = vmatpush.bf16.msra.mxu0 0
      %384 = vmatpush.bf16.msra.mxu0 0
      %385 = vmatpush.bf16.msra.mxu0 0
      %386 = vmatpush.bf16.msra.mxu0 %v373
      %387 = vmatpush.bf16.msra.mxu0 %v372
      %388 = vmatmul.bf16.gmra.mxu0 %v378
      %v389 = vpop.f32.mrf.mxu0
      %v390 = vadd.f32 0.0, %v389
      %v391 = vpop.f32.mrf.mxu0
      %392 = vdwg.mxu0
      %v393 = vadd.f32 %v361, %v390
      %v394 = vxor.u32 %v393, 2147483648
      %v395 = vmul.f32 %v394, 1.442695
      %v396 = vpow.pop %v395
      %v397 = vadd.f32 %v396, 1.0
      %v398 = vrcp.pop %v397
      %v399 = vmul.f32 %v397, %v398
      %v400 = vsub.f32 1.0, %v399
      %v401 = vmul.f32 %v398, %v400
      %v402 = vadd.f32 %v398, %v401
      %vm403 = vweird.f32 %v397
      %vm404 = vweird.f32 %v398
      %vm405 = vmor %vm403, %vm404
      %v406 = vsel %vm405, %v398, %v402
      %v407 = vand.u32 2147483647, %v397
      %vm408 = vcmp.eq.f32.partialorder %v407, 8.507059e+37
      %v409 = vand.u32 %v397, 2147483648
      %v410 = vor.u32 1.1754944e-38, %v409
      %v411 = vsel %vm408, %v410, %v406
      %v412 = vmul.f32 1.0, %v411
      %414 = vrot.lane.b32.xlu0 %v360, 32
      %v415 = vpop.permute.xlu0 %414
      %v417 = vmul.f32 %v412, %v415
      %v418 = vpack.c.bf16 %v417, %v417
      %420 = vrot.lane.b32.xlu0 %v418, 96
      %v421 = vpop.permute.xlu0 %420
      %v426 = vunpack.c.l.b16 %v356
      %v427 = vunpack.c.l.b16 %v357
      %v428 = vunpack.c.l.b16 %v358
      %v429 = vunpack.c.l.b16 %v359
      %v430 = vpack.c.b16 %v427, %v426
      %v431 = vpack.c.b16 %v429, %v428
      %v435 = vsel %vm376, %v421, 0
      %437 = vmatpush.bf16.msra.mxu0 0
      %438 = vmatpush.bf16.msra.mxu0 0
      %439 = vmatpush.bf16.msra.mxu0 0
      %440 = vmatpush.bf16.msra.mxu0 0
      %441 = vmatpush.bf16.msra.mxu0 0
      %442 = vmatpush.bf16.msra.mxu0 0
      %443 = vmatpush.bf16.msra.mxu0 %v431
      %444 = vmatpush.bf16.msra.mxu0 %v430
      %445 = vmatmul.bf16.gmra.mxu0 %v435
      %v446 = vpop.f32.mrf.mxu0
      %v447 = vadd.f32 0.0, %v446
      %v448 = vpop.f32.mrf.mxu0
      %449 = vdwg.mxu0
      %v450 = vadd.f32 %v362, %v447
      %v451 = vtanh.pop %v450
      %v452 = vmul.f32 %v412, %v360
      %v453 = vsub.f32 1.0, %v412
      %v454 = vmul.f32 %v453, %v451
      %v455 = vadd.f32 %v452, %v454
      %s456 = scalar_lea.vmem %s314, 8
      %v457 = vld [vmem:[%s456] sm:$0xff]
      %s458 = scalar_lea.vmem %s324, 8
      %v459 = vld [vmem:[%s458] sm:$0xff]
      %v460 = vpack.c.bf16 %v455, %v455
      %v462 = vsel %vm376, %v460, 0
      %464 = vmatpush.bf16.msra.mxu0 0
      %465 = vmatpush.bf16.msra.mxu0 0
      %466 = vmatpush.bf16.msra.mxu0 0
      %467 = vmatpush.bf16.msra.mxu0 0
      %468 = vmatpush.bf16.msra.mxu0 0
      %469 = vmatpush.bf16.msra.mxu0 0
      %470 = vmatpush.bf16.msra.mxu0 %v373
      %471 = vmatpush.bf16.msra.mxu0 %v372
      %472 = vmatmul.bf16.gmra.mxu0 %v462
      %v473 = vpop.f32.mrf.mxu0
      %v474 = vadd.f32 0.0, %v473
      %v475 = vpop.f32.mrf.mxu0
      %476 = vdwg.mxu0
      %v477 = vadd.f32 %v457, %v474
      %v478 = vxor.u32 %v477, 2147483648
      %v479 = vmul.f32 %v478, 1.442695
      %v480 = vpow.pop %v479
      %v481 = vadd.f32 %v480, 1.0
      %v482 = vrcp.pop %v481
      %v483 = vmul.f32 %v481, %v482
      %v484 = vsub.f32 1.0, %v483
      %v485 = vmul.f32 %v482, %v484
      %v486 = vadd.f32 %v482, %v485
      %vm487 = vweird.f32 %v481
      %vm488 = vweird.f32 %v482
      %vm489 = vmor %vm487, %vm488
      %v490 = vsel %vm489, %v482, %v486
      %v491 = vand.u32 2147483647, %v481
      %vm492 = vcmp.eq.f32.partialorder %v491, 8.507059e+37
      %v493 = vand.u32 %v481, 2147483648
      %v494 = vor.u32 1.1754944e-38, %v493
      %v495 = vsel %vm492, %v494, %v490
      %v496 = vmul.f32 1.0, %v495
      %498 = vrot.lane.b32.xlu0 %v455, 32
      %v499 = vpop.permute.xlu0 %498
      %v501 = vmul.f32 %v496, %v499
      %v502 = vpack.c.bf16 %v501, %v501
      %504 = vrot.lane.b32.xlu0 %v502, 96
      %v505 = vpop.permute.xlu0 %504
      %v507 = vsel %vm376, %v505, 0
      %509 = vmatpush.bf16.msra.mxu0 0
      %510 = vmatpush.bf16.msra.mxu0 0
      %511 = vmatpush.bf16.msra.mxu0 0
      %512 = vmatpush.bf16.msra.mxu0 0
      %513 = vmatpush.bf16.msra.mxu0 0
      %514 = vmatpush.bf16.msra.mxu0 0
      %515 = vmatpush.bf16.msra.mxu0 %v431
      %516 = vmatpush.bf16.msra.mxu0 %v430
      %517 = vmatmul.bf16.gmra.mxu0 %v507
      %v518 = vpop.f32.mrf.mxu0
      %v519 = vadd.f32 0.0, %v518
      %v520 = vpop.f32.mrf.mxu0
      %521 = vdwg.mxu0
      %v522 = vadd.f32 %v459, %v519
      %v523 = vtanh.pop %v522
      %v524 = vmul.f32 %v496, %v455
      %v525 = vsub.f32 1.0, %v496
      %v526 = vmul.f32 %v525, %v523
      %v527 = vadd.f32 %v524, %v526
      %s528 = scalar_lea.vmem %s314, 16
      %v529 = vld [vmem:[%s528] sm:$0xff]
      %s530 = scalar_lea.vmem %s324, 16
      %v531 = vld [vmem:[%s530] sm:$0xff]
      %v532 = vpack.c.bf16 %v527, %v527
      %v534 = vsel %vm376, %v532, 0
      %536 = vmatpush.bf16.msra.mxu0 0
      %537 = vmatpush.bf16.msra.mxu0 0
      %538 = vmatpush.bf16.msra.mxu0 0
      %539 = vmatpush.bf16.msra.mxu0 0
      %540 = vmatpush.bf16.msra.mxu0 0
      %541 = vmatpush.bf16.msra.mxu0 0
      %542 = vmatpush.bf16.msra.mxu0 %v373
      %543 = vmatpush.bf16.msra.mxu0 %v372
      %544 = vmatmul.bf16.gmra.mxu0 %v534
      %v545 = vpop.f32.mrf.mxu0
      %v546 = vadd.f32 0.0, %v545
      %v547 = vpop.f32.mrf.mxu0
      %548 = vdwg.mxu0
      %v549 = vadd.f32 %v529, %v546
      %v550 = vxor.u32 %v549, 2147483648
      %v551 = vmul.f32 %v550, 1.442695
      %v552 = vpow.pop %v551
      %v553 = vadd.f32 %v552, 1.0
      %v554 = vrcp.pop %v553
      %v555 = vmul.f32 %v553, %v554
      %v556 = vsub.f32 1.0, %v555
      %v557 = vmul.f32 %v554, %v556
      %v558 = vadd.f32 %v554, %v557
      %vm559 = vweird.f32 %v553
      %vm560 = vweird.f32 %v554
      %vm561 = vmor %vm559, %vm560
      %v562 = vsel %vm561, %v554, %v558
      %v563 = vand.u32 2147483647, %v553
      %vm564 = vcmp.eq.f32.partialorder %v563, 8.507059e+37
      %v565 = vand.u32 %v553, 2147483648
      %v566 = vor.u32 1.1754944e-38, %v565
      %v567 = vsel %vm564, %v566, %v562
      %v568 = vmul.f32 1.0, %v567
      %570 = vrot.lane.b32.xlu0 %v527, 32
      %v571 = vpop.permute.xlu0 %570
      %v573 = vmul.f32 %v568, %v571
      %v574 = vpack.c.bf16 %v573, %v573
      %576 = vrot.lane.b32.xlu0 %v574, 96
      %v577 = vpop.permute.xlu0 %576
      %v579 = vsel %vm376, %v577, 0
      %581 = vmatpush.bf16.msra.mxu0 0
      %582 = vmatpush.bf16.msra.mxu0 0
      %583 = vmatpush.bf16.msra.mxu0 0
      %584 = vmatpush.bf16.msra.mxu0 0
      %585 = vmatpush.bf16.msra.mxu0 0
      %586 = vmatpush.bf16.msra.mxu0 0
      %587 = vmatpush.bf16.msra.mxu0 %v431
      %588 = vmatpush.bf16.msra.mxu0 %v430
      %589 = vmatmul.bf16.gmra.mxu0 %v579
      %v590 = vpop.f32.mrf.mxu0
      %v591 = vadd.f32 0.0, %v590
      %v592 = vpop.f32.mrf.mxu0
      %593 = vdwg.mxu0
      %v594 = vadd.f32 %v531, %v591
      %v595 = vtanh.pop %v594
      %v596 = vmul.f32 %v568, %v527
      %v597 = vsub.f32 1.0, %v568
      %v598 = vmul.f32 %v597, %v595
      %v599 = vadd.f32 %v596, %v598
      %s600 = scalar_lea.vmem %s314, 24
      %v601 = vld [vmem:[%s600] sm:$0xff]
      %s602 = scalar_lea.vmem %s324, 24
      %v603 = vld [vmem:[%s602] sm:$0xff]
      %v604 = vpack.c.bf16 %v599, %v599
      %v606 = vsel %vm376, %v604, 0
      %608 = vmatpush.bf16.msra.mxu0 0
      %609 = vmatpush.bf16.msra.mxu0 0
      %610 = vmatpush.bf16.msra.mxu0 0
      %611 = vmatpush.bf16.msra.mxu0 0
      %612 = vmatpush.bf16.msra.mxu0 0
      %613 = vmatpush.bf16.msra.mxu0 0
      %614 = vmatpush.bf16.msra.mxu0 %v373
      %615 = vmatpush.bf16.msra.mxu0 %v372
      %616 = vmatmul.bf16.gmra.mxu0 %v606
      %v617 = vpop.f32.mrf.mxu0
      %v618 = vadd.f32 0.0, %v617
      %v619 = vpop.f32.mrf.mxu0
      %620 = vdwg.mxu0
      %v621 = vadd.f32 %v601, %v618
      %v622 = vxor.u32 %v621, 2147483648
      %v623 = vmul.f32 %v622, 1.442695
      %v624 = vpow.pop %v623
      %v625 = vadd.f32 %v624, 1.0
      %v626 = vrcp.pop %v625
      %v627 = vmul.f32 %v625, %v626
      %v628 = vsub.f32 1.0, %v627
      %v629 = vmul.f32 %v626, %v628
      %v630 = vadd.f32 %v626, %v629
      %vm631 = vweird.f32 %v625
      %vm632 = vweird.f32 %v626
      %vm633 = vmor %vm631, %vm632
      %v634 = vsel %vm633, %v626, %v630
      %v635 = vand.u32 2147483647, %v625
      %vm636 = vcmp.eq.f32.partialorder %v635, 8.507059e+37
      %v637 = vand.u32 %v625, 2147483648
      %v638 = vor.u32 1.1754944e-38, %v637
      %v639 = vsel %vm636, %v638, %v634
      %v640 = vmul.f32 1.0, %v639
      %642 = vrot.lane.b32.xlu0 %v599, 32
      %v643 = vpop.permute.xlu0 %642
      %v645 = vmul.f32 %v640, %v643
      %v646 = vpack.c.bf16 %v645, %v645
      %648 = vrot.lane.b32.xlu0 %v646, 96
      %v649 = vpop.permute.xlu0 %648
      %v651 = vsel %vm376, %v649, 0
      %653 = vmatpush.bf16.msra.mxu0 0
      %654 = vmatpush.bf16.msra.mxu0 0
      %655 = vmatpush.bf16.msra.mxu0 0
      %656 = vmatpush.bf16.msra.mxu0 0
      %657 = vmatpush.bf16.msra.mxu0 0
      %658 = vmatpush.bf16.msra.mxu0 0
      %659 = vmatpush.bf16.msra.mxu0 %v431
      %660 = vmatpush.bf16.msra.mxu0 %v430
      %661 = vmatmul.bf16.gmra.mxu0 %v651
      %v662 = vpop.f32.mrf.mxu0
      %v663 = vadd.f32 0.0, %v662
      %v664 = vpop.f32.mrf.mxu0
      %665 = vdwg.mxu0
      %v666 = vadd.f32 %v603, %v663
      %v667 = vtanh.pop %v666
      %v668 = vmul.f32 %v640, %v599
      %v669 = vsub.f32 1.0, %v640
      %v670 = vmul.f32 %v669, %v667
      %v671 = vadd.f32 %v668, %v670
      %s672 = scalar_lea.vmem %s314, 32
      %v673 = vld [vmem:[%s672] sm:$0xff]
      %s674 = scalar_lea.vmem %s324, 32
      %v675 = vld [vmem:[%s674] sm:$0xff]
      %v676 = vpack.c.bf16 %v671, %v671
      %v678 = vsel %vm376, %v676, 0
      %680 = vmatpush.bf16.msra.mxu0 0
      %681 = vmatpush.bf16.msra.mxu0 0
      %682 = vmatpush.bf16.msra.mxu0 0
      %683 = vmatpush.bf16.msra.mxu0 0
      %684 = vmatpush.bf16.msra.mxu0 0
      %685 = vmatpush.bf16.msra.mxu0 0
      %686 = vmatpush.bf16.msra.mxu0 %v373
      %687 = vmatpush.bf16.msra.mxu0 %v372
      %688 = vmatmul.bf16.gmra.mxu0 %v678
      %v689 = vpop.f32.mrf.mxu0
      %v690 = vadd.f32 0.0, %v689
      %v691 = vpop.f32.mrf.mxu0
      %692 = vdwg.mxu0
      %v693 = vadd.f32 %v673, %v690
      %v694 = vxor.u32 %v693, 2147483648
      %v695 = vmul.f32 %v694, 1.442695
      %v696 = vpow.pop %v695
      %v697 = vadd.f32 %v696, 1.0
      %v698 = vrcp.pop %v697
      %v699 = vmul.f32 %v697, %v698
      %v700 = vsub.f32 1.0, %v699
      %v701 = vmul.f32 %v698, %v700
      %v702 = vadd.f32 %v698, %v701
      %vm703 = vweird.f32 %v697
      %vm704 = vweird.f32 %v698
      %vm705 = vmor %vm703, %vm704
      %v706 = vsel %vm705, %v698, %v702
      %v707 = vand.u32 2147483647, %v697
      %vm708 = vcmp.eq.f32.partialorder %v707, 8.507059e+37
      %v709 = vand.u32 %v697, 2147483648
      %v710 = vor.u32 1.1754944e-38, %v709
      %v711 = vsel %vm708, %v710, %v706
      %v712 = vmul.f32 1.0, %v711
      %714 = vrot.lane.b32.xlu0 %v671, 32
      %v715 = vpop.permute.xlu0 %714
      %v717 = vmul.f32 %v712, %v715
      %v718 = vpack.c.bf16 %v717, %v717
      %720 = vrot.lane.b32.xlu0 %v718, 96
      %v721 = vpop.permute.xlu0 %720
      %v723 = vsel %vm376, %v721, 0
      %725 = vmatpush.bf16.msra.mxu0 0
      %726 = vmatpush.bf16.msra.mxu0 0
      %727 = vmatpush.bf16.msra.mxu0 0
      %728 = vmatpush.bf16.msra.mxu0 0
      %729 = vmatpush.bf16.msra.mxu0 0
      %730 = vmatpush.bf16.msra.mxu0 0
      %731 = vmatpush.bf16.msra.mxu0 %v431
      %732 = vmatpush.bf16.msra.mxu0 %v430
      %733 = vmatmul.bf16.gmra.mxu0 %v723
      %v734 = vpop.f32.mrf.mxu0
      %v735 = vadd.f32 0.0, %v734
      %v736 = vpop.f32.mrf.mxu0
      %737 = vdwg.mxu0
      %v738 = vadd.f32 %v675, %v735
      %v739 = vtanh.pop %v738
      %v740 = vmul.f32 %v712, %v671
      %v741 = vsub.f32 1.0, %v712
      %v742 = vmul.f32 %v741, %v739
      %v743 = vadd.f32 %v740, %v742
      %s744 = scalar_lea.vmem %s314, 40
      %v745 = vld [vmem:[%s744] sm:$0xff]
      %s746 = scalar_lea.vmem %s324, 40
      %v747 = vld [vmem:[%s746] sm:$0xff]
      %v748 = vpack.c.bf16 %v743, %v743
      %v750 = vsel %vm376, %v748, 0
      %752 = vmatpush.bf16.msra.mxu0 0
      %753 = vmatpush.bf16.msra.mxu0 0
      %754 = vmatpush.bf16.msra.mxu0 0
      %755 = vmatpush.bf16.msra.mxu0 0
      %756 = vmatpush.bf16.msra.mxu0 0
      %757 = vmatpush.bf16.msra.mxu0 0
      %758 = vmatpush.bf16.msra.mxu0 %v373
      %759 = vmatpush.bf16.msra.mxu0 %v372
      %760 = vmatmul.bf16.gmra.mxu0 %v750
      %v761 = vpop.f32.mrf.mxu0
      %v762 = vadd.f32 0.0, %v761
      %v763 = vpop.f32.mrf.mxu0
      %764 = vdwg.mxu0
      %v765 = vadd.f32 %v745, %v762
      %v766 = vxor.u32 %v765, 2147483648
      %v767 = vmul.f32 %v766, 1.442695
      %v768 = vpow.pop %v767
      %v769 = vadd.f32 %v768, 1.0
      %v770 = vrcp.pop %v769
      %v771 = vmul.f32 %v769, %v770
      %v772 = vsub.f32 1.0, %v771
      %v773 = vmul.f32 %v770, %v772
      %v774 = vadd.f32 %v770, %v773
      %vm775 = vweird.f32 %v769
      %vm776 = vweird.f32 %v770
      %vm777 = vmor %vm775, %vm776
      %v778 = vsel %vm777, %v770, %v774
      %v779 = vand.u32 2147483647, %v769
      %vm780 = vcmp.eq.f32.partialorder %v779, 8.507059e+37
      %v781 = vand.u32 %v769, 2147483648
      %v782 = vor.u32 1.1754944e-38, %v781
      %v783 = vsel %vm780, %v782, %v778
      %v784 = vmul.f32 1.0, %v783
      %786 = vrot.lane.b32.xlu0 %v743, 32
      %v787 = vpop.permute.xlu0 %786
      %v789 = vmul.f32 %v784, %v787
      %v790 = vpack.c.bf16 %v789, %v789
      %792 = vrot.lane.b32.xlu0 %v790, 96
      %v793 = vpop.permute.xlu0 %792
      %v795 = vsel %vm376, %v793, 0
      %797 = vmatpush.bf16.msra.mxu0 0
      %798 = vmatpush.bf16.msra.mxu0 0
      %799 = vmatpush.bf16.msra.mxu0 0
      %800 = vmatpush.bf16.msra.mxu0 0
      %801 = vmatpush.bf16.msra.mxu0 0
      %802 = vmatpush.bf16.msra.mxu0 0
      %803 = vmatpush.bf16.msra.mxu0 %v431
      %804 = vmatpush.bf16.msra.mxu0 %v430
      %805 = vmatmul.bf16.gmra.mxu0 %v795
      %v806 = vpop.f32.mrf.mxu0
      %v807 = vadd.f32 0.0, %v806
      %v808 = vpop.f32.mrf.mxu0
      %809 = vdwg.mxu0
      %v810 = vadd.f32 %v747, %v807
      %v811 = vtanh.pop %v810
      %v812 = vmul.f32 %v784, %v743
      %v813 = vsub.f32 1.0, %v784
      %v814 = vmul.f32 %v813, %v811
      %v815 = vadd.f32 %v812, %v814
      %s816 = scalar_lea.vmem %s314, 48
      %v817 = vld [vmem:[%s816] sm:$0xff]
      %s818 = scalar_lea.vmem %s324, 48
      %v819 = vld [vmem:[%s818] sm:$0xff]
      %v820 = vpack.c.bf16 %v815, %v815
      %v822 = vsel %vm376, %v820, 0
      %824 = vmatpush.bf16.msra.mxu0 0
      %825 = vmatpush.bf16.msra.mxu0 0
      %826 = vmatpush.bf16.msra.mxu0 0
      %827 = vmatpush.bf16.msra.mxu0 0
      %828 = vmatpush.bf16.msra.mxu0 0
      %829 = vmatpush.bf16.msra.mxu0 0
      %830 = vmatpush.bf16.msra.mxu0 %v373
      %831 = vmatpush.bf16.msra.mxu0 %v372
      %832 = vmatmul.bf16.gmra.mxu0 %v822
      %v833 = vpop.f32.mrf.mxu0
      %v834 = vadd.f32 0.0, %v833
      %v835 = vpop.f32.mrf.mxu0
      %836 = vdwg.mxu0
      %v837 = vadd.f32 %v817, %v834
      %v838 = vxor.u32 %v837, 2147483648
      %v839 = vmul.f32 %v838, 1.442695
      %v840 = vpow.pop %v839
      %v841 = vadd.f32 %v840, 1.0
      %v842 = vrcp.pop %v841
      %v843 = vmul.f32 %v841, %v842
      %v844 = vsub.f32 1.0, %v843
      %v845 = vmul.f32 %v842, %v844
      %v846 = vadd.f32 %v842, %v845
      %vm847 = vweird.f32 %v841
      %vm848 = vweird.f32 %v842
      %vm849 = vmor %vm847, %vm848
      %v850 = vsel %vm849, %v842, %v846
      %v851 = vand.u32 2147483647, %v841
      %vm852 = vcmp.eq.f32.partialorder %v851, 8.507059e+37
      %v853 = vand.u32 %v841, 2147483648
      %v854 = vor.u32 1.1754944e-38, %v853
      %v855 = vsel %vm852, %v854, %v850
      %v856 = vmul.f32 1.0, %v855
      %858 = vrot.lane.b32.xlu0 %v815, 32
      %v859 = vpop.permute.xlu0 %858
      %v861 = vmul.f32 %v856, %v859
      %v862 = vpack.c.bf16 %v861, %v861
      %864 = vrot.lane.b32.xlu0 %v862, 96
      %v865 = vpop.permute.xlu0 %864
      %v867 = vsel %vm376, %v865, 0
      %869 = vmatpush.bf16.msra.mxu0 0
      %870 = vmatpush.bf16.msra.mxu0 0
      %871 = vmatpush.bf16.msra.mxu0 0
      %872 = vmatpush.bf16.msra.mxu0 0
      %873 = vmatpush.bf16.msra.mxu0 0
      %874 = vmatpush.bf16.msra.mxu0 0
      %875 = vmatpush.bf16.msra.mxu0 %v431
      %876 = vmatpush.bf16.msra.mxu0 %v430
      %877 = vmatmul.bf16.gmra.mxu0 %v867
      %v878 = vpop.f32.mrf.mxu0
      %v879 = vadd.f32 0.0, %v878
      %v880 = vpop.f32.mrf.mxu0
      %881 = vdwg.mxu0
      %v882 = vadd.f32 %v819, %v879
      %v883 = vtanh.pop %v882
      %v884 = vmul.f32 %v856, %v815
      %v885 = vsub.f32 1.0, %v856
      %v886 = vmul.f32 %v885, %v883
      %v887 = vadd.f32 %v884, %v886
      %s888 = scalar_lea.vmem %s314, 56
      %v889 = vld [vmem:[%s888] sm:$0xff]
      %s890 = scalar_lea.vmem %s324, 56
      %v891 = vld [vmem:[%s890] sm:$0xff]
      %v892 = vpack.c.bf16 %v887, %v887
      %v894 = vsel %vm376, %v892, 0
      %896 = vmatpush.bf16.msra.mxu0 0
      %897 = vmatpush.bf16.msra.mxu0 0
      %898 = vmatpush.bf16.msra.mxu0 0
      %899 = vmatpush.bf16.msra.mxu0 0
      %900 = vmatpush.bf16.msra.mxu0 0
      %901 = vmatpush.bf16.msra.mxu0 0
      %902 = vmatpush.bf16.msra.mxu0 %v373
      %903 = vmatpush.bf16.msra.mxu0 %v372
      %904 = vmatmul.bf16.gmra.mxu0 %v894
      %v905 = vpop.f32.mrf.mxu0
      %v906 = vadd.f32 0.0, %v905
      %v907 = vpop.f32.mrf.mxu0
      %908 = vdwg.mxu0
      %v909 = vadd.f32 %v889, %v906
      %v910 = vxor.u32 %v909, 2147483648
      %v911 = vmul.f32 %v910, 1.442695
      %v912 = vpow.pop %v911
      %v913 = vadd.f32 %v912, 1.0
      %v914 = vrcp.pop %v913
      %v915 = vmul.f32 %v913, %v914
      %v916 = vsub.f32 1.0, %v915
      %v917 = vmul.f32 %v914, %v916
      %v918 = vadd.f32 %v914, %v917
      %vm919 = vweird.f32 %v913
      %vm920 = vweird.f32 %v914
      %vm921 = vmor %vm919, %vm920
      %v922 = vsel %vm921, %v914, %v918
      %v923 = vand.u32 2147483647, %v913
      %vm924 = vcmp.eq.f32.partialorder %v923, 8.507059e+37
      %v925 = vand.u32 %v913, 2147483648
      %v926 = vor.u32 1.1754944e-38, %v925
      %v927 = vsel %vm924, %v926, %v922
      %v928 = vmul.f32 1.0, %v927
      %930 = vrot.lane.b32.xlu0 %v887, 32
      %v931 = vpop.permute.xlu0 %930
      %v933 = vmul.f32 %v928, %v931
      %v934 = vpack.c.bf16 %v933, %v933
      %936 = vrot.lane.b32.xlu0 %v934, 96
      %v937 = vpop.permute.xlu0 %936
      %v939 = vsel %vm376, %v937, 0
      %941 = vmatpush.bf16.msra.mxu0 0
      %942 = vmatpush.bf16.msra.mxu0 0
      %943 = vmatpush.bf16.msra.mxu0 0
      %944 = vmatpush.bf16.msra.mxu0 0
      %945 = vmatpush.bf16.msra.mxu0 0
      %946 = vmatpush.bf16.msra.mxu0 0
      %947 = vmatpush.bf16.msra.mxu0 %v431
      %948 = vmatpush.bf16.msra.mxu0 %v430
      %949 = vmatmul.bf16.gmra.mxu0 %v939
      %v950 = vpop.f32.mrf.mxu0
      %v951 = vadd.f32 0.0, %v950
      %v952 = vpop.f32.mrf.mxu0
      %953 = vdwg.mxu0
      %v954 = vadd.f32 %v891, %v951
      %v955 = vtanh.pop %v954
      %v956 = vmul.f32 %v928, %v887
      %v957 = vsub.f32 1.0, %v928
      %v958 = vmul.f32 %v957, %v955
      %v959 = vadd.f32 %v956, %v958
      %960 = vst.msk [vmem:[#allocation2] sm:$0xff] %vm376, %v959
      // Predicated region
      $region45: #{fwd.7} parent=39 // pred_check
        %p961 = pneg %p345
      $region46: #{fwd.7} parent=39 // pred_check_branch
        %963 = sbr.rel (%p961) target = $region48
      $region47: #{fwd.7} parent=39 // pred_region
        %964 = vst.msk [vmem:[%s343] sm:$0xff] %vm376, %v959
      $region48: #{fwd.7} parent=39 // pred_fallthru
        _
      %p965 = scmp.lt.s32.totalorder %s20, 1
      %s966 = scalar_select %p965, %s20, 1
      %s967 = smul.addr %s966, 8
      %s968 = scalar_lea.vmem %s5, %s967
      // Predicated region
      $region49: #{fwd.7} parent=39 // pred_check
        %p969 = pneg %p180
      $region50: #{fwd.7} parent=39 // pred_check_branch
        %971 = sbr.rel (%p969) target = $region52
      $region51: #{fwd.7} parent=39 // pred_region
        _
      $region52: #{fwd.7} parent=39 // pred_fallthru
        _
    $region40: #{fwd.7} parent=5 // pred_fallthru
      _
    %p972 = scmp.le.s32.totalorder 2, %s11
    // Predicated region
    $region53: #{fwd.7} parent=5 // pred_check
      %p973 = pneg %p972
    $region54: #{fwd.7} parent=5 // pred_check_branch
      %975 = sbr.rel (%p973) target = $region56
    $region55: #{fwd.7} parent=5 // pred_region
      %s976 = ssub.s32 %s11, 2
      // Predicated region
      $region57: #{fwd.7} parent=55 // pred_check
        %p977 = pneg %p186
      $region58: #{fwd.7} parent=55 // pred_check_branch
        %979 = sbr.rel (%p977) target = $region60
      $region59: #{fwd.7} parent=55 // pred_region
        %p980 = scmp.lt.s32.totalorder %s22, 1
        %s981 = scalar_select %p980, %s22, 1
        %s982 = smul.addr %s981, 8
        %s983 = scalar_lea.vmem %s5, %s982
      $region60: #{fwd.7} parent=55 // pred_fallthru
        _
    $region56: #{fwd.7} parent=5 // pred_fallthru
      _
  $region6: #{fwd.7} parent=0 // loop_footer
    %s15 = sadd.s32 1, %s11
  $region7: #{fwd.7} parent=0 // loop_footer_branch
    %10 = sbr.rel target = $region3
  $region8: #{fwd.7} parent=0 // loop_exit
    _

</llo_original>
